<compile_context>
chip_gen: v6e
topology: v6e:2x2x1
jax: 0.10.0
libtpu: 0.0.40
codegen_flags: <defaults>
</compile_context>

<pallas_src>
import jax
import jax.numpy as jnp
import numpy as np
from jax import lax
from jax.experimental import pallas as pl
from jax.experimental.pallas import tpu as pltpu

# Full f32 matmuls for the plain-JAX reference / glue; the kernel sets its own
# precision explicitly on the dot.
jax.config.update("jax_default_matmul_precision", "highest")

# ----- synthetic FLAME dimensions -----
V = 512            # vertices
J = 5              # joints: global, neck, jaw, eye_L, eye_R
N_SHAPE = 8
N_EXP = 8
L = N_SHAPE + N_EXP
P = (J - 1) * 9    # 36 pose-feature dims
C = L + P          # 52 blend coefficients per batch element
C1 = C + 1         # + constant 1.0 column for the folded template add
V3 = V * 3

PARENTS = np.array([-1, 0, 1, 1, 1], dtype=np.int32)  # FLAME kinematic tree


# =========================== fused Pallas kernel ===========================
#
# Layouts (lane axis = last, all f32, whole arrays resident in VMEM, grid=()):
#   coefs   (B, C1)    [betas | pose_feature | 1.0]
#   dirs_T  (C1, 3V)   stacked [shapedirs ; posedirs ; v_template], col = k*V + v
#   w_lane  (J, V)     lbs_weights transposed
#   a_skin  (B, J*12)  top 3x4 rows of each joint 4x4 transform
#   out     (3, B, V)  skinned vertices, lane-dense (transposed to (B,V,3) in JAX)

def _flame_kernel(coefs_ref, dirs_ref, w_ref, a_ref, out_ref):
    # ---- blendshapes + template: single fused (B, C1) @ (C1, 3V) matmul ----
    vposed = jnp.dot(coefs_ref[...], dirs_ref[...],
                     preferred_element_type=jnp.float32,
                     precision=lax.Precision.HIGHEST)          # (B, 3V)
    vx = vposed[:, 0 * V:1 * V]                                # (B, V)
    vy = vposed[:, 1 * V:2 * V]
    vz = vposed[:, 2 * V:3 * V]

    a = a_ref[...]                                             # (B, J*12)

    # ---- LBS skinning: 5-term VPU weighted sum, j-outer / p-inner ----
    # vert[p] = sum_j W[:, j] * (A[j,p,0]*vx + A[j,p,1]*vy + A[j,p,2]*vz + A[j,p,3])
    acc = [None, None, None]
    for j in range(J):
        wj = w_ref[j:j + 1, :]                                 # (1, V) bcast over batch
        for p in range(3):
            base = j * 12 + p * 4
            a0 = a[:, base + 0:base + 1]                       # (B, 1) bcast over lanes
            a1 = a[:, base + 1:base + 2]
            a2 = a[:, base + 2:base + 3]
            a3 = a[:, base + 3:base + 4]
            term = wj * (a0 * vx + a1 * vy + a2 * vz + a3)     # (B, V)
            acc[p] = term if acc[p] is None else acc[p] + term

    # direct per-row stores (no cross-sublane concatenate)
    out_ref[0] = acc[0]
    out_ref[1] = acc[1]
    out_ref[2] = acc[2]


def flame_lbs(coefs, dirs_T, w_lane, a_skin):
    B = coefs.shape[0]
    cost = pl.CostEstimate(
        flops=2 * B * C1 * V3 + 8 * B * 3 * J * V,
        transcendentals=0,
        bytes_accessed=4 * (C1 * V3 + J * V + B * (C1 + J * 12) + 3 * B * V))
    vmem = pl.BlockSpec(memory_space=pltpu.MemorySpace.VMEM)
    return pl.pallas_call(
        _flame_kernel,
        out_shape=jax.ShapeDtypeStruct((3, B, V), jnp.float32),
        in_specs=[vmem, vmem, vmem, vmem],
        out_specs=vmem,
        cost_estimate=cost,
    )(coefs, dirs_T, w_lane, a_skin)


# =========================== plain-JAX glue ===========================
# Rodrigues + 5-joint kinematic chain: tiny scalar-dominated work, kept in JAX.

def batch_rodrigues(rot_vecs):
    angle = jnp.linalg.norm(rot_vecs + 1e-8, axis=1, keepdims=True)       # (N,1)
    rot_dir = rot_vecs / angle
    cos = jnp.cos(angle)[:, None]                                         # (N,1,1)
    sin = jnp.sin(angle)[:, None]
    rx, ry, rz = rot_dir[:, 0], rot_dir[:, 1], rot_dir[:, 2]
    zeros = jnp.zeros_like(rx)
    K = jnp.stack([zeros, -rz, ry,
                   rz, zeros, -rx,
                   -ry, rx, zeros], axis=1).reshape(-1, 3, 3)
    ident = jnp.eye(3, dtype=rot_vecs.dtype)[None]
    return ident + sin * K + (1.0 - cos) * jnp.matmul(K, K)


def _transform_mat(R, t):
    bottom = jnp.broadcast_to(jnp.array([[[0.0, 0.0, 0.0, 1.0]]], dtype=R.dtype),
                              (R.shape[0], 1, 4))
    return jnp.concatenate([jnp.concatenate([R, t], axis=2), bottom], axis=1)


def batch_rigid_transform(rot_mats, joints, parents):
    # rot_mats: (B,J,3,3)  joints: (B,J,3)
    joints = joints[..., None]                                            # (B,J,3,1)
    rel_joints = joints.at[:, 1:].add(-joints[:, parents[1:]])
    tmats = _transform_mat(rot_mats.reshape(-1, 3, 3),
                           rel_joints.reshape(-1, 3, 1)).reshape(-1, J, 4, 4)
    chain = [tmats[:, 0]]
    for i in range(1, J):
        chain.append(jnp.matmul(chain[int(parents[i])], tmats[:, i]))
    transforms = jnp.stack(chain, axis=1)                                 # (B,J,4,4)
    posed_joints = transforms[:, :, :3, 3]
    joints_h = jnp.concatenate([joints, jnp.zeros_like(joints[:, :, :1])], axis=2)
    rel = transforms - jnp.pad(jnp.matmul(transforms, joints_h),
                               ((0, 0), (0, 0), (0, 0), (3, 0)))
    return posed_joints, rel


# =========================== FLAME module ===========================

class FlameJax:
    def __init__(self, key, shape_params, factor=1.0):
        k = jax.random.split(key, 5)
        v_template = jax.random.normal(k[0], (V, 3), jnp.float32) * 0.1 * factor
        self.shapedirs = jax.random.normal(k[1], (V, 3, L), jnp.float32) * 0.01 * factor
        self.posedirs = jax.random.normal(k[2], (P, V3), jnp.float32) * 0.01 * factor
        jr = jax.random.uniform(k[3], (J, V), jnp.float32)
        self.J_regressor = jr / jr.sum(axis=1, keepdims=True)
        lw = jax.random.uniform(k[4], (V, J), jnp.float32)
        self.lbs_weights = lw / lw.sum(axis=1, keepdims=True)
        self.parents = PARENTS

        # Personalize template with subject shape params (as in FLAME.__init__)
        shape_blend = jnp.einsum('bl,mkl->bmk', shape_params,
                                 self.shapedirs[:, :, :N_SHAPE])[0]
        self.v_template = v_template + shape_blend

        # ---- kernel-friendly lane-dense layouts (built once at init) ----
        sd_T = jnp.transpose(self.shapedirs, (2, 1, 0)).reshape(L, V3)       # (L, 3V)
        pd_T = jnp.transpose(self.posedirs.reshape(P, V, 3),
                             (0, 2, 1)).reshape(P, V3)                       # (P, 3V)
        vt_row = self.v_template.T.reshape(1, V3)                            # (1, 3V)
        # template add folded into the matmul as the last row of dirs_T
        self.dirs_T = jnp.concatenate([sd_T, pd_T, vt_row], axis=0)          # (C1, 3V)
        self.w_lane = self.lbs_weights.T                                     # (J, V)

        # ---- fold J_regressor into init so v_shaped never materializes ----
        self.J_template = jnp.matmul(self.J_regressor, self.v_template)      # (J, 3)
        self.J_dirs = jnp.einsum('jv,vkl->jkl', self.J_regressor,
                                 self.shapedirs)                             # (J, 3, L)

    def forward(self, expression_params, full_pose):
        B = expression_params.shape[0]
        betas = jnp.concatenate(
            [jnp.zeros((B, N_SHAPE), jnp.float32), expression_params[:, :N_EXP]],
            axis=1)
        rot_mats = batch_rodrigues(full_pose.reshape(-1, 3)).reshape(B, J, 3, 3)
        pose_feature = (rot_mats[:, 1:] - jnp.eye(3, dtype=jnp.float32)).reshape(B, P)

        # joints directly from betas (regressor folded at init); then rigid chain
        joints = self.J_template[None] + jnp.einsum('bl,jkl->bjk', betas, self.J_dirs)
        _, A = batch_rigid_transform(rot_mats, joints, self.parents)

        # --- fused Pallas hot path: blendshapes + LBS skinning, single step ---
        coefs = jnp.concatenate(
            [betas, pose_feature, jnp.ones((B, 1), jnp.float32)], axis=1)     # (B, C1)
        a_skin = A[:, :, :3, :].reshape(B, J * 12)                            # (B, 60)
        verts_T = flame_lbs(coefs, self.dirs_T, self.w_lane, a_skin)          # (3, B, V)
        vertices = jnp.transpose(verts_T, (1, 2, 0))                          # (B, V, 3)
        return vertices, pose_feature, A


# =========================== pure-JAX reference ===========================

def flame_ref(model, expression_params, full_pose):
    B = expression_params.shape[0]
    betas = jnp.concatenate(
        [jnp.zeros((B, N_SHAPE), jnp.float32), expression_params[:, :N_EXP]], axis=1)
    v_shaped = model.v_template[None] + jnp.einsum('bl,mkl->bmk', betas, model.shapedirs)
    joints = jnp.einsum('jv,bvk->bjk', model.J_regressor, v_shaped)
    rot_mats = batch_rodrigues(full_pose.reshape(-1, 3)).reshape(B, J, 3, 3)
    pose_feature = (rot_mats[:, 1:] - jnp.eye(3, dtype=jnp.float32)).reshape(B, P)
    pose_offsets = jnp.matmul(pose_feature, model.posedirs).reshape(B, V, 3)
    v_posed = v_shaped + pose_offsets
    _, A = batch_rigid_transform(rot_mats, joints, model.parents)
    W = jnp.broadcast_to(model.lbs_weights[None], (B, V, J))
    T = jnp.matmul(W, A.reshape(B, J, 16)).reshape(B, V, 4, 4)
    vh = jnp.concatenate([v_posed, jnp.ones((B, V, 1), jnp.float32)], axis=2)
    verts = jnp.matmul(T, vh[..., None])[:, :, :3, 0]
    return verts, pose_feature, A


# =========================== main ===========================

if __name__ == "__main__":
    key = jax.random.PRNGKey(0)
    k_model, k_shape, k_exp, k_pose = jax.random.split(key, 4)

    BATCH = 2
    shape_params = jax.random.normal(k_shape, (1, N_SHAPE), jnp.float32) * 0.5
    expression_params = jax.random.normal(k_exp, (BATCH, N_EXP), jnp.float32) * 0.5
    full_pose = jax.random.normal(k_pose, (BATCH, 15), jnp.float32) * 0.2

    model = FlameJax(k_model, shape_params)
    fwd = jax.jit(model.forward)

    vertices, pose_feature, transformations = jax.block_until_ready(
        fwd(expression_params, full_pose))

    assert vertices.shape == (BATCH, V, 3)
    assert pose_feature.shape == (BATCH, P)
    assert transformations.shape == (BATCH, J, 4, 4)

    v_ref, pf_ref, A_ref = jax.block_until_ready(
        flame_ref(model, expression_params, full_pose))
    np.testing.assert_allclose(np.asarray(vertices), np.asarray(v_ref),
                               rtol=1e-4, atol=1e-4)
    np.testing.assert_allclose(np.asarray(pose_feature), np.asarray(pf_ref),
                               rtol=1e-4, atol=1e-4)
    np.testing.assert_allclose(np.asarray(transformations), np.asarray(A_ref),
                               rtol=1e-4, atol=1e-4)

    print("KERNEL_OK")
</pallas_src>

<mosaic_0001>
module attributes {stable_mosaic.version = 11 : i64} {
  func.func @_flame_kernel(%arg0: memref<2x53xf32, #tpu.memory_space<vmem>>, %arg1: memref<53x1536xf32, #tpu.memory_space<vmem>>, %arg2: memref<5x512xf32, #tpu.memory_space<vmem>>, %arg3: memref<2x60xf32, #tpu.memory_space<vmem>>, %arg4: memref<3x2x512xf32, #tpu.memory_space<vmem>>) attributes {dimension_semantics = [], scalar_prefetch = 0 : i64, scratch_operands = 0 : i64, tpu.core_type = #tpu.core_type<tc>} {
    %c0 = arith.constant 0 : index
    %c0_0 = arith.constant 0 : index
    %0 = vector.load %arg0[%c0, %c0_0] : memref<2x53xf32, #tpu.memory_space<vmem>>, vector<2x53xf32>
    %c0_1 = arith.constant 0 : index
    %c0_2 = arith.constant 0 : index
    %1 = vector.load %arg1[%c0_1, %c0_2] : memref<53x1536xf32, #tpu.memory_space<vmem>>, vector<53x1536xf32>
    %cst = arith.constant dense<0.000000e+00> : vector<2x1536xf32>
    %2 = tpu.matmul %0, %1, %cst {dimension_numbers = #tpu.dot_dimension_numbers<[1], [0], [0], [1], [0, 0, 1, 1], [], []>, precision = #tpu.contract_precision<fp32>} : vector<2x53xf32>, vector<53x1536xf32>, vector<2x1536xf32> -> vector<2x1536xf32>
    %3 = vector.extract_strided_slice %2 {offsets = [0, 0], sizes = [2, 512], strides = [1, 1]} : vector<2x1536xf32> to vector<2x512xf32>
    %4 = vector.extract_strided_slice %2 {offsets = [0, 512], sizes = [2, 512], strides = [1, 1]} : vector<2x1536xf32> to vector<2x512xf32>
    %5 = vector.extract_strided_slice %2 {offsets = [0, 1024], sizes = [2, 512], strides = [1, 1]} : vector<2x1536xf32> to vector<2x512xf32>
    %c0_3 = arith.constant 0 : index
    %c0_4 = arith.constant 0 : index
    %6 = vector.load %arg3[%c0_3, %c0_4] : memref<2x60xf32, #tpu.memory_space<vmem>>, vector<2x60xf32>
    %c0_5 = arith.constant 0 : index
    %c0_6 = arith.constant 0 : index
    %7 = vector.load %arg2[%c0_5, %c0_6] : memref<5x512xf32, #tpu.memory_space<vmem>>, vector<1x512xf32>
    %8 = vector.extract_strided_slice %6 {offsets = [0, 0], sizes = [2, 1], strides = [1, 1]} : vector<2x60xf32> to vector<2x1xf32>
    %9 = vector.extract_strided_slice %6 {offsets = [0, 1], sizes = [2, 1], strides = [1, 1]} : vector<2x60xf32> to vector<2x1xf32>
    %10 = vector.extract_strided_slice %6 {offsets = [0, 2], sizes = [2, 1], strides = [1, 1]} : vector<2x60xf32> to vector<2x1xf32>
    %11 = vector.extract_strided_slice %6 {offsets = [0, 3], sizes = [2, 1], strides = [1, 1]} : vector<2x60xf32> to vector<2x1xf32>
    %12 = vector.broadcast %8 : vector<2x1xf32> to vector<2x512xf32>
    %13 = arith.mulf %12, %3 : vector<2x512xf32>
    %14 = vector.broadcast %9 : vector<2x1xf32> to vector<2x512xf32>
    %15 = arith.mulf %14, %4 : vector<2x512xf32>
    %16 = arith.addf %13, %15 : vector<2x512xf32>
    %17 = vector.broadcast %10 : vector<2x1xf32> to vector<2x512xf32>
    %18 = arith.mulf %17, %5 : vector<2x512xf32>
    %19 = arith.addf %16, %18 : vector<2x512xf32>
    %20 = vector.broadcast %11 : vector<2x1xf32> to vector<2x512xf32>
    %21 = arith.addf %19, %20 : vector<2x512xf32>
    %22 = vector.broadcast %7 : vector<1x512xf32> to vector<2x512xf32>
    %23 = arith.mulf %22, %21 : vector<2x512xf32>
    %24 = vector.extract_strided_slice %6 {offsets = [0, 4], sizes = [2, 1], strides = [1, 1]} : vector<2x60xf32> to vector<2x1xf32>
    %25 = vector.extract_strided_slice %6 {offsets = [0, 5], sizes = [2, 1], strides = [1, 1]} : vector<2x60xf32> to vector<2x1xf32>
    %26 = vector.extract_strided_slice %6 {offsets = [0, 6], sizes = [2, 1], strides = [1, 1]} : vector<2x60xf32> to vector<2x1xf32>
    %27 = vector.extract_strided_slice %6 {offsets = [0, 7], sizes = [2, 1], strides = [1, 1]} : vector<2x60xf32> to vector<2x1xf32>
    %28 = vector.broadcast %24 : vector<2x1xf32> to vector<2x512xf32>
    %29 = arith.mulf %28, %3 : vector<2x512xf32>
    %30 = vector.broadcast %25 : vector<2x1xf32> to vector<2x512xf32>
    %31 = arith.mulf %30, %4 : vector<2x512xf32>
    %32 = arith.addf %29, %31 : vector<2x512xf32>
    %33 = vector.broadcast %26 : vector<2x1xf32> to vector<2x512xf32>
    %34 = arith.mulf %33, %5 : vector<2x512xf32>
    %35 = arith.addf %32, %34 : vector<2x512xf32>
    %36 = vector.broadcast %27 : vector<2x1xf32> to vector<2x512xf32>
    %37 = arith.addf %35, %36 : vector<2x512xf32>
    %38 = vector.broadcast %7 : vector<1x512xf32> to vector<2x512xf32>
    %39 = arith.mulf %38, %37 : vector<2x512xf32>
    %40 = vector.extract_strided_slice %6 {offsets = [0, 8], sizes = [2, 1], strides = [1, 1]} : vector<2x60xf32> to vector<2x1xf32>
    %41 = vector.extract_strided_slice %6 {offsets = [0, 9], sizes = [2, 1], strides = [1, 1]} : vector<2x60xf32> to vector<2x1xf32>
    %42 = vector.extract_strided_slice %6 {offsets = [0, 10], sizes = [2, 1], strides = [1, 1]} : vector<2x60xf32> to vector<2x1xf32>
    %43 = vector.extract_strided_slice %6 {offsets = [0, 11], sizes = [2, 1], strides = [1, 1]} : vector<2x60xf32> to vector<2x1xf32>
    %44 = vector.broadcast %40 : vector<2x1xf32> to vector<2x512xf32>
    %45 = arith.mulf %44, %3 : vector<2x512xf32>
    %46 = vector.broadcast %41 : vector<2x1xf32> to vector<2x512xf32>
    %47 = arith.mulf %46, %4 : vector<2x512xf32>
    %48 = arith.addf %45, %47 : vector<2x512xf32>
    %49 = vector.broadcast %42 : vector<2x1xf32> to vector<2x512xf32>
    %50 = arith.mulf %49, %5 : vector<2x512xf32>
    %51 = arith.addf %48, %50 : vector<2x512xf32>
    %52 = vector.broadcast %43 : vector<2x1xf32> to vector<2x512xf32>
    %53 = arith.addf %51, %52 : vector<2x512xf32>
    %54 = vector.broadcast %7 : vector<1x512xf32> to vector<2x512xf32>
    %55 = arith.mulf %54, %53 : vector<2x512xf32>
    %c1 = arith.constant 1 : index
    %c0_7 = arith.constant 0 : index
    %56 = vector.load %arg2[%c1, %c0_7] : memref<5x512xf32, #tpu.memory_space<vmem>>, vector<1x512xf32>
    %57 = vector.extract_strided_slice %6 {offsets = [0, 12], sizes = [2, 1], strides = [1, 1]} : vector<2x60xf32> to vector<2x1xf32>
    %58 = vector.extract_strided_slice %6 {offsets = [0, 13], sizes = [2, 1], strides = [1, 1]} : vector<2x60xf32> to vector<2x1xf32>
    %59 = vector.extract_strided_slice %6 {offsets = [0, 14], sizes = [2, 1], strides = [1, 1]} : vector<2x60xf32> to vector<2x1xf32>
    %60 = vector.extract_strided_slice %6 {offsets = [0, 15], sizes = [2, 1], strides = [1, 1]} : vector<2x60xf32> to vector<2x1xf32>
    %61 = vector.broadcast %57 : vector<2x1xf32> to vector<2x512xf32>
    %62 = arith.mulf %61, %3 : vector<2x512xf32>
    %63 = vector.broadcast %58 : vector<2x1xf32> to vector<2x512xf32>
    %64 = arith.mulf %63, %4 : vector<2x512xf32>
    %65 = arith.addf %62, %64 : vector<2x512xf32>
    %66 = vector.broadcast %59 : vector<2x1xf32> to vector<2x512xf32>
    %67 = arith.mulf %66, %5 : vector<2x512xf32>
    %68 = arith.addf %65, %67 : vector<2x512xf32>
    %69 = vector.broadcast %60 : vector<2x1xf32> to vector<2x512xf32>
    %70 = arith.addf %68, %69 : vector<2x512xf32>
    %71 = vector.broadcast %56 : vector<1x512xf32> to vector<2x512xf32>
    %72 = arith.mulf %71, %70 : vector<2x512xf32>
    %73 = arith.addf %23, %72 : vector<2x512xf32>
    %74 = vector.extract_strided_slice %6 {offsets = [0, 16], sizes = [2, 1], strides = [1, 1]} : vector<2x60xf32> to vector<2x1xf32>
    %75 = vector.extract_strided_slice %6 {offsets = [0, 17], sizes = [2, 1], strides = [1, 1]} : vector<2x60xf32> to vector<2x1xf32>
    %76 = vector.extract_strided_slice %6 {offsets = [0, 18], sizes = [2, 1], strides = [1, 1]} : vector<2x60xf32> to vector<2x1xf32>
    %77 = vector.extract_strided_slice %6 {offsets = [0, 19], sizes = [2, 1], strides = [1, 1]} : vector<2x60xf32> to vector<2x1xf32>
    %78 = vector.broadcast %74 : vector<2x1xf32> to vector<2x512xf32>
    %79 = arith.mulf %78, %3 : vector<2x512xf32>
    %80 = vector.broadcast %75 : vector<2x1xf32> to vector<2x512xf32>
    %81 = arith.mulf %80, %4 : vector<2x512xf32>
    %82 = arith.addf %79, %81 : vector<2x512xf32>
    %83 = vector.broadcast %76 : vector<2x1xf32> to vector<2x512xf32>
    %84 = arith.mulf %83, %5 : vector<2x512xf32>
    %85 = arith.addf %82, %84 : vector<2x512xf32>
    %86 = vector.broadcast %77 : vector<2x1xf32> to vector<2x512xf32>
    %87 = arith.addf %85, %86 : vector<2x512xf32>
    %88 = vector.broadcast %56 : vector<1x512xf32> to vector<2x512xf32>
    %89 = arith.mulf %88, %87 : vector<2x512xf32>
    %90 = arith.addf %39, %89 : vector<2x512xf32>
    %91 = vector.extract_strided_slice %6 {offsets = [0, 20], sizes = [2, 1], strides = [1, 1]} : vector<2x60xf32> to vector<2x1xf32>
    %92 = vector.extract_strided_slice %6 {offsets = [0, 21], sizes = [2, 1], strides = [1, 1]} : vector<2x60xf32> to vector<2x1xf32>
    %93 = vector.extract_strided_slice %6 {offsets = [0, 22], sizes = [2, 1], strides = [1, 1]} : vector<2x60xf32> to vector<2x1xf32>
    %94 = vector.extract_strided_slice %6 {offsets = [0, 23], sizes = [2, 1], strides = [1, 1]} : vector<2x60xf32> to vector<2x1xf32>
    %95 = vector.broadcast %91 : vector<2x1xf32> to vector<2x512xf32>
    %96 = arith.mulf %95, %3 : vector<2x512xf32>
    %97 = vector.broadcast %92 : vector<2x1xf32> to vector<2x512xf32>
    %98 = arith.mulf %97, %4 : vector<2x512xf32>
    %99 = arith.addf %96, %98 : vector<2x512xf32>
    %100 = vector.broadcast %93 : vector<2x1xf32> to vector<2x512xf32>
    %101 = arith.mulf %100, %5 : vector<2x512xf32>
    %102 = arith.addf %99, %101 : vector<2x512xf32>
    %103 = vector.broadcast %94 : vector<2x1xf32> to vector<2x512xf32>
    %104 = arith.addf %102, %103 : vector<2x512xf32>
    %105 = vector.broadcast %56 : vector<1x512xf32> to vector<2x512xf32>
    %106 = arith.mulf %105, %104 : vector<2x512xf32>
    %107 = arith.addf %55, %106 : vector<2x512xf32>
    %c2 = arith.constant 2 : index
    %c0_8 = arith.constant 0 : index
    %108 = vector.load %arg2[%c2, %c0_8] : memref<5x512xf32, #tpu.memory_space<vmem>>, vector<1x512xf32>
    %109 = vector.extract_strided_slice %6 {offsets = [0, 24], sizes = [2, 1], strides = [1, 1]} : vector<2x60xf32> to vector<2x1xf32>
    %110 = vector.extract_strided_slice %6 {offsets = [0, 25], sizes = [2, 1], strides = [1, 1]} : vector<2x60xf32> to vector<2x1xf32>
    %111 = vector.extract_strided_slice %6 {offsets = [0, 26], sizes = [2, 1], strides = [1, 1]} : vector<2x60xf32> to vector<2x1xf32>
    %112 = vector.extract_strided_slice %6 {offsets = [0, 27], sizes = [2, 1], strides = [1, 1]} : vector<2x60xf32> to vector<2x1xf32>
    %113 = vector.broadcast %109 : vector<2x1xf32> to vector<2x512xf32>
    %114 = arith.mulf %113, %3 : vector<2x512xf32>
    %115 = vector.broadcast %110 : vector<2x1xf32> to vector<2x512xf32>
    %116 = arith.mulf %115, %4 : vector<2x512xf32>
    %117 = arith.addf %114, %116 : vector<2x512xf32>
    %118 = vector.broadcast %111 : vector<2x1xf32> to vector<2x512xf32>
    %119 = arith.mulf %118, %5 : vector<2x512xf32>
    %120 = arith.addf %117, %119 : vector<2x512xf32>
    %121 = vector.broadcast %112 : vector<2x1xf32> to vector<2x512xf32>
    %122 = arith.addf %120, %121 : vector<2x512xf32>
    %123 = vector.broadcast %108 : vector<1x512xf32> to vector<2x512xf32>
    %124 = arith.mulf %123, %122 : vector<2x512xf32>
    %125 = arith.addf %73, %124 : vector<2x512xf32>
    %126 = vector.extract_strided_slice %6 {offsets = [0, 28], sizes = [2, 1], strides = [1, 1]} : vector<2x60xf32> to vector<2x1xf32>
    %127 = vector.extract_strided_slice %6 {offsets = [0, 29], sizes = [2, 1], strides = [1, 1]} : vector<2x60xf32> to vector<2x1xf32>
    %128 = vector.extract_strided_slice %6 {offsets = [0, 30], sizes = [2, 1], strides = [1, 1]} : vector<2x60xf32> to vector<2x1xf32>
    %129 = vector.extract_strided_slice %6 {offsets = [0, 31], sizes = [2, 1], strides = [1, 1]} : vector<2x60xf32> to vector<2x1xf32>
    %130 = vector.broadcast %126 : vector<2x1xf32> to vector<2x512xf32>
    %131 = arith.mulf %130, %3 : vector<2x512xf32>
    %132 = vector.broadcast %127 : vector<2x1xf32> to vector<2x512xf32>
    %133 = arith.mulf %132, %4 : vector<2x512xf32>
    %134 = arith.addf %131, %133 : vector<2x512xf32>
    %135 = vector.broadcast %128 : vector<2x1xf32> to vector<2x512xf32>
    %136 = arith.mulf %135, %5 : vector<2x512xf32>
    %137 = arith.addf %134, %136 : vector<2x512xf32>
    %138 = vector.broadcast %129 : vector<2x1xf32> to vector<2x512xf32>
    %139 = arith.addf %137, %138 : vector<2x512xf32>
    %140 = vector.broadcast %108 : vector<1x512xf32> to vector<2x512xf32>
    %141 = arith.mulf %140, %139 : vector<2x512xf32>
    %142 = arith.addf %90, %141 : vector<2x512xf32>
    %143 = vector.extract_strided_slice %6 {offsets = [0, 32], sizes = [2, 1], strides = [1, 1]} : vector<2x60xf32> to vector<2x1xf32>
    %144 = vector.extract_strided_slice %6 {offsets = [0, 33], sizes = [2, 1], strides = [1, 1]} : vector<2x60xf32> to vector<2x1xf32>
    %145 = vector.extract_strided_slice %6 {offsets = [0, 34], sizes = [2, 1], strides = [1, 1]} : vector<2x60xf32> to vector<2x1xf32>
    %146 = vector.extract_strided_slice %6 {offsets = [0, 35], sizes = [2, 1], strides = [1, 1]} : vector<2x60xf32> to vector<2x1xf32>
    %147 = vector.broadcast %143 : vector<2x1xf32> to vector<2x512xf32>
    %148 = arith.mulf %147, %3 : vector<2x512xf32>
    %149 = vector.broadcast %144 : vector<2x1xf32> to vector<2x512xf32>
    %150 = arith.mulf %149, %4 : vector<2x512xf32>
    %151 = arith.addf %148, %150 : vector<2x512xf32>
    %152 = vector.broadcast %145 : vector<2x1xf32> to vector<2x512xf32>
    %153 = arith.mulf %152, %5 : vector<2x512xf32>
    %154 = arith.addf %151, %153 : vector<2x512xf32>
    %155 = vector.broadcast %146 : vector<2x1xf32> to vector<2x512xf32>
    %156 = arith.addf %154, %155 : vector<2x512xf32>
    %157 = vector.broadcast %108 : vector<1x512xf32> to vector<2x512xf32>
    %158 = arith.mulf %157, %156 : vector<2x512xf32>
    %159 = arith.addf %107, %158 : vector<2x512xf32>
    %c3 = arith.constant 3 : index
    %c0_9 = arith.constant 0 : index
    %160 = vector.load %arg2[%c3, %c0_9] : memref<5x512xf32, #tpu.memory_space<vmem>>, vector<1x512xf32>
    %161 = vector.extract_strided_slice %6 {offsets = [0, 36], sizes = [2, 1], strides = [1, 1]} : vector<2x60xf32> to vector<2x1xf32>
    %162 = vector.extract_strided_slice %6 {offsets = [0, 37], sizes = [2, 1], strides = [1, 1]} : vector<2x60xf32> to vector<2x1xf32>
    %163 = vector.extract_strided_slice %6 {offsets = [0, 38], sizes = [2, 1], strides = [1, 1]} : vector<2x60xf32> to vector<2x1xf32>
    %164 = vector.extract_strided_slice %6 {offsets = [0, 39], sizes = [2, 1], strides = [1, 1]} : vector<2x60xf32> to vector<2x1xf32>
    %165 = vector.broadcast %161 : vector<2x1xf32> to vector<2x512xf32>
    %166 = arith.mulf %165, %3 : vector<2x512xf32>
    %167 = vector.broadcast %162 : vector<2x1xf32> to vector<2x512xf32>
    %168 = arith.mulf %167, %4 : vector<2x512xf32>
    %169 = arith.addf %166, %168 : vector<2x512xf32>
    %170 = vector.broadcast %163 : vector<2x1xf32> to vector<2x512xf32>
    %171 = arith.mulf %170, %5 : vector<2x512xf32>
    %172 = arith.addf %169, %171 : vector<2x512xf32>
    %173 = vector.broadcast %164 : vector<2x1xf32> to vector<2x512xf32>
    %174 = arith.addf %172, %173 : vector<2x512xf32>
    %175 = vector.broadcast %160 : vector<1x512xf32> to vector<2x512xf32>
    %176 = arith.mulf %175, %174 : vector<2x512xf32>
    %177 = arith.addf %125, %176 : vector<2x512xf32>
    %178 = vector.extract_strided_slice %6 {offsets = [0, 40], sizes = [2, 1], strides = [1, 1]} : vector<2x60xf32> to vector<2x1xf32>
    %179 = vector.extract_strided_slice %6 {offsets = [0, 41], sizes = [2, 1], strides = [1, 1]} : vector<2x60xf32> to vector<2x1xf32>
    %180 = vector.extract_strided_slice %6 {offsets = [0, 42], sizes = [2, 1], strides = [1, 1]} : vector<2x60xf32> to vector<2x1xf32>
    %181 = vector.extract_strided_slice %6 {offsets = [0, 43], sizes = [2, 1], strides = [1, 1]} : vector<2x60xf32> to vector<2x1xf32>
    %182 = vector.broadcast %178 : vector<2x1xf32> to vector<2x512xf32>
    %183 = arith.mulf %182, %3 : vector<2x512xf32>
    %184 = vector.broadcast %179 : vector<2x1xf32> to vector<2x512xf32>
    %185 = arith.mulf %184, %4 : vector<2x512xf32>
    %186 = arith.addf %183, %185 : vector<2x512xf32>
    %187 = vector.broadcast %180 : vector<2x1xf32> to vector<2x512xf32>
    %188 = arith.mulf %187, %5 : vector<2x512xf32>
    %189 = arith.addf %186, %188 : vector<2x512xf32>
    %190 = vector.broadcast %181 : vector<2x1xf32> to vector<2x512xf32>
    %191 = arith.addf %189, %190 : vector<2x512xf32>
    %192 = vector.broadcast %160 : vector<1x512xf32> to vector<2x512xf32>
    %193 = arith.mulf %192, %191 : vector<2x512xf32>
    %194 = arith.addf %142, %193 : vector<2x512xf32>
    %195 = vector.extract_strided_slice %6 {offsets = [0, 44], sizes = [2, 1], strides = [1, 1]} : vector<2x60xf32> to vector<2x1xf32>
    %196 = vector.extract_strided_slice %6 {offsets = [0, 45], sizes = [2, 1], strides = [1, 1]} : vector<2x60xf32> to vector<2x1xf32>
    %197 = vector.extract_strided_slice %6 {offsets = [0, 46], sizes = [2, 1], strides = [1, 1]} : vector<2x60xf32> to vector<2x1xf32>
    %198 = vector.extract_strided_slice %6 {offsets = [0, 47], sizes = [2, 1], strides = [1, 1]} : vector<2x60xf32> to vector<2x1xf32>
    %199 = vector.broadcast %195 : vector<2x1xf32> to vector<2x512xf32>
    %200 = arith.mulf %199, %3 : vector<2x512xf32>
    %201 = vector.broadcast %196 : vector<2x1xf32> to vector<2x512xf32>
    %202 = arith.mulf %201, %4 : vector<2x512xf32>
    %203 = arith.addf %200, %202 : vector<2x512xf32>
    %204 = vector.broadcast %197 : vector<2x1xf32> to vector<2x512xf32>
    %205 = arith.mulf %204, %5 : vector<2x512xf32>
    %206 = arith.addf %203, %205 : vector<2x512xf32>
    %207 = vector.broadcast %198 : vector<2x1xf32> to vector<2x512xf32>
    %208 = arith.addf %206, %207 : vector<2x512xf32>
    %209 = vector.broadcast %160 : vector<1x512xf32> to vector<2x512xf32>
    %210 = arith.mulf %209, %208 : vector<2x512xf32>
    %211 = arith.addf %159, %210 : vector<2x512xf32>
    %c4 = arith.constant 4 : index
    %c0_10 = arith.constant 0 : index
    %212 = vector.load %arg2[%c4, %c0_10] : memref<5x512xf32, #tpu.memory_space<vmem>>, vector<1x512xf32>
    %213 = vector.extract_strided_slice %6 {offsets = [0, 48], sizes = [2, 1], strides = [1, 1]} : vector<2x60xf32> to vector<2x1xf32>
    %214 = vector.extract_strided_slice %6 {offsets = [0, 49], sizes = [2, 1], strides = [1, 1]} : vector<2x60xf32> to vector<2x1xf32>
    %215 = vector.extract_strided_slice %6 {offsets = [0, 50], sizes = [2, 1], strides = [1, 1]} : vector<2x60xf32> to vector<2x1xf32>
    %216 = vector.extract_strided_slice %6 {offsets = [0, 51], sizes = [2, 1], strides = [1, 1]} : vector<2x60xf32> to vector<2x1xf32>
    %217 = vector.broadcast %213 : vector<2x1xf32> to vector<2x512xf32>
    %218 = arith.mulf %217, %3 : vector<2x512xf32>
    %219 = vector.broadcast %214 : vector<2x1xf32> to vector<2x512xf32>
    %220 = arith.mulf %219, %4 : vector<2x512xf32>
    %221 = arith.addf %218, %220 : vector<2x512xf32>
    %222 = vector.broadcast %215 : vector<2x1xf32> to vector<2x512xf32>
    %223 = arith.mulf %222, %5 : vector<2x512xf32>
    %224 = arith.addf %221, %223 : vector<2x512xf32>
    %225 = vector.broadcast %216 : vector<2x1xf32> to vector<2x512xf32>
    %226 = arith.addf %224, %225 : vector<2x512xf32>
    %227 = vector.broadcast %212 : vector<1x512xf32> to vector<2x512xf32>
    %228 = arith.mulf %227, %226 : vector<2x512xf32>
    %229 = arith.addf %177, %228 : vector<2x512xf32>
    %230 = vector.extract_strided_slice %6 {offsets = [0, 52], sizes = [2, 1], strides = [1, 1]} : vector<2x60xf32> to vector<2x1xf32>
    %231 = vector.extract_strided_slice %6 {offsets = [0, 53], sizes = [2, 1], strides = [1, 1]} : vector<2x60xf32> to vector<2x1xf32>
    %232 = vector.extract_strided_slice %6 {offsets = [0, 54], sizes = [2, 1], strides = [1, 1]} : vector<2x60xf32> to vector<2x1xf32>
    %233 = vector.extract_strided_slice %6 {offsets = [0, 55], sizes = [2, 1], strides = [1, 1]} : vector<2x60xf32> to vector<2x1xf32>
    %234 = vector.broadcast %230 : vector<2x1xf32> to vector<2x512xf32>
    %235 = arith.mulf %234, %3 : vector<2x512xf32>
    %236 = vector.broadcast %231 : vector<2x1xf32> to vector<2x512xf32>
    %237 = arith.mulf %236, %4 : vector<2x512xf32>
    %238 = arith.addf %235, %237 : vector<2x512xf32>
    %239 = vector.broadcast %232 : vector<2x1xf32> to vector<2x512xf32>
    %240 = arith.mulf %239, %5 : vector<2x512xf32>
    %241 = arith.addf %238, %240 : vector<2x512xf32>
    %242 = vector.broadcast %233 : vector<2x1xf32> to vector<2x512xf32>
    %243 = arith.addf %241, %242 : vector<2x512xf32>
    %244 = vector.broadcast %212 : vector<1x512xf32> to vector<2x512xf32>
    %245 = arith.mulf %244, %243 : vector<2x512xf32>
    %246 = arith.addf %194, %245 : vector<2x512xf32>
    %247 = vector.extract_strided_slice %6 {offsets = [0, 56], sizes = [2, 1], strides = [1, 1]} : vector<2x60xf32> to vector<2x1xf32>
    %248 = vector.extract_strided_slice %6 {offsets = [0, 57], sizes = [2, 1], strides = [1, 1]} : vector<2x60xf32> to vector<2x1xf32>
    %249 = vector.extract_strided_slice %6 {offsets = [0, 58], sizes = [2, 1], strides = [1, 1]} : vector<2x60xf32> to vector<2x1xf32>
    %250 = vector.extract_strided_slice %6 {offsets = [0, 59], sizes = [2, 1], strides = [1, 1]} : vector<2x60xf32> to vector<2x1xf32>
    %251 = vector.broadcast %247 : vector<2x1xf32> to vector<2x512xf32>
    %252 = arith.mulf %251, %3 : vector<2x512xf32>
    %253 = vector.broadcast %248 : vector<2x1xf32> to vector<2x512xf32>
    %254 = arith.mulf %253, %4 : vector<2x512xf32>
    %255 = arith.addf %252, %254 : vector<2x512xf32>
    %256 = vector.broadcast %249 : vector<2x1xf32> to vector<2x512xf32>
    %257 = arith.mulf %256, %5 : vector<2x512xf32>
    %258 = arith.addf %255, %257 : vector<2x512xf32>
    %259 = vector.broadcast %250 : vector<2x1xf32> to vector<2x512xf32>
    %260 = arith.addf %258, %259 : vector<2x512xf32>
    %261 = vector.broadcast %212 : vector<1x512xf32> to vector<2x512xf32>
    %262 = arith.mulf %261, %260 : vector<2x512xf32>
    %263 = arith.addf %211, %262 : vector<2x512xf32>
    %c0_11 = arith.constant 0 : index
    %c0_12 = arith.constant 0 : index
    %c0_13 = arith.constant 0 : index
    %264 = vector.load %arg4[%c0_11, %c0_12, %c0_13] : memref<3x2x512xf32, #tpu.memory_space<vmem>>, vector<1x2x512xf32>
    %265 = vector.shape_cast %264 : vector<1x2x512xf32> to vector<2x512xf32>
    %266 = vector.shape_cast %229 : vector<2x512xf32> to vector<1x2x512xf32>
    tpu.vector_store %arg4[%c0_11, %c0_12, %c0_13], %266 {strides = array<i32>} : memref<3x2x512xf32, #tpu.memory_space<vmem>>, vector<1x2x512xf32>,
    %c1_14 = arith.constant 1 : index
    %c0_15 = arith.constant 0 : index
    %c0_16 = arith.constant 0 : index
    %267 = vector.load %arg4[%c1_14, %c0_15, %c0_16] : memref<3x2x512xf32, #tpu.memory_space<vmem>>, vector<1x2x512xf32>
    %268 = vector.shape_cast %267 : vector<1x2x512xf32> to vector<2x512xf32>
    %269 = vector.shape_cast %246 : vector<2x512xf32> to vector<1x2x512xf32>
    tpu.vector_store %arg4[%c1_14, %c0_15, %c0_16], %269 {strides = array<i32>} : memref<3x2x512xf32, #tpu.memory_space<vmem>>, vector<1x2x512xf32>,
    %c2_17 = arith.constant 2 : index
    %c0_18 = arith.constant 0 : index
    %c0_19 = arith.constant 0 : index
    %270 = vector.load %arg4[%c2_17, %c0_18, %c0_19] : memref<3x2x512xf32, #tpu.memory_space<vmem>>, vector<1x2x512xf32>
    %271 = vector.shape_cast %270 : vector<1x2x512xf32> to vector<2x512xf32>
    %272 = vector.shape_cast %263 : vector<2x512xf32> to vector<1x2x512xf32>
    tpu.vector_store %arg4[%c2_17, %c0_18, %c0_19], %272 {strides = array<i32>} : memref<3x2x512xf32, #tpu.memory_space<vmem>>, vector<1x2x512xf32>,
    return
  }
}

</mosaic_0001>

<llo_original>
// kernel: forward.1
$region0: #{forward.1}
  #allocation0 [shape = 'u32[]', space=smem, size = 0x4, offset = 0x4, fixed_abs, tag = 'smem constant byte address 0x4 - core index']
  #allocation1 [shape = 'u32[144,128]{1,0:T(1,128)}', space=vmem, size = 0x12000, scoped, tag = 'internal scratch']
  %s0 = inlined_call_operand.vmem [shape: f32[2,53], index: 0, kind: input, shape index: {}]
  %s1 = inlined_call_operand.vmem [shape: f32[53,1536], index: 1, kind: input, shape index: {}]
  %s2 = inlined_call_operand.vmem [shape: f32[5,512], index: 2, kind: input, shape index: {}]
  %s3 = inlined_call_operand.vmem [shape: f32[2,60], index: 3, kind: input, shape index: {}]
  %s4 = inlined_call_operand.hbm [shape: f32[3,2,512], index: 4, kind: output, shape index: {}]
  %s5 = sld [smem:[#allocation0]]
  $region26: #{forward.1} parent=0
    _
  %s7 = ssub.s32 1, %s5
  %s8 = scalar_select 0, %s7, %s5
  $region1: #{forward.1} parent=0
    #allocation2 [shape = 'u8[12288]{0}', space=vmem, size = 0x3000, scoped, tag = 'output window, operand 0, single buffered']
    #allocation3 [shape = 's32[1]{0}', space=sflag, size = 0x4, scoped, tag = 'scoped memory for forward.1']
    %9 = vsyncpa [#allocation3], 0
    // Predicated region
    $region2: #{forward.1} parent=1 // pred_check
      _
    $region3: #{forward.1} parent=1 // pred_check_branch
      %11 = sbr.rel (0) target = $region5
    $region4: #{forward.1} parent=1 // pred_region
      _
    $region5: #{forward.1} parent=1 // pred_fallthru
      _
    // Predicated region
    $region6: #{forward.1} parent=1 // pred_check
      _
    $region7: #{forward.1} parent=1 // pred_check_branch
      %13 = sbr.rel (0) target = $region9
    $region8: #{forward.1} parent=1 // pred_region
      _
    $region9: #{forward.1} parent=1 // pred_fallthru
      _
    // Predicated region
    $region10: #{forward.1} parent=1 // pred_check
      _
    $region11: #{forward.1} parent=1 // pred_check_branch
      %15 = sbr.rel (0) target = $region13
    $region12: #{forward.1} parent=1 // pred_region
      _
    $region13: #{forward.1} parent=1 // pred_fallthru
      _
    // Predicated region
    $region14: #{forward.1} parent=1 // pred_check
      _
    $region15: #{forward.1} parent=1 // pred_check_branch
      %17 = sbr.rel (0) target = $region17
    $region16: #{forward.1} parent=1 // pred_region
      _
    $region17: #{forward.1} parent=1 // pred_fallthru
      _
    %v18 = vld [vmem:[%s0] sm:$0x3]
    %v19 = vld [vmem:[%s1] sm:$0xff]
    %v20 = vld [vmem:[%s1 + $0x8] sm:$0xff]
    %v21 = vld [vmem:[%s1 + $0x10] sm:$0xff]
    %v22 = vld [vmem:[%s1 + $0x18] sm:$0xff]
    %v23 = vld [vmem:[%s1 + $0x20] sm:$0xff]
    %v24 = vld [vmem:[%s1 + $0x28] sm:$0xff]
    %v25 = vld [vmem:[%s1 + $0x30] sm:$0xff]
    %v26 = vld [vmem:[%s1 + $0x38] sm:$0xff]
    %v27 = vld [vmem:[%s1 + $0x40] sm:$0xff]
    %v28 = vld [vmem:[%s1 + $0x48] sm:$0xff]
    %v29 = vld [vmem:[%s1 + $0x50] sm:$0xff]
    %v30 = vld [vmem:[%s1 + $0x58] sm:$0xff]
    %v31 = vld [vmem:[%s1 + $0x60] sm:$0xff]
    %v32 = vld [vmem:[%s1 + $0x68] sm:$0xff]
    %v33 = vld [vmem:[%s1 + $0x70] sm:$0xff]
    %v34 = vld [vmem:[%s1 + $0x78] sm:$0xff]
    %v35 = vld [vmem:[%s1 + $0x80] sm:$0xff]
    %v36 = vld [vmem:[%s1 + $0x88] sm:$0xff]
    %v37 = vld [vmem:[%s1 + $0x90] sm:$0xff]
    %v38 = vld [vmem:[%s1 + $0x98] sm:$0xff]
    %v39 = vld [vmem:[%s1 + $0xa0] sm:$0xff]
    %v40 = vld [vmem:[%s1 + $0xa8] sm:$0xff]
    %v41 = vld [vmem:[%s1 + $0xb0] sm:$0xff]
    %v42 = vld [vmem:[%s1 + $0xb8] sm:$0xff]
    %v43 = vld [vmem:[%s1 + $0xc0] sm:$0xff]
    %v44 = vld [vmem:[%s1 + $0xc8] sm:$0xff]
    %v45 = vld [vmem:[%s1 + $0xd0] sm:$0xff]
    %v46 = vld [vmem:[%s1 + $0xd8] sm:$0xff]
    %v47 = vld [vmem:[%s1 + $0xe0] sm:$0xff]
    %v48 = vld [vmem:[%s1 + $0xe8] sm:$0xff]
    %v49 = vld [vmem:[%s1 + $0xf0] sm:$0xff]
    %v50 = vld [vmem:[%s1 + $0xf8] sm:$0xff]
    %v51 = vld [vmem:[%s1 + $0x100] sm:$0xff]
    %v52 = vld [vmem:[%s1 + $0x108] sm:$0xff]
    %v53 = vld [vmem:[%s1 + $0x110] sm:$0xff]
    %v54 = vld [vmem:[%s1 + $0x118] sm:$0xff]
    %v55 = vld [vmem:[%s1 + $0x120] sm:$0xff]
    %v56 = vld [vmem:[%s1 + $0x128] sm:$0xff]
    %v57 = vld [vmem:[%s1 + $0x130] sm:$0xff]
    %v58 = vld [vmem:[%s1 + $0x138] sm:$0xff]
    %v59 = vld [vmem:[%s1 + $0x140] sm:$0xff]
    %v60 = vld [vmem:[%s1 + $0x148] sm:$0xff]
    %v61 = vld [vmem:[%s1 + $0x150] sm:$0xff]
    %v62 = vld [vmem:[%s1 + $0x158] sm:$0xff]
    %v63 = vld [vmem:[%s1 + $0x160] sm:$0xff]
    %v64 = vld [vmem:[%s1 + $0x168] sm:$0xff]
    %v65 = vld [vmem:[%s1 + $0x170] sm:$0xff]
    %v66 = vld [vmem:[%s1 + $0x178] sm:$0xff]
    %v67 = vld [vmem:[%s1 + $0x180] sm:$0xff]
    %v68 = vld [vmem:[%s1 + $0x188] sm:$0xff]
    %v69 = vld [vmem:[%s1 + $0x190] sm:$0xff]
    %v70 = vld [vmem:[%s1 + $0x198] sm:$0xff]
    %v71 = vld [vmem:[%s1 + $0x1a0] sm:$0xff]
    %v72 = vld [vmem:[%s1 + $0x1a8] sm:$0xff]
    %v73 = vld [vmem:[%s1 + $0x1b0] sm:$0xff]
    %v74 = vld [vmem:[%s1 + $0x1b8] sm:$0xff]
    %v75 = vld [vmem:[%s1 + $0x1c0] sm:$0xff]
    %v76 = vld [vmem:[%s1 + $0x1c8] sm:$0xff]
    %v77 = vld [vmem:[%s1 + $0x1d0] sm:$0xff]
    %v78 = vld [vmem:[%s1 + $0x1d8] sm:$0xff]
    %v79 = vld [vmem:[%s1 + $0x1e0] sm:$0xff]
    %v80 = vld [vmem:[%s1 + $0x1e8] sm:$0xff]
    %v81 = vld [vmem:[%s1 + $0x1f0] sm:$0xff]
    %v82 = vld [vmem:[%s1 + $0x1f8] sm:$0xff]
    %v83 = vld [vmem:[%s1 + $0x200] sm:$0xff]
    %v84 = vld [vmem:[%s1 + $0x208] sm:$0xff]
    %v85 = vld [vmem:[%s1 + $0x210] sm:$0xff]
    %v86 = vld [vmem:[%s1 + $0x218] sm:$0xff]
    %v87 = vld [vmem:[%s1 + $0x220] sm:$0xff]
    %v88 = vld [vmem:[%s1 + $0x228] sm:$0xff]
    %v89 = vld [vmem:[%s1 + $0x230] sm:$0xff]
    %v90 = vld [vmem:[%s1 + $0x238] sm:$0xff]
    %v91 = vld [vmem:[%s1 + $0x240] sm:$0x1f]
    %v92 = vld [vmem:[%s1 + $0x248] sm:$0x1f]
    %v93 = vld [vmem:[%s1 + $0x250] sm:$0x1f]
    %v94 = vld [vmem:[%s1 + $0x258] sm:$0x1f]
    %v95 = vld [vmem:[%s1 + $0x260] sm:$0x1f]
    %v96 = vld [vmem:[%s1 + $0x268] sm:$0x1f]
    %v97 = vld [vmem:[%s1 + $0x270] sm:$0x1f]
    %v98 = vld [vmem:[%s1 + $0x278] sm:$0x1f]
    %v99 = vld [vmem:[%s1 + $0x280] sm:$0x1f]
    %v100 = vld [vmem:[%s1 + $0x288] sm:$0x1f]
    %v101 = vld [vmem:[%s1 + $0x290] sm:$0x1f]
    %v102 = vld [vmem:[%s1 + $0x298] sm:$0x1f]
    %vm103 = vcmask 433152
    %v105 = vsel %vm103, %v18, 0
    %vm107 = vcmask 1044480
    %v109 = vsel %vm107, %v91, 0
    %v112 = vsel %vm107, %v92, 0
    %v115 = vsel %vm107, %v93, 0
    %v118 = vsel %vm107, %v94, 0
    %v121 = vsel %vm107, %v95, 0
    %v124 = vsel %vm107, %v96, 0
    %v127 = vsel %vm107, %v97, 0
    %v130 = vsel %vm107, %v98, 0
    %v133 = vsel %vm107, %v99, 0
    %v136 = vsel %vm107, %v100, 0
    %v139 = vsel %vm107, %v101, 0
    %v142 = vsel %vm107, %v102, 0
    %144 = vmatprep.subr.mxu0 0.0
    %145 = vmatpush1.msra.mxu0 0.0
    %146 = vmatprep.subr.mxu0 0.0
    %147 = vmatpush1.msra.mxu0 0.0
    %148 = vmatprep.subr.mxu0 0.0
    %149 = vmatpush1.msra.mxu0 0.0
    %150 = vmatprep.subr.mxu0 0.0
    %151 = vmatpush1.msra.mxu0 0.0
    %152 = vmatprep.subr.mxu0 0.0
    %153 = vmatpush1.msra.mxu0 0.0
    %154 = vmatprep.subr.mxu0 0.0
    %155 = vmatpush1.msra.mxu0 0.0
    %156 = vmatprep.subr.mxu0 0.0
    %157 = vmatpush1.msra.mxu0 0.0
    %158 = vmatprep.subr.mxu0 0.0
    %159 = vmatpush1.msra.mxu0 0.0
    %160 = vmatprep.subr.mxu0 0.0
    %161 = vmatpush1.msra.mxu0 0.0
    %v162 = vand.u32 %v112, 4294901760
    %163 = vmatprep.subr.mxu0 %v162
    %v164 = vand.u32 %v109, 4294901760
    %165 = vmatpush1.msra.mxu0 %v164
    %v166 = vand.u32 %v80, 4294901760
    %167 = vmatprep.subr.mxu0 %v166
    %v168 = vand.u32 %v79, 4294901760
    %169 = vmatpush1.msra.mxu0 %v168
    %v170 = vand.u32 %v68, 4294901760
    %171 = vmatprep.subr.mxu0 %v170
    %v172 = vand.u32 %v67, 4294901760
    %173 = vmatpush1.msra.mxu0 %v172
    %v174 = vand.u32 %v56, 4294901760
    %175 = vmatprep.subr.mxu0 %v174
    %v176 = vand.u32 %v55, 4294901760
    %177 = vmatpush1.msra.mxu0 %v176
    %v178 = vand.u32 %v44, 4294901760
    %179 = vmatprep.subr.mxu0 %v178
    %v180 = vand.u32 %v43, 4294901760
    %181 = vmatpush1.msra.mxu0 %v180
    %v182 = vand.u32 %v32, 4294901760
    %183 = vmatprep.subr.mxu0 %v182
    %v184 = vand.u32 %v31, 4294901760
    %185 = vmatpush1.msra.mxu0 %v184
    %v186 = vand.u32 %v20, 4294901760
    %187 = vmatprep.subr.mxu0 %v186
    %v188 = vand.u32 %v19, 4294901760
    %189 = vmatpush1.msra.mxu0 %v188
    %190 = vmatprep.subr.mxu0 0.0
    %191 = vmatpush2.msra.mxu0 0.0
    %192 = vmatprep.subr.mxu0 0.0
    %193 = vmatpush2.msra.mxu0 0.0
    %194 = vmatprep.subr.mxu0 0.0
    %195 = vmatpush2.msra.mxu0 0.0
    %196 = vmatprep.subr.mxu0 0.0
    %197 = vmatpush2.msra.mxu0 0.0
    %198 = vmatprep.subr.mxu0 0.0
    %199 = vmatpush2.msra.mxu0 0.0
    %200 = vmatprep.subr.mxu0 0.0
    %201 = vmatpush2.msra.mxu0 0.0
    %202 = vmatprep.subr.mxu0 0.0
    %203 = vmatpush2.msra.mxu0 0.0
    %204 = vmatprep.subr.mxu0 0.0
    %205 = vmatpush2.msra.mxu0 0.0
    %206 = vmatprep.subr.mxu0 0.0
    %207 = vmatpush2.msra.mxu0 0.0
    %208 = vmatprep.subr.mxu0 0.0
    %209 = vmatpush2.msra.mxu0 0.0
    %210 = vmatprep.subr.mxu0 0.0
    %211 = vmatpush2.msra.mxu0 0.0
    %212 = vmatprep.subr.mxu0 0.0
    %213 = vmatpush2.msra.mxu0 0.0
    %214 = vmatprep.subr.mxu0 0.0
    %215 = vmatpush2.msra.mxu0 0.0
    %216 = vmatprep.subr.mxu0 0.0
    %217 = vmatpush2.msra.mxu0 0.0
    %218 = vmatprep.subr.mxu0 0.0
    %219 = vmatpush2.msra.mxu0 0.0
    %220 = vmatprep.subr.mxu0 0.0
    %221 = vmatpush2.msra.mxu0 0.0
    %222 = vmatprep.mubr.f32.mxu0 0.0
    %v223 = vand.u32 %v105, 4294901760
    %v224 = vsub.f32 %v105, %v223
    %v225 = vand.u32 %v224, 4294901760
    %v226 = vsub.f32 %v224, %v225
    %v227 = vand.u32 %v226, 4294901760
    %228 = vmatmul.mubr.f32.gmra.mxu0 %v227
    %v229 = vpop.f32.mrf.mxu0
    %v230 = vadd.f32 0.0, %v229
    %v231 = vpop.f32.mrf.mxu0
    %v232 = vadd.f32 0.0, %v231
    %233 = vdwg.mxu0
    %234 = vmatprep.subr.mxu0 0.0
    %235 = vmatpush1.msra.mxu0 0.0
    %236 = vmatprep.subr.mxu0 0.0
    %237 = vmatpush1.msra.mxu0 0.0
    %238 = vmatprep.subr.mxu0 0.0
    %239 = vmatpush1.msra.mxu0 0.0
    %240 = vmatprep.subr.mxu0 0.0
    %241 = vmatpush1.msra.mxu0 0.0
    %242 = vmatprep.subr.mxu0 0.0
    %243 = vmatpush1.msra.mxu0 0.0
    %244 = vmatprep.subr.mxu0 0.0
    %245 = vmatpush1.msra.mxu0 0.0
    %246 = vmatprep.subr.mxu0 0.0
    %247 = vmatpush1.msra.mxu0 0.0
    %248 = vmatprep.subr.mxu0 0.0
    %249 = vmatpush1.msra.mxu0 0.0
    %250 = vmatprep.subr.mxu0 0.0
    %251 = vmatpush1.msra.mxu0 0.0
    %v252 = vand.u32 %v112, 4294901760
    %v253 = vsub.f32 %v112, %v252
    %v254 = vand.u32 %v253, 4294901760
    %v255 = vsub.f32 %v253, %v254
    %v256 = vand.u32 %v255, 4294901760
    %257 = vmatprep.subr.mxu0 %v256
    %v258 = vand.u32 %v109, 4294901760
    %v259 = vsub.f32 %v109, %v258
    %v260 = vand.u32 %v259, 4294901760
    %v261 = vsub.f32 %v259, %v260
    %v262 = vand.u32 %v261, 4294901760
    %263 = vmatpush1.msra.mxu0 %v262
    %v264 = vand.u32 %v80, 4294901760
    %v265 = vsub.f32 %v80, %v264
    %v266 = vand.u32 %v265, 4294901760
    %v267 = vsub.f32 %v265, %v266
    %v268 = vand.u32 %v267, 4294901760
    %269 = vmatprep.subr.mxu0 %v268
    %v270 = vand.u32 %v79, 4294901760
    %v271 = vsub.f32 %v79, %v270
    %v272 = vand.u32 %v271, 4294901760
    %v273 = vsub.f32 %v271, %v272
    %v274 = vand.u32 %v273, 4294901760
    %275 = vmatpush1.msra.mxu0 %v274
    %v276 = vand.u32 %v68, 4294901760
    %v277 = vsub.f32 %v68, %v276
    %v278 = vand.u32 %v277, 4294901760
    %v279 = vsub.f32 %v277, %v278
    %v280 = vand.u32 %v279, 4294901760
    %281 = vmatprep.subr.mxu0 %v280
    %v282 = vand.u32 %v67, 4294901760
    %v283 = vsub.f32 %v67, %v282
    %v284 = vand.u32 %v283, 4294901760
    %v285 = vsub.f32 %v283, %v284
    %v286 = vand.u32 %v285, 4294901760
    %287 = vmatpush1.msra.mxu0 %v286
    %v288 = vand.u32 %v56, 4294901760
    %v289 = vsub.f32 %v56, %v288
    %v290 = vand.u32 %v289, 4294901760
    %v291 = vsub.f32 %v289, %v290
    %v292 = vand.u32 %v291, 4294901760
    %293 = vmatprep.subr.mxu0 %v292
    %v294 = vand.u32 %v55, 4294901760
    %v295 = vsub.f32 %v55, %v294
    %v296 = vand.u32 %v295, 4294901760
    %v297 = vsub.f32 %v295, %v296
    %v298 = vand.u32 %v297, 4294901760
    %299 = vmatpush1.msra.mxu0 %v298
    %v300 = vand.u32 %v44, 4294901760
    %v301 = vsub.f32 %v44, %v300
    %v302 = vand.u32 %v301, 4294901760
    %v303 = vsub.f32 %v301, %v302
    %v304 = vand.u32 %v303, 4294901760
    %305 = vmatprep.subr.mxu0 %v304
    %v306 = vand.u32 %v43, 4294901760
    %v307 = vsub.f32 %v43, %v306
    %v308 = vand.u32 %v307, 4294901760
    %v309 = vsub.f32 %v307, %v308
    %v310 = vand.u32 %v309, 4294901760
    %311 = vmatpush1.msra.mxu0 %v310
    %v312 = vand.u32 %v32, 4294901760
    %v313 = vsub.f32 %v32, %v312
    %v314 = vand.u32 %v313, 4294901760
    %v315 = vsub.f32 %v313, %v314
    %v316 = vand.u32 %v315, 4294901760
    %317 = vmatprep.subr.mxu0 %v316
    %v318 = vand.u32 %v31, 4294901760
    %v319 = vsub.f32 %v31, %v318
    %v320 = vand.u32 %v319, 4294901760
    %v321 = vsub.f32 %v319, %v320
    %v322 = vand.u32 %v321, 4294901760
    %323 = vmatpush1.msra.mxu0 %v322
    %v324 = vand.u32 %v20, 4294901760
    %v325 = vsub.f32 %v20, %v324
    %v326 = vand.u32 %v325, 4294901760
    %v327 = vsub.f32 %v325, %v326
    %v328 = vand.u32 %v327, 4294901760
    %329 = vmatprep.subr.mxu0 %v328
    %v330 = vand.u32 %v19, 4294901760
    %v331 = vsub.f32 %v19, %v330
    %v332 = vand.u32 %v331, 4294901760
    %v333 = vsub.f32 %v331, %v332
    %v334 = vand.u32 %v333, 4294901760
    %335 = vmatpush1.msra.mxu0 %v334
    %336 = vmatprep.subr.mxu0 0.0
    %337 = vmatpush2.msra.mxu0 0.0
    %338 = vmatprep.subr.mxu0 0.0
    %339 = vmatpush2.msra.mxu0 0.0
    %340 = vmatprep.subr.mxu0 0.0
    %341 = vmatpush2.msra.mxu0 0.0
    %342 = vmatprep.subr.mxu0 0.0
    %343 = vmatpush2.msra.mxu0 0.0
    %344 = vmatprep.subr.mxu0 0.0
    %345 = vmatpush2.msra.mxu0 0.0
    %346 = vmatprep.subr.mxu0 0.0
    %347 = vmatpush2.msra.mxu0 0.0
    %348 = vmatprep.subr.mxu0 0.0
    %349 = vmatpush2.msra.mxu0 0.0
    %350 = vmatprep.subr.mxu0 0.0
    %351 = vmatpush2.msra.mxu0 0.0
    %352 = vmatprep.subr.mxu0 0.0
    %353 = vmatpush2.msra.mxu0 0.0
    %354 = vmatprep.subr.mxu0 0.0
    %355 = vmatpush2.msra.mxu0 0.0
    %356 = vmatprep.subr.mxu0 0.0
    %357 = vmatpush2.msra.mxu0 0.0
    %358 = vmatprep.subr.mxu0 0.0
    %359 = vmatpush2.msra.mxu0 0.0
    %360 = vmatprep.subr.mxu0 0.0
    %361 = vmatpush2.msra.mxu0 0.0
    %362 = vmatprep.subr.mxu0 0.0
    %363 = vmatpush2.msra.mxu0 0.0
    %364 = vmatprep.subr.mxu0 0.0
    %365 = vmatpush2.msra.mxu0 0.0
    %366 = vmatprep.subr.mxu0 0.0
    %367 = vmatpush2.msra.mxu0 0.0
    %368 = vmatprep.mubr.f32.mxu0 0.0
    %v369 = vand.u32 %v105, 4294901760
    %370 = vmatmul.mubr.f32.gmra.mxu0 %v369
    %v371 = vpop.f32.mrf.mxu0
    %v372 = vadd.f32 %v230, %v371
    %v373 = vpop.f32.mrf.mxu0
    %v374 = vadd.f32 %v232, %v373
    %375 = vdwg.mxu0
    %376 = vmatprep.subr.mxu0 0.0
    %377 = vmatpush1.msra.mxu0 0.0
    %378 = vmatprep.subr.mxu0 0.0
    %379 = vmatpush1.msra.mxu0 0.0
    %380 = vmatprep.subr.mxu0 0.0
    %381 = vmatpush1.msra.mxu0 0.0
    %382 = vmatprep.subr.mxu0 0.0
    %383 = vmatpush1.msra.mxu0 0.0
    %384 = vmatprep.subr.mxu0 0.0
    %385 = vmatpush1.msra.mxu0 0.0
    %386 = vmatprep.subr.mxu0 0.0
    %387 = vmatpush1.msra.mxu0 0.0
    %388 = vmatprep.subr.mxu0 0.0
    %389 = vmatpush1.msra.mxu0 0.0
    %390 = vmatprep.subr.mxu0 0.0
    %391 = vmatpush1.msra.mxu0 0.0
    %392 = vmatprep.subr.mxu0 0.0
    %393 = vmatpush1.msra.mxu0 0.0
    %v394 = vand.u32 %v112, 4294901760
    %v395 = vsub.f32 %v112, %v394
    %396 = vmatprep.subr.mxu0 %v395
    %v397 = vand.u32 %v109, 4294901760
    %v398 = vsub.f32 %v109, %v397
    %399 = vmatpush1.msra.mxu0 %v398
    %v400 = vand.u32 %v80, 4294901760
    %v401 = vsub.f32 %v80, %v400
    %402 = vmatprep.subr.mxu0 %v401
    %v403 = vand.u32 %v79, 4294901760
    %v404 = vsub.f32 %v79, %v403
    %405 = vmatpush1.msra.mxu0 %v404
    %v406 = vand.u32 %v68, 4294901760
    %v407 = vsub.f32 %v68, %v406
    %408 = vmatprep.subr.mxu0 %v407
    %v409 = vand.u32 %v67, 4294901760
    %v410 = vsub.f32 %v67, %v409
    %411 = vmatpush1.msra.mxu0 %v410
    %v412 = vand.u32 %v56, 4294901760
    %v413 = vsub.f32 %v56, %v412
    %414 = vmatprep.subr.mxu0 %v413
    %v415 = vand.u32 %v55, 4294901760
    %v416 = vsub.f32 %v55, %v415
    %417 = vmatpush1.msra.mxu0 %v416
    %v418 = vand.u32 %v44, 4294901760
    %v419 = vsub.f32 %v44, %v418
    %420 = vmatprep.subr.mxu0 %v419
    %v421 = vand.u32 %v43, 4294901760
    %v422 = vsub.f32 %v43, %v421
    %423 = vmatpush1.msra.mxu0 %v422
    %v424 = vand.u32 %v32, 4294901760
    %v425 = vsub.f32 %v32, %v424
    %426 = vmatprep.subr.mxu0 %v425
    %v427 = vand.u32 %v31, 4294901760
    %v428 = vsub.f32 %v31, %v427
    %429 = vmatpush1.msra.mxu0 %v428
    %v430 = vand.u32 %v20, 4294901760
    %v431 = vsub.f32 %v20, %v430
    %432 = vmatprep.subr.mxu0 %v431
    %v433 = vand.u32 %v19, 4294901760
    %v434 = vsub.f32 %v19, %v433
    %435 = vmatpush1.msra.mxu0 %v434
    %436 = vmatprep.subr.mxu0 0.0
    %437 = vmatpush2.msra.mxu0 0.0
    %438 = vmatprep.subr.mxu0 0.0
    %439 = vmatpush2.msra.mxu0 0.0
    %440 = vmatprep.subr.mxu0 0.0
    %441 = vmatpush2.msra.mxu0 0.0
    %442 = vmatprep.subr.mxu0 0.0
    %443 = vmatpush2.msra.mxu0 0.0
    %444 = vmatprep.subr.mxu0 0.0
    %445 = vmatpush2.msra.mxu0 0.0
    %446 = vmatprep.subr.mxu0 0.0
    %447 = vmatpush2.msra.mxu0 0.0
    %448 = vmatprep.subr.mxu0 0.0
    %449 = vmatpush2.msra.mxu0 0.0
    %450 = vmatprep.subr.mxu0 0.0
    %451 = vmatpush2.msra.mxu0 0.0
    %452 = vmatprep.subr.mxu0 0.0
    %453 = vmatpush2.msra.mxu0 0.0
    %454 = vmatprep.subr.mxu0 0.0
    %455 = vmatpush2.msra.mxu0 0.0
    %456 = vmatprep.subr.mxu0 0.0
    %457 = vmatpush2.msra.mxu0 0.0
    %458 = vmatprep.subr.mxu0 0.0
    %459 = vmatpush2.msra.mxu0 0.0
    %460 = vmatprep.subr.mxu0 0.0
    %461 = vmatpush2.msra.mxu0 0.0
    %462 = vmatprep.subr.mxu0 0.0
    %463 = vmatpush2.msra.mxu0 0.0
    %464 = vmatprep.subr.mxu0 0.0
    %465 = vmatpush2.msra.mxu0 0.0
    %466 = vmatprep.subr.mxu0 0.0
    %467 = vmatpush2.msra.mxu0 0.0
    %468 = vmatprep.mubr.f32.mxu0 0.0
    %v469 = vand.u32 %v105, 4294901760
    %v470 = vsub.f32 %v105, %v469
    %471 = vmatmul.mubr.f32.gmra.mxu0 %v470
    %v472 = vpop.f32.mrf.mxu0
    %v473 = vadd.f32 %v372, %v472
    %v474 = vpop.f32.mrf.mxu0
    %v475 = vadd.f32 %v374, %v474
    %476 = vdwg.mxu0
    %477 = vmatprep.subr.mxu0 0.0
    %478 = vmatpush1.msra.mxu0 0.0
    %479 = vmatprep.subr.mxu0 0.0
    %480 = vmatpush1.msra.mxu0 0.0
    %481 = vmatprep.subr.mxu0 0.0
    %482 = vmatpush1.msra.mxu0 0.0
    %483 = vmatprep.subr.mxu0 0.0
    %484 = vmatpush1.msra.mxu0 0.0
    %485 = vmatprep.subr.mxu0 0.0
    %486 = vmatpush1.msra.mxu0 0.0
    %487 = vmatprep.subr.mxu0 0.0
    %488 = vmatpush1.msra.mxu0 0.0
    %489 = vmatprep.subr.mxu0 0.0
    %490 = vmatpush1.msra.mxu0 0.0
    %491 = vmatprep.subr.mxu0 0.0
    %492 = vmatpush1.msra.mxu0 0.0
    %493 = vmatprep.subr.mxu0 0.0
    %494 = vmatpush1.msra.mxu0 0.0
    %v495 = vand.u32 %v112, 4294901760
    %496 = vmatprep.subr.mxu0 %v495
    %v497 = vand.u32 %v109, 4294901760
    %498 = vmatpush1.msra.mxu0 %v497
    %v499 = vand.u32 %v80, 4294901760
    %500 = vmatprep.subr.mxu0 %v499
    %v501 = vand.u32 %v79, 4294901760
    %502 = vmatpush1.msra.mxu0 %v501
    %v503 = vand.u32 %v68, 4294901760
    %504 = vmatprep.subr.mxu0 %v503
    %v505 = vand.u32 %v67, 4294901760
    %506 = vmatpush1.msra.mxu0 %v505
    %v507 = vand.u32 %v56, 4294901760
    %508 = vmatprep.subr.mxu0 %v507
    %v509 = vand.u32 %v55, 4294901760
    %510 = vmatpush1.msra.mxu0 %v509
    %v511 = vand.u32 %v44, 4294901760
    %512 = vmatprep.subr.mxu0 %v511
    %v513 = vand.u32 %v43, 4294901760
    %514 = vmatpush1.msra.mxu0 %v513
    %v515 = vand.u32 %v32, 4294901760
    %516 = vmatprep.subr.mxu0 %v515
    %v517 = vand.u32 %v31, 4294901760
    %518 = vmatpush1.msra.mxu0 %v517
    %v519 = vand.u32 %v20, 4294901760
    %520 = vmatprep.subr.mxu0 %v519
    %v521 = vand.u32 %v19, 4294901760
    %522 = vmatpush1.msra.mxu0 %v521
    %523 = vmatprep.subr.mxu0 0.0
    %524 = vmatpush2.msra.mxu0 0.0
    %525 = vmatprep.subr.mxu0 0.0
    %526 = vmatpush2.msra.mxu0 0.0
    %527 = vmatprep.subr.mxu0 0.0
    %528 = vmatpush2.msra.mxu0 0.0
    %529 = vmatprep.subr.mxu0 0.0
    %530 = vmatpush2.msra.mxu0 0.0
    %531 = vmatprep.subr.mxu0 0.0
    %532 = vmatpush2.msra.mxu0 0.0
    %533 = vmatprep.subr.mxu0 0.0
    %534 = vmatpush2.msra.mxu0 0.0
    %535 = vmatprep.subr.mxu0 0.0
    %536 = vmatpush2.msra.mxu0 0.0
    %537 = vmatprep.subr.mxu0 0.0
    %538 = vmatpush2.msra.mxu0 0.0
    %539 = vmatprep.subr.mxu0 0.0
    %540 = vmatpush2.msra.mxu0 0.0
    %541 = vmatprep.subr.mxu0 0.0
    %542 = vmatpush2.msra.mxu0 0.0
    %543 = vmatprep.subr.mxu0 0.0
    %544 = vmatpush2.msra.mxu0 0.0
    %545 = vmatprep.subr.mxu0 0.0
    %546 = vmatpush2.msra.mxu0 0.0
    %547 = vmatprep.subr.mxu0 0.0
    %548 = vmatpush2.msra.mxu0 0.0
    %549 = vmatprep.subr.mxu0 0.0
    %550 = vmatpush2.msra.mxu0 0.0
    %551 = vmatprep.subr.mxu0 0.0
    %552 = vmatpush2.msra.mxu0 0.0
    %553 = vmatprep.subr.mxu0 0.0
    %554 = vmatpush2.msra.mxu0 0.0
    %555 = vmatprep.mubr.f32.mxu0 0.0
    %v556 = vand.u32 %v105, 4294901760
    %v557 = vsub.f32 %v105, %v556
    %v558 = vand.u32 %v557, 4294901760
    %559 = vmatmul.mubr.f32.gmra.mxu0 %v558
    %v560 = vpop.f32.mrf.mxu0
    %v561 = vadd.f32 %v473, %v560
    %v562 = vpop.f32.mrf.mxu0
    %v563 = vadd.f32 %v475, %v562
    %564 = vdwg.mxu0
    %565 = vmatprep.subr.mxu0 0.0
    %566 = vmatpush1.msra.mxu0 0.0
    %567 = vmatprep.subr.mxu0 0.0
    %568 = vmatpush1.msra.mxu0 0.0
    %569 = vmatprep.subr.mxu0 0.0
    %570 = vmatpush1.msra.mxu0 0.0
    %571 = vmatprep.subr.mxu0 0.0
    %572 = vmatpush1.msra.mxu0 0.0
    %573 = vmatprep.subr.mxu0 0.0
    %574 = vmatpush1.msra.mxu0 0.0
    %575 = vmatprep.subr.mxu0 0.0
    %576 = vmatpush1.msra.mxu0 0.0
    %577 = vmatprep.subr.mxu0 0.0
    %578 = vmatpush1.msra.mxu0 0.0
    %579 = vmatprep.subr.mxu0 0.0
    %580 = vmatpush1.msra.mxu0 0.0
    %581 = vmatprep.subr.mxu0 0.0
    %582 = vmatpush1.msra.mxu0 0.0
    %v583 = vand.u32 %v112, 4294901760
    %v584 = vsub.f32 %v112, %v583
    %v585 = vand.u32 %v584, 4294901760
    %586 = vmatprep.subr.mxu0 %v585
    %v587 = vand.u32 %v109, 4294901760
    %v588 = vsub.f32 %v109, %v587
    %v589 = vand.u32 %v588, 4294901760
    %590 = vmatpush1.msra.mxu0 %v589
    %v591 = vand.u32 %v80, 4294901760
    %v592 = vsub.f32 %v80, %v591
    %v593 = vand.u32 %v592, 4294901760
    %594 = vmatprep.subr.mxu0 %v593
    %v595 = vand.u32 %v79, 4294901760
    %v596 = vsub.f32 %v79, %v595
    %v597 = vand.u32 %v596, 4294901760
    %598 = vmatpush1.msra.mxu0 %v597
    %v599 = vand.u32 %v68, 4294901760
    %v600 = vsub.f32 %v68, %v599
    %v601 = vand.u32 %v600, 4294901760
    %602 = vmatprep.subr.mxu0 %v601
    %v603 = vand.u32 %v67, 4294901760
    %v604 = vsub.f32 %v67, %v603
    %v605 = vand.u32 %v604, 4294901760
    %606 = vmatpush1.msra.mxu0 %v605
    %v607 = vand.u32 %v56, 4294901760
    %v608 = vsub.f32 %v56, %v607
    %v609 = vand.u32 %v608, 4294901760
    %610 = vmatprep.subr.mxu0 %v609
    %v611 = vand.u32 %v55, 4294901760
    %v612 = vsub.f32 %v55, %v611
    %v613 = vand.u32 %v612, 4294901760
    %614 = vmatpush1.msra.mxu0 %v613
    %v615 = vand.u32 %v44, 4294901760
    %v616 = vsub.f32 %v44, %v615
    %v617 = vand.u32 %v616, 4294901760
    %618 = vmatprep.subr.mxu0 %v617
    %v619 = vand.u32 %v43, 4294901760
    %v620 = vsub.f32 %v43, %v619
    %v621 = vand.u32 %v620, 4294901760
    %622 = vmatpush1.msra.mxu0 %v621
    %v623 = vand.u32 %v32, 4294901760
    %v624 = vsub.f32 %v32, %v623
    %v625 = vand.u32 %v624, 4294901760
    %626 = vmatprep.subr.mxu0 %v625
    %v627 = vand.u32 %v31, 4294901760
    %v628 = vsub.f32 %v31, %v627
    %v629 = vand.u32 %v628, 4294901760
    %630 = vmatpush1.msra.mxu0 %v629
    %v631 = vand.u32 %v20, 4294901760
    %v632 = vsub.f32 %v20, %v631
    %v633 = vand.u32 %v632, 4294901760
    %634 = vmatprep.subr.mxu0 %v633
    %v635 = vand.u32 %v19, 4294901760
    %v636 = vsub.f32 %v19, %v635
    %v637 = vand.u32 %v636, 4294901760
    %638 = vmatpush1.msra.mxu0 %v637
    %639 = vmatprep.subr.mxu0 0.0
    %640 = vmatpush2.msra.mxu0 0.0
    %641 = vmatprep.subr.mxu0 0.0
    %642 = vmatpush2.msra.mxu0 0.0
    %643 = vmatprep.subr.mxu0 0.0
    %644 = vmatpush2.msra.mxu0 0.0
    %645 = vmatprep.subr.mxu0 0.0
    %646 = vmatpush2.msra.mxu0 0.0
    %647 = vmatprep.subr.mxu0 0.0
    %648 = vmatpush2.msra.mxu0 0.0
    %649 = vmatprep.subr.mxu0 0.0
    %650 = vmatpush2.msra.mxu0 0.0
    %651 = vmatprep.subr.mxu0 0.0
    %652 = vmatpush2.msra.mxu0 0.0
    %653 = vmatprep.subr.mxu0 0.0
    %654 = vmatpush2.msra.mxu0 0.0
    %655 = vmatprep.subr.mxu0 0.0
    %656 = vmatpush2.msra.mxu0 0.0
    %657 = vmatprep.subr.mxu0 0.0
    %658 = vmatpush2.msra.mxu0 0.0
    %659 = vmatprep.subr.mxu0 0.0
    %660 = vmatpush2.msra.mxu0 0.0
    %661 = vmatprep.subr.mxu0 0.0
    %662 = vmatpush2.msra.mxu0 0.0
    %663 = vmatprep.subr.mxu0 0.0
    %664 = vmatpush2.msra.mxu0 0.0
    %665 = vmatprep.subr.mxu0 0.0
    %666 = vmatpush2.msra.mxu0 0.0
    %667 = vmatprep.subr.mxu0 0.0
    %668 = vmatpush2.msra.mxu0 0.0
    %669 = vmatprep.subr.mxu0 0.0
    %670 = vmatpush2.msra.mxu0 0.0
    %671 = vmatprep.mubr.f32.mxu0 0.0
    %v672 = vand.u32 %v105, 4294901760
    %673 = vmatmul.mubr.f32.gmra.mxu0 %v672
    %v674 = vpop.f32.mrf.mxu0
    %v675 = vadd.f32 %v561, %v674
    %v676 = vpop.f32.mrf.mxu0
    %v677 = vadd.f32 %v563, %v676
    %678 = vdwg.mxu0
    %679 = vmatprep.subr.mxu0 0.0
    %680 = vmatpush1.msra.mxu0 0.0
    %681 = vmatprep.subr.mxu0 0.0
    %682 = vmatpush1.msra.mxu0 0.0
    %683 = vmatprep.subr.mxu0 0.0
    %684 = vmatpush1.msra.mxu0 0.0
    %685 = vmatprep.subr.mxu0 0.0
    %686 = vmatpush1.msra.mxu0 0.0
    %687 = vmatprep.subr.mxu0 0.0
    %688 = vmatpush1.msra.mxu0 0.0
    %689 = vmatprep.subr.mxu0 0.0
    %690 = vmatpush1.msra.mxu0 0.0
    %691 = vmatprep.subr.mxu0 0.0
    %692 = vmatpush1.msra.mxu0 0.0
    %693 = vmatprep.subr.mxu0 0.0
    %694 = vmatpush1.msra.mxu0 0.0
    %695 = vmatprep.subr.mxu0 0.0
    %696 = vmatpush1.msra.mxu0 0.0
    %v697 = vand.u32 %v112, 4294901760
    %698 = vmatprep.subr.mxu0 %v697
    %v699 = vand.u32 %v109, 4294901760
    %700 = vmatpush1.msra.mxu0 %v699
    %v701 = vand.u32 %v80, 4294901760
    %702 = vmatprep.subr.mxu0 %v701
    %v703 = vand.u32 %v79, 4294901760
    %704 = vmatpush1.msra.mxu0 %v703
    %v705 = vand.u32 %v68, 4294901760
    %706 = vmatprep.subr.mxu0 %v705
    %v707 = vand.u32 %v67, 4294901760
    %708 = vmatpush1.msra.mxu0 %v707
    %v709 = vand.u32 %v56, 4294901760
    %710 = vmatprep.subr.mxu0 %v709
    %v711 = vand.u32 %v55, 4294901760
    %712 = vmatpush1.msra.mxu0 %v711
    %v713 = vand.u32 %v44, 4294901760
    %714 = vmatprep.subr.mxu0 %v713
    %v715 = vand.u32 %v43, 4294901760
    %716 = vmatpush1.msra.mxu0 %v715
    %v717 = vand.u32 %v32, 4294901760
    %718 = vmatprep.subr.mxu0 %v717
    %v719 = vand.u32 %v31, 4294901760
    %720 = vmatpush1.msra.mxu0 %v719
    %v721 = vand.u32 %v20, 4294901760
    %722 = vmatprep.subr.mxu0 %v721
    %v723 = vand.u32 %v19, 4294901760
    %724 = vmatpush1.msra.mxu0 %v723
    %725 = vmatprep.subr.mxu0 0.0
    %726 = vmatpush2.msra.mxu0 0.0
    %727 = vmatprep.subr.mxu0 0.0
    %728 = vmatpush2.msra.mxu0 0.0
    %729 = vmatprep.subr.mxu0 0.0
    %730 = vmatpush2.msra.mxu0 0.0
    %731 = vmatprep.subr.mxu0 0.0
    %732 = vmatpush2.msra.mxu0 0.0
    %733 = vmatprep.subr.mxu0 0.0
    %734 = vmatpush2.msra.mxu0 0.0
    %735 = vmatprep.subr.mxu0 0.0
    %736 = vmatpush2.msra.mxu0 0.0
    %737 = vmatprep.subr.mxu0 0.0
    %738 = vmatpush2.msra.mxu0 0.0
    %739 = vmatprep.subr.mxu0 0.0
    %740 = vmatpush2.msra.mxu0 0.0
    %741 = vmatprep.subr.mxu0 0.0
    %742 = vmatpush2.msra.mxu0 0.0
    %743 = vmatprep.subr.mxu0 0.0
    %744 = vmatpush2.msra.mxu0 0.0
    %745 = vmatprep.subr.mxu0 0.0
    %746 = vmatpush2.msra.mxu0 0.0
    %747 = vmatprep.subr.mxu0 0.0
    %748 = vmatpush2.msra.mxu0 0.0
    %749 = vmatprep.subr.mxu0 0.0
    %750 = vmatpush2.msra.mxu0 0.0
    %751 = vmatprep.subr.mxu0 0.0
    %752 = vmatpush2.msra.mxu0 0.0
    %753 = vmatprep.subr.mxu0 0.0
    %754 = vmatpush2.msra.mxu0 0.0
    %755 = vmatprep.subr.mxu0 0.0
    %756 = vmatpush2.msra.mxu0 0.0
    %757 = vmatprep.mubr.f32.mxu0 0.0
    %v758 = vand.u32 %v105, 4294901760
    %759 = vmatmul.mubr.f32.gmra.mxu0 %v758
    %v760 = vpop.f32.mrf.mxu0
    %v761 = vadd.f32 %v675, %v760
    %v762 = vpop.f32.mrf.mxu0
    %v763 = vadd.f32 %v677, %v762
    %764 = vdwg.mxu0
    %765 = vmatprep.subr.mxu0 0.0
    %766 = vmatpush1.msra.mxu0 0.0
    %767 = vmatprep.subr.mxu0 0.0
    %768 = vmatpush1.msra.mxu0 0.0
    %769 = vmatprep.subr.mxu0 0.0
    %770 = vmatpush1.msra.mxu0 0.0
    %771 = vmatprep.subr.mxu0 0.0
    %772 = vmatpush1.msra.mxu0 0.0
    %773 = vmatprep.subr.mxu0 0.0
    %774 = vmatpush1.msra.mxu0 0.0
    %775 = vmatprep.subr.mxu0 0.0
    %776 = vmatpush1.msra.mxu0 0.0
    %777 = vmatprep.subr.mxu0 0.0
    %778 = vmatpush1.msra.mxu0 0.0
    %779 = vmatprep.subr.mxu0 0.0
    %780 = vmatpush1.msra.mxu0 0.0
    %781 = vmatprep.subr.mxu0 0.0
    %782 = vmatpush1.msra.mxu0 0.0
    %v783 = vand.u32 %v118, 4294901760
    %784 = vmatprep.subr.mxu0 %v783
    %v785 = vand.u32 %v115, 4294901760
    %786 = vmatpush1.msra.mxu0 %v785
    %v787 = vand.u32 %v82, 4294901760
    %788 = vmatprep.subr.mxu0 %v787
    %v789 = vand.u32 %v81, 4294901760
    %790 = vmatpush1.msra.mxu0 %v789
    %v791 = vand.u32 %v70, 4294901760
    %792 = vmatprep.subr.mxu0 %v791
    %v793 = vand.u32 %v69, 4294901760
    %794 = vmatpush1.msra.mxu0 %v793
    %v795 = vand.u32 %v58, 4294901760
    %796 = vmatprep.subr.mxu0 %v795
    %v797 = vand.u32 %v57, 4294901760
    %798 = vmatpush1.msra.mxu0 %v797
    %v799 = vand.u32 %v46, 4294901760
    %800 = vmatprep.subr.mxu0 %v799
    %v801 = vand.u32 %v45, 4294901760
    %802 = vmatpush1.msra.mxu0 %v801
    %v803 = vand.u32 %v34, 4294901760
    %804 = vmatprep.subr.mxu0 %v803
    %v805 = vand.u32 %v33, 4294901760
    %806 = vmatpush1.msra.mxu0 %v805
    %v807 = vand.u32 %v22, 4294901760
    %808 = vmatprep.subr.mxu0 %v807
    %v809 = vand.u32 %v21, 4294901760
    %810 = vmatpush1.msra.mxu0 %v809
    %811 = vmatprep.subr.mxu0 0.0
    %812 = vmatpush2.msra.mxu0 0.0
    %813 = vmatprep.subr.mxu0 0.0
    %814 = vmatpush2.msra.mxu0 0.0
    %815 = vmatprep.subr.mxu0 0.0
    %816 = vmatpush2.msra.mxu0 0.0
    %817 = vmatprep.subr.mxu0 0.0
    %818 = vmatpush2.msra.mxu0 0.0
    %819 = vmatprep.subr.mxu0 0.0
    %820 = vmatpush2.msra.mxu0 0.0
    %821 = vmatprep.subr.mxu0 0.0
    %822 = vmatpush2.msra.mxu0 0.0
    %823 = vmatprep.subr.mxu0 0.0
    %824 = vmatpush2.msra.mxu0 0.0
    %825 = vmatprep.subr.mxu0 0.0
    %826 = vmatpush2.msra.mxu0 0.0
    %827 = vmatprep.subr.mxu0 0.0
    %828 = vmatpush2.msra.mxu0 0.0
    %829 = vmatprep.subr.mxu0 0.0
    %830 = vmatpush2.msra.mxu0 0.0
    %831 = vmatprep.subr.mxu0 0.0
    %832 = vmatpush2.msra.mxu0 0.0
    %833 = vmatprep.subr.mxu0 0.0
    %834 = vmatpush2.msra.mxu0 0.0
    %835 = vmatprep.subr.mxu0 0.0
    %836 = vmatpush2.msra.mxu0 0.0
    %837 = vmatprep.subr.mxu0 0.0
    %838 = vmatpush2.msra.mxu0 0.0
    %839 = vmatprep.subr.mxu0 0.0
    %840 = vmatpush2.msra.mxu0 0.0
    %841 = vmatprep.subr.mxu0 0.0
    %842 = vmatpush2.msra.mxu0 0.0
    %843 = vmatprep.mubr.f32.mxu0 0.0
    %v844 = vand.u32 %v105, 4294901760
    %v845 = vsub.f32 %v105, %v844
    %v846 = vand.u32 %v845, 4294901760
    %v847 = vsub.f32 %v845, %v846
    %v848 = vand.u32 %v847, 4294901760
    %849 = vmatmul.mubr.f32.gmra.mxu0 %v848
    %v850 = vpop.f32.mrf.mxu0
    %v851 = vadd.f32 0.0, %v850
    %v852 = vpop.f32.mrf.mxu0
    %v853 = vadd.f32 0.0, %v852
    %854 = vdwg.mxu0
    %855 = vmatprep.subr.mxu0 0.0
    %856 = vmatpush1.msra.mxu0 0.0
    %857 = vmatprep.subr.mxu0 0.0
    %858 = vmatpush1.msra.mxu0 0.0
    %859 = vmatprep.subr.mxu0 0.0
    %860 = vmatpush1.msra.mxu0 0.0
    %861 = vmatprep.subr.mxu0 0.0
    %862 = vmatpush1.msra.mxu0 0.0
    %863 = vmatprep.subr.mxu0 0.0
    %864 = vmatpush1.msra.mxu0 0.0
    %865 = vmatprep.subr.mxu0 0.0
    %866 = vmatpush1.msra.mxu0 0.0
    %867 = vmatprep.subr.mxu0 0.0
    %868 = vmatpush1.msra.mxu0 0.0
    %869 = vmatprep.subr.mxu0 0.0
    %870 = vmatpush1.msra.mxu0 0.0
    %871 = vmatprep.subr.mxu0 0.0
    %872 = vmatpush1.msra.mxu0 0.0
    %v873 = vand.u32 %v118, 4294901760
    %v874 = vsub.f32 %v118, %v873
    %v875 = vand.u32 %v874, 4294901760
    %v876 = vsub.f32 %v874, %v875
    %v877 = vand.u32 %v876, 4294901760
    %878 = vmatprep.subr.mxu0 %v877
    %v879 = vand.u32 %v115, 4294901760
    %v880 = vsub.f32 %v115, %v879
    %v881 = vand.u32 %v880, 4294901760
    %v882 = vsub.f32 %v880, %v881
    %v883 = vand.u32 %v882, 4294901760
    %884 = vmatpush1.msra.mxu0 %v883
    %v885 = vand.u32 %v82, 4294901760
    %v886 = vsub.f32 %v82, %v885
    %v887 = vand.u32 %v886, 4294901760
    %v888 = vsub.f32 %v886, %v887
    %v889 = vand.u32 %v888, 4294901760
    %890 = vmatprep.subr.mxu0 %v889
    %v891 = vand.u32 %v81, 4294901760
    %v892 = vsub.f32 %v81, %v891
    %v893 = vand.u32 %v892, 4294901760
    %v894 = vsub.f32 %v892, %v893
    %v895 = vand.u32 %v894, 4294901760
    %896 = vmatpush1.msra.mxu0 %v895
    %v897 = vand.u32 %v70, 4294901760
    %v898 = vsub.f32 %v70, %v897
    %v899 = vand.u32 %v898, 4294901760
    %v900 = vsub.f32 %v898, %v899
    %v901 = vand.u32 %v900, 4294901760
    %902 = vmatprep.subr.mxu0 %v901
    %v903 = vand.u32 %v69, 4294901760
    %v904 = vsub.f32 %v69, %v903
    %v905 = vand.u32 %v904, 4294901760
    %v906 = vsub.f32 %v904, %v905
    %v907 = vand.u32 %v906, 4294901760
    %908 = vmatpush1.msra.mxu0 %v907
    %v909 = vand.u32 %v58, 4294901760
    %v910 = vsub.f32 %v58, %v909
    %v911 = vand.u32 %v910, 4294901760
    %v912 = vsub.f32 %v910, %v911
    %v913 = vand.u32 %v912, 4294901760
    %914 = vmatprep.subr.mxu0 %v913
    %v915 = vand.u32 %v57, 4294901760
    %v916 = vsub.f32 %v57, %v915
    %v917 = vand.u32 %v916, 4294901760
    %v918 = vsub.f32 %v916, %v917
    %v919 = vand.u32 %v918, 4294901760
    %920 = vmatpush1.msra.mxu0 %v919
    %v921 = vand.u32 %v46, 4294901760
    %v922 = vsub.f32 %v46, %v921
    %v923 = vand.u32 %v922, 4294901760
    %v924 = vsub.f32 %v922, %v923
    %v925 = vand.u32 %v924, 4294901760
    %926 = vmatprep.subr.mxu0 %v925
    %v927 = vand.u32 %v45, 4294901760
    %v928 = vsub.f32 %v45, %v927
    %v929 = vand.u32 %v928, 4294901760
    %v930 = vsub.f32 %v928, %v929
    %v931 = vand.u32 %v930, 4294901760
    %932 = vmatpush1.msra.mxu0 %v931
    %v933 = vand.u32 %v34, 4294901760
    %v934 = vsub.f32 %v34, %v933
    %v935 = vand.u32 %v934, 4294901760
    %v936 = vsub.f32 %v934, %v935
    %v937 = vand.u32 %v936, 4294901760
    %938 = vmatprep.subr.mxu0 %v937
    %v939 = vand.u32 %v33, 4294901760
    %v940 = vsub.f32 %v33, %v939
    %v941 = vand.u32 %v940, 4294901760
    %v942 = vsub.f32 %v940, %v941
    %v943 = vand.u32 %v942, 4294901760
    %944 = vmatpush1.msra.mxu0 %v943
    %v945 = vand.u32 %v22, 4294901760
    %v946 = vsub.f32 %v22, %v945
    %v947 = vand.u32 %v946, 4294901760
    %v948 = vsub.f32 %v946, %v947
    %v949 = vand.u32 %v948, 4294901760
    %950 = vmatprep.subr.mxu0 %v949
    %v951 = vand.u32 %v21, 4294901760
    %v952 = vsub.f32 %v21, %v951
    %v953 = vand.u32 %v952, 4294901760
    %v954 = vsub.f32 %v952, %v953
    %v955 = vand.u32 %v954, 4294901760
    %956 = vmatpush1.msra.mxu0 %v955
    %957 = vmatprep.subr.mxu0 0.0
    %958 = vmatpush2.msra.mxu0 0.0
    %959 = vmatprep.subr.mxu0 0.0
    %960 = vmatpush2.msra.mxu0 0.0
    %961 = vmatprep.subr.mxu0 0.0
    %962 = vmatpush2.msra.mxu0 0.0
    %963 = vmatprep.subr.mxu0 0.0
    %964 = vmatpush2.msra.mxu0 0.0
    %965 = vmatprep.subr.mxu0 0.0
    %966 = vmatpush2.msra.mxu0 0.0
    %967 = vmatprep.subr.mxu0 0.0
    %968 = vmatpush2.msra.mxu0 0.0
    %969 = vmatprep.subr.mxu0 0.0
    %970 = vmatpush2.msra.mxu0 0.0
    %971 = vmatprep.subr.mxu0 0.0
    %972 = vmatpush2.msra.mxu0 0.0
    %973 = vmatprep.subr.mxu0 0.0
    %974 = vmatpush2.msra.mxu0 0.0
    %975 = vmatprep.subr.mxu0 0.0
    %976 = vmatpush2.msra.mxu0 0.0
    %977 = vmatprep.subr.mxu0 0.0
    %978 = vmatpush2.msra.mxu0 0.0
    %979 = vmatprep.subr.mxu0 0.0
    %980 = vmatpush2.msra.mxu0 0.0
    %981 = vmatprep.subr.mxu0 0.0
    %982 = vmatpush2.msra.mxu0 0.0
    %983 = vmatprep.subr.mxu0 0.0
    %984 = vmatpush2.msra.mxu0 0.0
    %985 = vmatprep.subr.mxu0 0.0
    %986 = vmatpush2.msra.mxu0 0.0
    %987 = vmatprep.subr.mxu0 0.0
    %988 = vmatpush2.msra.mxu0 0.0
    %989 = vmatprep.mubr.f32.mxu0 0.0
    %v990 = vand.u32 %v105, 4294901760
    %991 = vmatmul.mubr.f32.gmra.mxu0 %v990
    %v992 = vpop.f32.mrf.mxu0
    %v993 = vadd.f32 %v851, %v992
    %v994 = vpop.f32.mrf.mxu0
    %v995 = vadd.f32 %v853, %v994
    %996 = vdwg.mxu0
    %997 = vmatprep.subr.mxu0 0.0
    %998 = vmatpush1.msra.mxu0 0.0
    %999 = vmatprep.subr.mxu0 0.0
    %1000 = vmatpush1.msra.mxu0 0.0
    %1001 = vmatprep.subr.mxu0 0.0
    %1002 = vmatpush1.msra.mxu0 0.0
    %1003 = vmatprep.subr.mxu0 0.0
    %1004 = vmatpush1.msra.mxu0 0.0
    %1005 = vmatprep.subr.mxu0 0.0
    %1006 = vmatpush1.msra.mxu0 0.0
    %1007 = vmatprep.subr.mxu0 0.0
    %1008 = vmatpush1.msra.mxu0 0.0
    %1009 = vmatprep.subr.mxu0 0.0
    %1010 = vmatpush1.msra.mxu0 0.0
    %1011 = vmatprep.subr.mxu0 0.0
    %1012 = vmatpush1.msra.mxu0 0.0
    %1013 = vmatprep.subr.mxu0 0.0
    %1014 = vmatpush1.msra.mxu0 0.0
    %v1015 = vand.u32 %v118, 4294901760
    %v1016 = vsub.f32 %v118, %v1015
    %1017 = vmatprep.subr.mxu0 %v1016
    %v1018 = vand.u32 %v115, 4294901760
    %v1019 = vsub.f32 %v115, %v1018
    %1020 = vmatpush1.msra.mxu0 %v1019
    %v1021 = vand.u32 %v82, 4294901760
    %v1022 = vsub.f32 %v82, %v1021
    %1023 = vmatprep.subr.mxu0 %v1022
    %v1024 = vand.u32 %v81, 4294901760
    %v1025 = vsub.f32 %v81, %v1024
    %1026 = vmatpush1.msra.mxu0 %v1025
    %v1027 = vand.u32 %v70, 4294901760
    %v1028 = vsub.f32 %v70, %v1027
    %1029 = vmatprep.subr.mxu0 %v1028
    %v1030 = vand.u32 %v69, 4294901760
    %v1031 = vsub.f32 %v69, %v1030
    %1032 = vmatpush1.msra.mxu0 %v1031
    %v1033 = vand.u32 %v58, 4294901760
    %v1034 = vsub.f32 %v58, %v1033
    %1035 = vmatprep.subr.mxu0 %v1034
    %v1036 = vand.u32 %v57, 4294901760
    %v1037 = vsub.f32 %v57, %v1036
    %1038 = vmatpush1.msra.mxu0 %v1037
    %v1039 = vand.u32 %v46, 4294901760
    %v1040 = vsub.f32 %v46, %v1039
    %1041 = vmatprep.subr.mxu0 %v1040
    %v1042 = vand.u32 %v45, 4294901760
    %v1043 = vsub.f32 %v45, %v1042
    %1044 = vmatpush1.msra.mxu0 %v1043
    %v1045 = vand.u32 %v34, 4294901760
    %v1046 = vsub.f32 %v34, %v1045
    %1047 = vmatprep.subr.mxu0 %v1046
    %v1048 = vand.u32 %v33, 4294901760
    %v1049 = vsub.f32 %v33, %v1048
    %1050 = vmatpush1.msra.mxu0 %v1049
    %v1051 = vand.u32 %v22, 4294901760
    %v1052 = vsub.f32 %v22, %v1051
    %1053 = vmatprep.subr.mxu0 %v1052
    %v1054 = vand.u32 %v21, 4294901760
    %v1055 = vsub.f32 %v21, %v1054
    %1056 = vmatpush1.msra.mxu0 %v1055
    %1057 = vmatprep.subr.mxu0 0.0
    %1058 = vmatpush2.msra.mxu0 0.0
    %1059 = vmatprep.subr.mxu0 0.0
    %1060 = vmatpush2.msra.mxu0 0.0
    %1061 = vmatprep.subr.mxu0 0.0
    %1062 = vmatpush2.msra.mxu0 0.0
    %1063 = vmatprep.subr.mxu0 0.0
    %1064 = vmatpush2.msra.mxu0 0.0
    %1065 = vmatprep.subr.mxu0 0.0
    %1066 = vmatpush2.msra.mxu0 0.0
    %1067 = vmatprep.subr.mxu0 0.0
    %1068 = vmatpush2.msra.mxu0 0.0
    %1069 = vmatprep.subr.mxu0 0.0
    %1070 = vmatpush2.msra.mxu0 0.0
    %1071 = vmatprep.subr.mxu0 0.0
    %1072 = vmatpush2.msra.mxu0 0.0
    %1073 = vmatprep.subr.mxu0 0.0
    %1074 = vmatpush2.msra.mxu0 0.0
    %1075 = vmatprep.subr.mxu0 0.0
    %1076 = vmatpush2.msra.mxu0 0.0
    %1077 = vmatprep.subr.mxu0 0.0
    %1078 = vmatpush2.msra.mxu0 0.0
    %1079 = vmatprep.subr.mxu0 0.0
    %1080 = vmatpush2.msra.mxu0 0.0
    %1081 = vmatprep.subr.mxu0 0.0
    %1082 = vmatpush2.msra.mxu0 0.0
    %1083 = vmatprep.subr.mxu0 0.0
    %1084 = vmatpush2.msra.mxu0 0.0
    %1085 = vmatprep.subr.mxu0 0.0
    %1086 = vmatpush2.msra.mxu0 0.0
    %1087 = vmatprep.subr.mxu0 0.0
    %1088 = vmatpush2.msra.mxu0 0.0
    %1089 = vmatprep.mubr.f32.mxu0 0.0
    %v1090 = vand.u32 %v105, 4294901760
    %v1091 = vsub.f32 %v105, %v1090
    %1092 = vmatmul.mubr.f32.gmra.mxu0 %v1091
    %v1093 = vpop.f32.mrf.mxu0
    %v1094 = vadd.f32 %v993, %v1093
    %v1095 = vpop.f32.mrf.mxu0
    %v1096 = vadd.f32 %v995, %v1095
    %1097 = vdwg.mxu0
    %1098 = vmatprep.subr.mxu0 0.0
    %1099 = vmatpush1.msra.mxu0 0.0
    %1100 = vmatprep.subr.mxu0 0.0
    %1101 = vmatpush1.msra.mxu0 0.0
    %1102 = vmatprep.subr.mxu0 0.0
    %1103 = vmatpush1.msra.mxu0 0.0
    %1104 = vmatprep.subr.mxu0 0.0
    %1105 = vmatpush1.msra.mxu0 0.0
    %1106 = vmatprep.subr.mxu0 0.0
    %1107 = vmatpush1.msra.mxu0 0.0
    %1108 = vmatprep.subr.mxu0 0.0
    %1109 = vmatpush1.msra.mxu0 0.0
    %1110 = vmatprep.subr.mxu0 0.0
    %1111 = vmatpush1.msra.mxu0 0.0
    %1112 = vmatprep.subr.mxu0 0.0
    %1113 = vmatpush1.msra.mxu0 0.0
    %1114 = vmatprep.subr.mxu0 0.0
    %1115 = vmatpush1.msra.mxu0 0.0
    %v1116 = vand.u32 %v118, 4294901760
    %1117 = vmatprep.subr.mxu0 %v1116
    %v1118 = vand.u32 %v115, 4294901760
    %1119 = vmatpush1.msra.mxu0 %v1118
    %v1120 = vand.u32 %v82, 4294901760
    %1121 = vmatprep.subr.mxu0 %v1120
    %v1122 = vand.u32 %v81, 4294901760
    %1123 = vmatpush1.msra.mxu0 %v1122
    %v1124 = vand.u32 %v70, 4294901760
    %1125 = vmatprep.subr.mxu0 %v1124
    %v1126 = vand.u32 %v69, 4294901760
    %1127 = vmatpush1.msra.mxu0 %v1126
    %v1128 = vand.u32 %v58, 4294901760
    %1129 = vmatprep.subr.mxu0 %v1128
    %v1130 = vand.u32 %v57, 4294901760
    %1131 = vmatpush1.msra.mxu0 %v1130
    %v1132 = vand.u32 %v46, 4294901760
    %1133 = vmatprep.subr.mxu0 %v1132
    %v1134 = vand.u32 %v45, 4294901760
    %1135 = vmatpush1.msra.mxu0 %v1134
    %v1136 = vand.u32 %v34, 4294901760
    %1137 = vmatprep.subr.mxu0 %v1136
    %v1138 = vand.u32 %v33, 4294901760
    %1139 = vmatpush1.msra.mxu0 %v1138
    %v1140 = vand.u32 %v22, 4294901760
    %1141 = vmatprep.subr.mxu0 %v1140
    %v1142 = vand.u32 %v21, 4294901760
    %1143 = vmatpush1.msra.mxu0 %v1142
    %1144 = vmatprep.subr.mxu0 0.0
    %1145 = vmatpush2.msra.mxu0 0.0
    %1146 = vmatprep.subr.mxu0 0.0
    %1147 = vmatpush2.msra.mxu0 0.0
    %1148 = vmatprep.subr.mxu0 0.0
    %1149 = vmatpush2.msra.mxu0 0.0
    %1150 = vmatprep.subr.mxu0 0.0
    %1151 = vmatpush2.msra.mxu0 0.0
    %1152 = vmatprep.subr.mxu0 0.0
    %1153 = vmatpush2.msra.mxu0 0.0
    %1154 = vmatprep.subr.mxu0 0.0
    %1155 = vmatpush2.msra.mxu0 0.0
    %1156 = vmatprep.subr.mxu0 0.0
    %1157 = vmatpush2.msra.mxu0 0.0
    %1158 = vmatprep.subr.mxu0 0.0
    %1159 = vmatpush2.msra.mxu0 0.0
    %1160 = vmatprep.subr.mxu0 0.0
    %1161 = vmatpush2.msra.mxu0 0.0
    %1162 = vmatprep.subr.mxu0 0.0
    %1163 = vmatpush2.msra.mxu0 0.0
    %1164 = vmatprep.subr.mxu0 0.0
    %1165 = vmatpush2.msra.mxu0 0.0
    %1166 = vmatprep.subr.mxu0 0.0
    %1167 = vmatpush2.msra.mxu0 0.0
    %1168 = vmatprep.subr.mxu0 0.0
    %1169 = vmatpush2.msra.mxu0 0.0
    %1170 = vmatprep.subr.mxu0 0.0
    %1171 = vmatpush2.msra.mxu0 0.0
    %1172 = vmatprep.subr.mxu0 0.0
    %1173 = vmatpush2.msra.mxu0 0.0
    %1174 = vmatprep.subr.mxu0 0.0
    %1175 = vmatpush2.msra.mxu0 0.0
    %1176 = vmatprep.mubr.f32.mxu0 0.0
    %v1177 = vand.u32 %v105, 4294901760
    %v1178 = vsub.f32 %v105, %v1177
    %v1179 = vand.u32 %v1178, 4294901760
    %1180 = vmatmul.mubr.f32.gmra.mxu0 %v1179
    %v1181 = vpop.f32.mrf.mxu0
    %v1182 = vadd.f32 %v1094, %v1181
    %v1183 = vpop.f32.mrf.mxu0
    %v1184 = vadd.f32 %v1096, %v1183
    %1185 = vdwg.mxu0
    %1186 = vmatprep.subr.mxu0 0.0
    %1187 = vmatpush1.msra.mxu0 0.0
    %1188 = vmatprep.subr.mxu0 0.0
    %1189 = vmatpush1.msra.mxu0 0.0
    %1190 = vmatprep.subr.mxu0 0.0
    %1191 = vmatpush1.msra.mxu0 0.0
    %1192 = vmatprep.subr.mxu0 0.0
    %1193 = vmatpush1.msra.mxu0 0.0
    %1194 = vmatprep.subr.mxu0 0.0
    %1195 = vmatpush1.msra.mxu0 0.0
    %1196 = vmatprep.subr.mxu0 0.0
    %1197 = vmatpush1.msra.mxu0 0.0
    %1198 = vmatprep.subr.mxu0 0.0
    %1199 = vmatpush1.msra.mxu0 0.0
    %1200 = vmatprep.subr.mxu0 0.0
    %1201 = vmatpush1.msra.mxu0 0.0
    %1202 = vmatprep.subr.mxu0 0.0
    %1203 = vmatpush1.msra.mxu0 0.0
    %v1204 = vand.u32 %v118, 4294901760
    %v1205 = vsub.f32 %v118, %v1204
    %v1206 = vand.u32 %v1205, 4294901760
    %1207 = vmatprep.subr.mxu0 %v1206
    %v1208 = vand.u32 %v115, 4294901760
    %v1209 = vsub.f32 %v115, %v1208
    %v1210 = vand.u32 %v1209, 4294901760
    %1211 = vmatpush1.msra.mxu0 %v1210
    %v1212 = vand.u32 %v82, 4294901760
    %v1213 = vsub.f32 %v82, %v1212
    %v1214 = vand.u32 %v1213, 4294901760
    %1215 = vmatprep.subr.mxu0 %v1214
    %v1216 = vand.u32 %v81, 4294901760
    %v1217 = vsub.f32 %v81, %v1216
    %v1218 = vand.u32 %v1217, 4294901760
    %1219 = vmatpush1.msra.mxu0 %v1218
    %v1220 = vand.u32 %v70, 4294901760
    %v1221 = vsub.f32 %v70, %v1220
    %v1222 = vand.u32 %v1221, 4294901760
    %1223 = vmatprep.subr.mxu0 %v1222
    %v1224 = vand.u32 %v69, 4294901760
    %v1225 = vsub.f32 %v69, %v1224
    %v1226 = vand.u32 %v1225, 4294901760
    %1227 = vmatpush1.msra.mxu0 %v1226
    %v1228 = vand.u32 %v58, 4294901760
    %v1229 = vsub.f32 %v58, %v1228
    %v1230 = vand.u32 %v1229, 4294901760
    %1231 = vmatprep.subr.mxu0 %v1230
    %v1232 = vand.u32 %v57, 4294901760
    %v1233 = vsub.f32 %v57, %v1232
    %v1234 = vand.u32 %v1233, 4294901760
    %1235 = vmatpush1.msra.mxu0 %v1234
    %v1236 = vand.u32 %v46, 4294901760
    %v1237 = vsub.f32 %v46, %v1236
    %v1238 = vand.u32 %v1237, 4294901760
    %1239 = vmatprep.subr.mxu0 %v1238
    %v1240 = vand.u32 %v45, 4294901760
    %v1241 = vsub.f32 %v45, %v1240
    %v1242 = vand.u32 %v1241, 4294901760
    %1243 = vmatpush1.msra.mxu0 %v1242
    %v1244 = vand.u32 %v34, 4294901760
    %v1245 = vsub.f32 %v34, %v1244
    %v1246 = vand.u32 %v1245, 4294901760
    %1247 = vmatprep.subr.mxu0 %v1246
    %v1248 = vand.u32 %v33, 4294901760
    %v1249 = vsub.f32 %v33, %v1248
    %v1250 = vand.u32 %v1249, 4294901760
    %1251 = vmatpush1.msra.mxu0 %v1250
    %v1252 = vand.u32 %v22, 4294901760
    %v1253 = vsub.f32 %v22, %v1252
    %v1254 = vand.u32 %v1253, 4294901760
    %1255 = vmatprep.subr.mxu0 %v1254
    %v1256 = vand.u32 %v21, 4294901760
    %v1257 = vsub.f32 %v21, %v1256
    %v1258 = vand.u32 %v1257, 4294901760
    %1259 = vmatpush1.msra.mxu0 %v1258
    %1260 = vmatprep.subr.mxu0 0.0
    %1261 = vmatpush2.msra.mxu0 0.0
    %1262 = vmatprep.subr.mxu0 0.0
    %1263 = vmatpush2.msra.mxu0 0.0
    %1264 = vmatprep.subr.mxu0 0.0
    %1265 = vmatpush2.msra.mxu0 0.0
    %1266 = vmatprep.subr.mxu0 0.0
    %1267 = vmatpush2.msra.mxu0 0.0
    %1268 = vmatprep.subr.mxu0 0.0
    %1269 = vmatpush2.msra.mxu0 0.0
    %1270 = vmatprep.subr.mxu0 0.0
    %1271 = vmatpush2.msra.mxu0 0.0
    %1272 = vmatprep.subr.mxu0 0.0
    %1273 = vmatpush2.msra.mxu0 0.0
    %1274 = vmatprep.subr.mxu0 0.0
    %1275 = vmatpush2.msra.mxu0 0.0
    %1276 = vmatprep.subr.mxu0 0.0
    %1277 = vmatpush2.msra.mxu0 0.0
    %1278 = vmatprep.subr.mxu0 0.0
    %1279 = vmatpush2.msra.mxu0 0.0
    %1280 = vmatprep.subr.mxu0 0.0
    %1281 = vmatpush2.msra.mxu0 0.0
    %1282 = vmatprep.subr.mxu0 0.0
    %1283 = vmatpush2.msra.mxu0 0.0
    %1284 = vmatprep.subr.mxu0 0.0
    %1285 = vmatpush2.msra.mxu0 0.0
    %1286 = vmatprep.subr.mxu0 0.0
    %1287 = vmatpush2.msra.mxu0 0.0
    %1288 = vmatprep.subr.mxu0 0.0
    %1289 = vmatpush2.msra.mxu0 0.0
    %1290 = vmatprep.subr.mxu0 0.0
    %1291 = vmatpush2.msra.mxu0 0.0
    %1292 = vmatprep.mubr.f32.mxu0 0.0
    %v1293 = vand.u32 %v105, 4294901760
    %1294 = vmatmul.mubr.f32.gmra.mxu0 %v1293
    %v1295 = vpop.f32.mrf.mxu0
    %v1296 = vadd.f32 %v1182, %v1295
    %v1297 = vpop.f32.mrf.mxu0
    %v1298 = vadd.f32 %v1184, %v1297
    %1299 = vdwg.mxu0
    %1300 = vmatprep.subr.mxu0 0.0
    %1301 = vmatpush1.msra.mxu0 0.0
    %1302 = vmatprep.subr.mxu0 0.0
    %1303 = vmatpush1.msra.mxu0 0.0
    %1304 = vmatprep.subr.mxu0 0.0
    %1305 = vmatpush1.msra.mxu0 0.0
    %1306 = vmatprep.subr.mxu0 0.0
    %1307 = vmatpush1.msra.mxu0 0.0
    %1308 = vmatprep.subr.mxu0 0.0
    %1309 = vmatpush1.msra.mxu0 0.0
    %1310 = vmatprep.subr.mxu0 0.0
    %1311 = vmatpush1.msra.mxu0 0.0
    %1312 = vmatprep.subr.mxu0 0.0
    %1313 = vmatpush1.msra.mxu0 0.0
    %1314 = vmatprep.subr.mxu0 0.0
    %1315 = vmatpush1.msra.mxu0 0.0
    %1316 = vmatprep.subr.mxu0 0.0
    %1317 = vmatpush1.msra.mxu0 0.0
    %v1318 = vand.u32 %v118, 4294901760
    %1319 = vmatprep.subr.mxu0 %v1318
    %v1320 = vand.u32 %v115, 4294901760
    %1321 = vmatpush1.msra.mxu0 %v1320
    %v1322 = vand.u32 %v82, 4294901760
    %1323 = vmatprep.subr.mxu0 %v1322
    %v1324 = vand.u32 %v81, 4294901760
    %1325 = vmatpush1.msra.mxu0 %v1324
    %v1326 = vand.u32 %v70, 4294901760
    %1327 = vmatprep.subr.mxu0 %v1326
    %v1328 = vand.u32 %v69, 4294901760
    %1329 = vmatpush1.msra.mxu0 %v1328
    %v1330 = vand.u32 %v58, 4294901760
    %1331 = vmatprep.subr.mxu0 %v1330
    %v1332 = vand.u32 %v57, 4294901760
    %1333 = vmatpush1.msra.mxu0 %v1332
    %v1334 = vand.u32 %v46, 4294901760
    %1335 = vmatprep.subr.mxu0 %v1334
    %v1336 = vand.u32 %v45, 4294901760
    %1337 = vmatpush1.msra.mxu0 %v1336
    %v1338 = vand.u32 %v34, 4294901760
    %1339 = vmatprep.subr.mxu0 %v1338
    %v1340 = vand.u32 %v33, 4294901760
    %1341 = vmatpush1.msra.mxu0 %v1340
    %v1342 = vand.u32 %v22, 4294901760
    %1343 = vmatprep.subr.mxu0 %v1342
    %v1344 = vand.u32 %v21, 4294901760
    %1345 = vmatpush1.msra.mxu0 %v1344
    %1346 = vmatprep.subr.mxu0 0.0
    %1347 = vmatpush2.msra.mxu0 0.0
    %1348 = vmatprep.subr.mxu0 0.0
    %1349 = vmatpush2.msra.mxu0 0.0
    %1350 = vmatprep.subr.mxu0 0.0
    %1351 = vmatpush2.msra.mxu0 0.0
    %1352 = vmatprep.subr.mxu0 0.0
    %1353 = vmatpush2.msra.mxu0 0.0
    %1354 = vmatprep.subr.mxu0 0.0
    %1355 = vmatpush2.msra.mxu0 0.0
    %1356 = vmatprep.subr.mxu0 0.0
    %1357 = vmatpush2.msra.mxu0 0.0
    %1358 = vmatprep.subr.mxu0 0.0
    %1359 = vmatpush2.msra.mxu0 0.0
    %1360 = vmatprep.subr.mxu0 0.0
    %1361 = vmatpush2.msra.mxu0 0.0
    %1362 = vmatprep.subr.mxu0 0.0
    %1363 = vmatpush2.msra.mxu0 0.0
    %1364 = vmatprep.subr.mxu0 0.0
    %1365 = vmatpush2.msra.mxu0 0.0
    %1366 = vmatprep.subr.mxu0 0.0
    %1367 = vmatpush2.msra.mxu0 0.0
    %1368 = vmatprep.subr.mxu0 0.0
    %1369 = vmatpush2.msra.mxu0 0.0
    %1370 = vmatprep.subr.mxu0 0.0
    %1371 = vmatpush2.msra.mxu0 0.0
    %1372 = vmatprep.subr.mxu0 0.0
    %1373 = vmatpush2.msra.mxu0 0.0
    %1374 = vmatprep.subr.mxu0 0.0
    %1375 = vmatpush2.msra.mxu0 0.0
    %1376 = vmatprep.subr.mxu0 0.0
    %1377 = vmatpush2.msra.mxu0 0.0
    %1378 = vmatprep.mubr.f32.mxu0 0.0
    %v1379 = vand.u32 %v105, 4294901760
    %1380 = vmatmul.mubr.f32.gmra.mxu0 %v1379
    %v1381 = vpop.f32.mrf.mxu0
    %v1382 = vadd.f32 %v1296, %v1381
    %v1383 = vpop.f32.mrf.mxu0
    %v1384 = vadd.f32 %v1298, %v1383
    %1385 = vdwg.mxu0
    %1386 = vmatprep.subr.mxu0 0.0
    %1387 = vmatpush1.msra.mxu0 0.0
    %1388 = vmatprep.subr.mxu0 0.0
    %1389 = vmatpush1.msra.mxu0 0.0
    %1390 = vmatprep.subr.mxu0 0.0
    %1391 = vmatpush1.msra.mxu0 0.0
    %1392 = vmatprep.subr.mxu0 0.0
    %1393 = vmatpush1.msra.mxu0 0.0
    %1394 = vmatprep.subr.mxu0 0.0
    %1395 = vmatpush1.msra.mxu0 0.0
    %1396 = vmatprep.subr.mxu0 0.0
    %1397 = vmatpush1.msra.mxu0 0.0
    %1398 = vmatprep.subr.mxu0 0.0
    %1399 = vmatpush1.msra.mxu0 0.0
    %1400 = vmatprep.subr.mxu0 0.0
    %1401 = vmatpush1.msra.mxu0 0.0
    %1402 = vmatprep.subr.mxu0 0.0
    %1403 = vmatpush1.msra.mxu0 0.0
    %v1404 = vand.u32 %v124, 4294901760
    %1405 = vmatprep.subr.mxu0 %v1404
    %v1406 = vand.u32 %v121, 4294901760
    %1407 = vmatpush1.msra.mxu0 %v1406
    %v1408 = vand.u32 %v84, 4294901760
    %1409 = vmatprep.subr.mxu0 %v1408
    %v1410 = vand.u32 %v83, 4294901760
    %1411 = vmatpush1.msra.mxu0 %v1410
    %v1412 = vand.u32 %v72, 4294901760
    %1413 = vmatprep.subr.mxu0 %v1412
    %v1414 = vand.u32 %v71, 4294901760
    %1415 = vmatpush1.msra.mxu0 %v1414
    %v1416 = vand.u32 %v60, 4294901760
    %1417 = vmatprep.subr.mxu0 %v1416
    %v1418 = vand.u32 %v59, 4294901760
    %1419 = vmatpush1.msra.mxu0 %v1418
    %v1420 = vand.u32 %v48, 4294901760
    %1421 = vmatprep.subr.mxu0 %v1420
    %v1422 = vand.u32 %v47, 4294901760
    %1423 = vmatpush1.msra.mxu0 %v1422
    %v1424 = vand.u32 %v36, 4294901760
    %1425 = vmatprep.subr.mxu0 %v1424
    %v1426 = vand.u32 %v35, 4294901760
    %1427 = vmatpush1.msra.mxu0 %v1426
    %v1428 = vand.u32 %v24, 4294901760
    %1429 = vmatprep.subr.mxu0 %v1428
    %v1430 = vand.u32 %v23, 4294901760
    %1431 = vmatpush1.msra.mxu0 %v1430
    %1432 = vmatprep.subr.mxu0 0.0
    %1433 = vmatpush2.msra.mxu0 0.0
    %1434 = vmatprep.subr.mxu0 0.0
    %1435 = vmatpush2.msra.mxu0 0.0
    %1436 = vmatprep.subr.mxu0 0.0
    %1437 = vmatpush2.msra.mxu0 0.0
    %1438 = vmatprep.subr.mxu0 0.0
    %1439 = vmatpush2.msra.mxu0 0.0
    %1440 = vmatprep.subr.mxu0 0.0
    %1441 = vmatpush2.msra.mxu0 0.0
    %1442 = vmatprep.subr.mxu0 0.0
    %1443 = vmatpush2.msra.mxu0 0.0
    %1444 = vmatprep.subr.mxu0 0.0
    %1445 = vmatpush2.msra.mxu0 0.0
    %1446 = vmatprep.subr.mxu0 0.0
    %1447 = vmatpush2.msra.mxu0 0.0
    %1448 = vmatprep.subr.mxu0 0.0
    %1449 = vmatpush2.msra.mxu0 0.0
    %1450 = vmatprep.subr.mxu0 0.0
    %1451 = vmatpush2.msra.mxu0 0.0
    %1452 = vmatprep.subr.mxu0 0.0
    %1453 = vmatpush2.msra.mxu0 0.0
    %1454 = vmatprep.subr.mxu0 0.0
    %1455 = vmatpush2.msra.mxu0 0.0
    %1456 = vmatprep.subr.mxu0 0.0
    %1457 = vmatpush2.msra.mxu0 0.0
    %1458 = vmatprep.subr.mxu0 0.0
    %1459 = vmatpush2.msra.mxu0 0.0
    %1460 = vmatprep.subr.mxu0 0.0
    %1461 = vmatpush2.msra.mxu0 0.0
    %1462 = vmatprep.subr.mxu0 0.0
    %1463 = vmatpush2.msra.mxu0 0.0
    %1464 = vmatprep.mubr.f32.mxu0 0.0
    %v1465 = vand.u32 %v105, 4294901760
    %v1466 = vsub.f32 %v105, %v1465
    %v1467 = vand.u32 %v1466, 4294901760
    %v1468 = vsub.f32 %v1466, %v1467
    %v1469 = vand.u32 %v1468, 4294901760
    %1470 = vmatmul.mubr.f32.gmra.mxu0 %v1469
    %v1471 = vpop.f32.mrf.mxu0
    %v1472 = vadd.f32 0.0, %v1471
    %v1473 = vpop.f32.mrf.mxu0
    %v1474 = vadd.f32 0.0, %v1473
    %1475 = vdwg.mxu0
    %1476 = vmatprep.subr.mxu0 0.0
    %1477 = vmatpush1.msra.mxu0 0.0
    %1478 = vmatprep.subr.mxu0 0.0
    %1479 = vmatpush1.msra.mxu0 0.0
    %1480 = vmatprep.subr.mxu0 0.0
    %1481 = vmatpush1.msra.mxu0 0.0
    %1482 = vmatprep.subr.mxu0 0.0
    %1483 = vmatpush1.msra.mxu0 0.0
    %1484 = vmatprep.subr.mxu0 0.0
    %1485 = vmatpush1.msra.mxu0 0.0
    %1486 = vmatprep.subr.mxu0 0.0
    %1487 = vmatpush1.msra.mxu0 0.0
    %1488 = vmatprep.subr.mxu0 0.0
    %1489 = vmatpush1.msra.mxu0 0.0
    %1490 = vmatprep.subr.mxu0 0.0
    %1491 = vmatpush1.msra.mxu0 0.0
    %1492 = vmatprep.subr.mxu0 0.0
    %1493 = vmatpush1.msra.mxu0 0.0
    %v1494 = vand.u32 %v124, 4294901760
    %v1495 = vsub.f32 %v124, %v1494
    %v1496 = vand.u32 %v1495, 4294901760
    %v1497 = vsub.f32 %v1495, %v1496
    %v1498 = vand.u32 %v1497, 4294901760
    %1499 = vmatprep.subr.mxu0 %v1498
    %v1500 = vand.u32 %v121, 4294901760
    %v1501 = vsub.f32 %v121, %v1500
    %v1502 = vand.u32 %v1501, 4294901760
    %v1503 = vsub.f32 %v1501, %v1502
    %v1504 = vand.u32 %v1503, 4294901760
    %1505 = vmatpush1.msra.mxu0 %v1504
    %v1506 = vand.u32 %v84, 4294901760
    %v1507 = vsub.f32 %v84, %v1506
    %v1508 = vand.u32 %v1507, 4294901760
    %v1509 = vsub.f32 %v1507, %v1508
    %v1510 = vand.u32 %v1509, 4294901760
    %1511 = vmatprep.subr.mxu0 %v1510
    %v1512 = vand.u32 %v83, 4294901760
    %v1513 = vsub.f32 %v83, %v1512
    %v1514 = vand.u32 %v1513, 4294901760
    %v1515 = vsub.f32 %v1513, %v1514
    %v1516 = vand.u32 %v1515, 4294901760
    %1517 = vmatpush1.msra.mxu0 %v1516
    %v1518 = vand.u32 %v72, 4294901760
    %v1519 = vsub.f32 %v72, %v1518
    %v1520 = vand.u32 %v1519, 4294901760
    %v1521 = vsub.f32 %v1519, %v1520
    %v1522 = vand.u32 %v1521, 4294901760
    %1523 = vmatprep.subr.mxu0 %v1522
    %v1524 = vand.u32 %v71, 4294901760
    %v1525 = vsub.f32 %v71, %v1524
    %v1526 = vand.u32 %v1525, 4294901760
    %v1527 = vsub.f32 %v1525, %v1526
    %v1528 = vand.u32 %v1527, 4294901760
    %1529 = vmatpush1.msra.mxu0 %v1528
    %v1530 = vand.u32 %v60, 4294901760
    %v1531 = vsub.f32 %v60, %v1530
    %v1532 = vand.u32 %v1531, 4294901760
    %v1533 = vsub.f32 %v1531, %v1532
    %v1534 = vand.u32 %v1533, 4294901760
    %1535 = vmatprep.subr.mxu0 %v1534
    %v1536 = vand.u32 %v59, 4294901760
    %v1537 = vsub.f32 %v59, %v1536
    %v1538 = vand.u32 %v1537, 4294901760
    %v1539 = vsub.f32 %v1537, %v1538
    %v1540 = vand.u32 %v1539, 4294901760
    %1541 = vmatpush1.msra.mxu0 %v1540
    %v1542 = vand.u32 %v48, 4294901760
    %v1543 = vsub.f32 %v48, %v1542
    %v1544 = vand.u32 %v1543, 4294901760
    %v1545 = vsub.f32 %v1543, %v1544
    %v1546 = vand.u32 %v1545, 4294901760
    %1547 = vmatprep.subr.mxu0 %v1546
    %v1548 = vand.u32 %v47, 4294901760
    %v1549 = vsub.f32 %v47, %v1548
    %v1550 = vand.u32 %v1549, 4294901760
    %v1551 = vsub.f32 %v1549, %v1550
    %v1552 = vand.u32 %v1551, 4294901760
    %1553 = vmatpush1.msra.mxu0 %v1552
    %v1554 = vand.u32 %v36, 4294901760
    %v1555 = vsub.f32 %v36, %v1554
    %v1556 = vand.u32 %v1555, 4294901760
    %v1557 = vsub.f32 %v1555, %v1556
    %v1558 = vand.u32 %v1557, 4294901760
    %1559 = vmatprep.subr.mxu0 %v1558
    %v1560 = vand.u32 %v35, 4294901760
    %v1561 = vsub.f32 %v35, %v1560
    %v1562 = vand.u32 %v1561, 4294901760
    %v1563 = vsub.f32 %v1561, %v1562
    %v1564 = vand.u32 %v1563, 4294901760
    %1565 = vmatpush1.msra.mxu0 %v1564
    %v1566 = vand.u32 %v24, 4294901760
    %v1567 = vsub.f32 %v24, %v1566
    %v1568 = vand.u32 %v1567, 4294901760
    %v1569 = vsub.f32 %v1567, %v1568
    %v1570 = vand.u32 %v1569, 4294901760
    %1571 = vmatprep.subr.mxu0 %v1570
    %v1572 = vand.u32 %v23, 4294901760
    %v1573 = vsub.f32 %v23, %v1572
    %v1574 = vand.u32 %v1573, 4294901760
    %v1575 = vsub.f32 %v1573, %v1574
    %v1576 = vand.u32 %v1575, 4294901760
    %1577 = vmatpush1.msra.mxu0 %v1576
    %1578 = vmatprep.subr.mxu0 0.0
    %1579 = vmatpush2.msra.mxu0 0.0
    %1580 = vmatprep.subr.mxu0 0.0
    %1581 = vmatpush2.msra.mxu0 0.0
    %1582 = vmatprep.subr.mxu0 0.0
    %1583 = vmatpush2.msra.mxu0 0.0
    %1584 = vmatprep.subr.mxu0 0.0
    %1585 = vmatpush2.msra.mxu0 0.0
    %1586 = vmatprep.subr.mxu0 0.0
    %1587 = vmatpush2.msra.mxu0 0.0
    %1588 = vmatprep.subr.mxu0 0.0
    %1589 = vmatpush2.msra.mxu0 0.0
    %1590 = vmatprep.subr.mxu0 0.0
    %1591 = vmatpush2.msra.mxu0 0.0
    %1592 = vmatprep.subr.mxu0 0.0
    %1593 = vmatpush2.msra.mxu0 0.0
    %1594 = vmatprep.subr.mxu0 0.0
    %1595 = vmatpush2.msra.mxu0 0.0
    %1596 = vmatprep.subr.mxu0 0.0
    %1597 = vmatpush2.msra.mxu0 0.0
    %1598 = vmatprep.subr.mxu0 0.0
    %1599 = vmatpush2.msra.mxu0 0.0
    %1600 = vmatprep.subr.mxu0 0.0
    %1601 = vmatpush2.msra.mxu0 0.0
    %1602 = vmatprep.subr.mxu0 0.0
    %1603 = vmatpush2.msra.mxu0 0.0
    %1604 = vmatprep.subr.mxu0 0.0
    %1605 = vmatpush2.msra.mxu0 0.0
    %1606 = vmatprep.subr.mxu0 0.0
    %1607 = vmatpush2.msra.mxu0 0.0
    %1608 = vmatprep.subr.mxu0 0.0
    %1609 = vmatpush2.msra.mxu0 0.0
    %1610 = vmatprep.mubr.f32.mxu0 0.0
    %v1611 = vand.u32 %v105, 4294901760
    %1612 = vmatmul.mubr.f32.gmra.mxu0 %v1611
    %v1613 = vpop.f32.mrf.mxu0
    %v1614 = vadd.f32 %v1472, %v1613
    %v1615 = vpop.f32.mrf.mxu0
    %v1616 = vadd.f32 %v1474, %v1615
    %1617 = vdwg.mxu0
    %1618 = vmatprep.subr.mxu0 0.0
    %1619 = vmatpush1.msra.mxu0 0.0
    %1620 = vmatprep.subr.mxu0 0.0
    %1621 = vmatpush1.msra.mxu0 0.0
    %1622 = vmatprep.subr.mxu0 0.0
    %1623 = vmatpush1.msra.mxu0 0.0
    %1624 = vmatprep.subr.mxu0 0.0
    %1625 = vmatpush1.msra.mxu0 0.0
    %1626 = vmatprep.subr.mxu0 0.0
    %1627 = vmatpush1.msra.mxu0 0.0
    %1628 = vmatprep.subr.mxu0 0.0
    %1629 = vmatpush1.msra.mxu0 0.0
    %1630 = vmatprep.subr.mxu0 0.0
    %1631 = vmatpush1.msra.mxu0 0.0
    %1632 = vmatprep.subr.mxu0 0.0
    %1633 = vmatpush1.msra.mxu0 0.0
    %1634 = vmatprep.subr.mxu0 0.0
    %1635 = vmatpush1.msra.mxu0 0.0
    %v1636 = vand.u32 %v124, 4294901760
    %v1637 = vsub.f32 %v124, %v1636
    %1638 = vmatprep.subr.mxu0 %v1637
    %v1639 = vand.u32 %v121, 4294901760
    %v1640 = vsub.f32 %v121, %v1639
    %1641 = vmatpush1.msra.mxu0 %v1640
    %v1642 = vand.u32 %v84, 4294901760
    %v1643 = vsub.f32 %v84, %v1642
    %1644 = vmatprep.subr.mxu0 %v1643
    %v1645 = vand.u32 %v83, 4294901760
    %v1646 = vsub.f32 %v83, %v1645
    %1647 = vmatpush1.msra.mxu0 %v1646
    %v1648 = vand.u32 %v72, 4294901760
    %v1649 = vsub.f32 %v72, %v1648
    %1650 = vmatprep.subr.mxu0 %v1649
    %v1651 = vand.u32 %v71, 4294901760
    %v1652 = vsub.f32 %v71, %v1651
    %1653 = vmatpush1.msra.mxu0 %v1652
    %v1654 = vand.u32 %v60, 4294901760
    %v1655 = vsub.f32 %v60, %v1654
    %1656 = vmatprep.subr.mxu0 %v1655
    %v1657 = vand.u32 %v59, 4294901760
    %v1658 = vsub.f32 %v59, %v1657
    %1659 = vmatpush1.msra.mxu0 %v1658
    %v1660 = vand.u32 %v48, 4294901760
    %v1661 = vsub.f32 %v48, %v1660
    %1662 = vmatprep.subr.mxu0 %v1661
    %v1663 = vand.u32 %v47, 4294901760
    %v1664 = vsub.f32 %v47, %v1663
    %1665 = vmatpush1.msra.mxu0 %v1664
    %v1666 = vand.u32 %v36, 4294901760
    %v1667 = vsub.f32 %v36, %v1666
    %1668 = vmatprep.subr.mxu0 %v1667
    %v1669 = vand.u32 %v35, 4294901760
    %v1670 = vsub.f32 %v35, %v1669
    %1671 = vmatpush1.msra.mxu0 %v1670
    %v1672 = vand.u32 %v24, 4294901760
    %v1673 = vsub.f32 %v24, %v1672
    %1674 = vmatprep.subr.mxu0 %v1673
    %v1675 = vand.u32 %v23, 4294901760
    %v1676 = vsub.f32 %v23, %v1675
    %1677 = vmatpush1.msra.mxu0 %v1676
    %1678 = vmatprep.subr.mxu0 0.0
    %1679 = vmatpush2.msra.mxu0 0.0
    %1680 = vmatprep.subr.mxu0 0.0
    %1681 = vmatpush2.msra.mxu0 0.0
    %1682 = vmatprep.subr.mxu0 0.0
    %1683 = vmatpush2.msra.mxu0 0.0
    %1684 = vmatprep.subr.mxu0 0.0
    %1685 = vmatpush2.msra.mxu0 0.0
    %1686 = vmatprep.subr.mxu0 0.0
    %1687 = vmatpush2.msra.mxu0 0.0
    %1688 = vmatprep.subr.mxu0 0.0
    %1689 = vmatpush2.msra.mxu0 0.0
    %1690 = vmatprep.subr.mxu0 0.0
    %1691 = vmatpush2.msra.mxu0 0.0
    %1692 = vmatprep.subr.mxu0 0.0
    %1693 = vmatpush2.msra.mxu0 0.0
    %1694 = vmatprep.subr.mxu0 0.0
    %1695 = vmatpush2.msra.mxu0 0.0
    %1696 = vmatprep.subr.mxu0 0.0
    %1697 = vmatpush2.msra.mxu0 0.0
    %1698 = vmatprep.subr.mxu0 0.0
    %1699 = vmatpush2.msra.mxu0 0.0
    %1700 = vmatprep.subr.mxu0 0.0
    %1701 = vmatpush2.msra.mxu0 0.0
    %1702 = vmatprep.subr.mxu0 0.0
    %1703 = vmatpush2.msra.mxu0 0.0
    %1704 = vmatprep.subr.mxu0 0.0
    %1705 = vmatpush2.msra.mxu0 0.0
    %1706 = vmatprep.subr.mxu0 0.0
    %1707 = vmatpush2.msra.mxu0 0.0
    %1708 = vmatprep.subr.mxu0 0.0
    %1709 = vmatpush2.msra.mxu0 0.0
    %1710 = vmatprep.mubr.f32.mxu0 0.0
    %v1711 = vand.u32 %v105, 4294901760
    %v1712 = vsub.f32 %v105, %v1711
    %1713 = vmatmul.mubr.f32.gmra.mxu0 %v1712
    %v1714 = vpop.f32.mrf.mxu0
    %v1715 = vadd.f32 %v1614, %v1714
    %v1716 = vpop.f32.mrf.mxu0
    %v1717 = vadd.f32 %v1616, %v1716
    %1718 = vdwg.mxu0
    %1719 = vmatprep.subr.mxu0 0.0
    %1720 = vmatpush1.msra.mxu0 0.0
    %1721 = vmatprep.subr.mxu0 0.0
    %1722 = vmatpush1.msra.mxu0 0.0
    %1723 = vmatprep.subr.mxu0 0.0
    %1724 = vmatpush1.msra.mxu0 0.0
    %1725 = vmatprep.subr.mxu0 0.0
    %1726 = vmatpush1.msra.mxu0 0.0
    %1727 = vmatprep.subr.mxu0 0.0
    %1728 = vmatpush1.msra.mxu0 0.0
    %1729 = vmatprep.subr.mxu0 0.0
    %1730 = vmatpush1.msra.mxu0 0.0
    %1731 = vmatprep.subr.mxu0 0.0
    %1732 = vmatpush1.msra.mxu0 0.0
    %1733 = vmatprep.subr.mxu0 0.0
    %1734 = vmatpush1.msra.mxu0 0.0
    %1735 = vmatprep.subr.mxu0 0.0
    %1736 = vmatpush1.msra.mxu0 0.0
    %v1737 = vand.u32 %v124, 4294901760
    %1738 = vmatprep.subr.mxu0 %v1737
    %v1739 = vand.u32 %v121, 4294901760
    %1740 = vmatpush1.msra.mxu0 %v1739
    %v1741 = vand.u32 %v84, 4294901760
    %1742 = vmatprep.subr.mxu0 %v1741
    %v1743 = vand.u32 %v83, 4294901760
    %1744 = vmatpush1.msra.mxu0 %v1743
    %v1745 = vand.u32 %v72, 4294901760
    %1746 = vmatprep.subr.mxu0 %v1745
    %v1747 = vand.u32 %v71, 4294901760
    %1748 = vmatpush1.msra.mxu0 %v1747
    %v1749 = vand.u32 %v60, 4294901760
    %1750 = vmatprep.subr.mxu0 %v1749
    %v1751 = vand.u32 %v59, 4294901760
    %1752 = vmatpush1.msra.mxu0 %v1751
    %v1753 = vand.u32 %v48, 4294901760
    %1754 = vmatprep.subr.mxu0 %v1753
    %v1755 = vand.u32 %v47, 4294901760
    %1756 = vmatpush1.msra.mxu0 %v1755
    %v1757 = vand.u32 %v36, 4294901760
    %1758 = vmatprep.subr.mxu0 %v1757
    %v1759 = vand.u32 %v35, 4294901760
    %1760 = vmatpush1.msra.mxu0 %v1759
    %v1761 = vand.u32 %v24, 4294901760
    %1762 = vmatprep.subr.mxu0 %v1761
    %v1763 = vand.u32 %v23, 4294901760
    %1764 = vmatpush1.msra.mxu0 %v1763
    %1765 = vmatprep.subr.mxu0 0.0
    %1766 = vmatpush2.msra.mxu0 0.0
    %1767 = vmatprep.subr.mxu0 0.0
    %1768 = vmatpush2.msra.mxu0 0.0
    %1769 = vmatprep.subr.mxu0 0.0
    %1770 = vmatpush2.msra.mxu0 0.0
    %1771 = vmatprep.subr.mxu0 0.0
    %1772 = vmatpush2.msra.mxu0 0.0
    %1773 = vmatprep.subr.mxu0 0.0
    %1774 = vmatpush2.msra.mxu0 0.0
    %1775 = vmatprep.subr.mxu0 0.0
    %1776 = vmatpush2.msra.mxu0 0.0
    %1777 = vmatprep.subr.mxu0 0.0
    %1778 = vmatpush2.msra.mxu0 0.0
    %1779 = vmatprep.subr.mxu0 0.0
    %1780 = vmatpush2.msra.mxu0 0.0
    %1781 = vmatprep.subr.mxu0 0.0
    %1782 = vmatpush2.msra.mxu0 0.0
    %1783 = vmatprep.subr.mxu0 0.0
    %1784 = vmatpush2.msra.mxu0 0.0
    %1785 = vmatprep.subr.mxu0 0.0
    %1786 = vmatpush2.msra.mxu0 0.0
    %1787 = vmatprep.subr.mxu0 0.0
    %1788 = vmatpush2.msra.mxu0 0.0
    %1789 = vmatprep.subr.mxu0 0.0
    %1790 = vmatpush2.msra.mxu0 0.0
    %1791 = vmatprep.subr.mxu0 0.0
    %1792 = vmatpush2.msra.mxu0 0.0
    %1793 = vmatprep.subr.mxu0 0.0
    %1794 = vmatpush2.msra.mxu0 0.0
    %1795 = vmatprep.subr.mxu0 0.0
    %1796 = vmatpush2.msra.mxu0 0.0
    %1797 = vmatprep.mubr.f32.mxu0 0.0
    %v1798 = vand.u32 %v105, 4294901760
    %v1799 = vsub.f32 %v105, %v1798
    %v1800 = vand.u32 %v1799, 4294901760
    %1801 = vmatmul.mubr.f32.gmra.mxu0 %v1800
    %v1802 = vpop.f32.mrf.mxu0
    %v1803 = vadd.f32 %v1715, %v1802
    %v1804 = vpop.f32.mrf.mxu0
    %v1805 = vadd.f32 %v1717, %v1804
    %1806 = vdwg.mxu0
    %1807 = vmatprep.subr.mxu0 0.0
    %1808 = vmatpush1.msra.mxu0 0.0
    %1809 = vmatprep.subr.mxu0 0.0
    %1810 = vmatpush1.msra.mxu0 0.0
    %1811 = vmatprep.subr.mxu0 0.0
    %1812 = vmatpush1.msra.mxu0 0.0
    %1813 = vmatprep.subr.mxu0 0.0
    %1814 = vmatpush1.msra.mxu0 0.0
    %1815 = vmatprep.subr.mxu0 0.0
    %1816 = vmatpush1.msra.mxu0 0.0
    %1817 = vmatprep.subr.mxu0 0.0
    %1818 = vmatpush1.msra.mxu0 0.0
    %1819 = vmatprep.subr.mxu0 0.0
    %1820 = vmatpush1.msra.mxu0 0.0
    %1821 = vmatprep.subr.mxu0 0.0
    %1822 = vmatpush1.msra.mxu0 0.0
    %1823 = vmatprep.subr.mxu0 0.0
    %1824 = vmatpush1.msra.mxu0 0.0
    %v1825 = vand.u32 %v124, 4294901760
    %v1826 = vsub.f32 %v124, %v1825
    %v1827 = vand.u32 %v1826, 4294901760
    %1828 = vmatprep.subr.mxu0 %v1827
    %v1829 = vand.u32 %v121, 4294901760
    %v1830 = vsub.f32 %v121, %v1829
    %v1831 = vand.u32 %v1830, 4294901760
    %1832 = vmatpush1.msra.mxu0 %v1831
    %v1833 = vand.u32 %v84, 4294901760
    %v1834 = vsub.f32 %v84, %v1833
    %v1835 = vand.u32 %v1834, 4294901760
    %1836 = vmatprep.subr.mxu0 %v1835
    %v1837 = vand.u32 %v83, 4294901760
    %v1838 = vsub.f32 %v83, %v1837
    %v1839 = vand.u32 %v1838, 4294901760
    %1840 = vmatpush1.msra.mxu0 %v1839
    %v1841 = vand.u32 %v72, 4294901760
    %v1842 = vsub.f32 %v72, %v1841
    %v1843 = vand.u32 %v1842, 4294901760
    %1844 = vmatprep.subr.mxu0 %v1843
    %v1845 = vand.u32 %v71, 4294901760
    %v1846 = vsub.f32 %v71, %v1845
    %v1847 = vand.u32 %v1846, 4294901760
    %1848 = vmatpush1.msra.mxu0 %v1847
    %v1849 = vand.u32 %v60, 4294901760
    %v1850 = vsub.f32 %v60, %v1849
    %v1851 = vand.u32 %v1850, 4294901760
    %1852 = vmatprep.subr.mxu0 %v1851
    %v1853 = vand.u32 %v59, 4294901760
    %v1854 = vsub.f32 %v59, %v1853
    %v1855 = vand.u32 %v1854, 4294901760
    %1856 = vmatpush1.msra.mxu0 %v1855
    %v1857 = vand.u32 %v48, 4294901760
    %v1858 = vsub.f32 %v48, %v1857
    %v1859 = vand.u32 %v1858, 4294901760
    %1860 = vmatprep.subr.mxu0 %v1859
    %v1861 = vand.u32 %v47, 4294901760
    %v1862 = vsub.f32 %v47, %v1861
    %v1863 = vand.u32 %v1862, 4294901760
    %1864 = vmatpush1.msra.mxu0 %v1863
    %v1865 = vand.u32 %v36, 4294901760
    %v1866 = vsub.f32 %v36, %v1865
    %v1867 = vand.u32 %v1866, 4294901760
    %1868 = vmatprep.subr.mxu0 %v1867
    %v1869 = vand.u32 %v35, 4294901760
    %v1870 = vsub.f32 %v35, %v1869
    %v1871 = vand.u32 %v1870, 4294901760
    %1872 = vmatpush1.msra.mxu0 %v1871
    %v1873 = vand.u32 %v24, 4294901760
    %v1874 = vsub.f32 %v24, %v1873
    %v1875 = vand.u32 %v1874, 4294901760
    %1876 = vmatprep.subr.mxu0 %v1875
    %v1877 = vand.u32 %v23, 4294901760
    %v1878 = vsub.f32 %v23, %v1877
    %v1879 = vand.u32 %v1878, 4294901760
    %1880 = vmatpush1.msra.mxu0 %v1879
    %1881 = vmatprep.subr.mxu0 0.0
    %1882 = vmatpush2.msra.mxu0 0.0
    %1883 = vmatprep.subr.mxu0 0.0
    %1884 = vmatpush2.msra.mxu0 0.0
    %1885 = vmatprep.subr.mxu0 0.0
    %1886 = vmatpush2.msra.mxu0 0.0
    %1887 = vmatprep.subr.mxu0 0.0
    %1888 = vmatpush2.msra.mxu0 0.0
    %1889 = vmatprep.subr.mxu0 0.0
    %1890 = vmatpush2.msra.mxu0 0.0
    %1891 = vmatprep.subr.mxu0 0.0
    %1892 = vmatpush2.msra.mxu0 0.0
    %1893 = vmatprep.subr.mxu0 0.0
    %1894 = vmatpush2.msra.mxu0 0.0
    %1895 = vmatprep.subr.mxu0 0.0
    %1896 = vmatpush2.msra.mxu0 0.0
    %1897 = vmatprep.subr.mxu0 0.0
    %1898 = vmatpush2.msra.mxu0 0.0
    %1899 = vmatprep.subr.mxu0 0.0
    %1900 = vmatpush2.msra.mxu0 0.0
    %1901 = vmatprep.subr.mxu0 0.0
    %1902 = vmatpush2.msra.mxu0 0.0
    %1903 = vmatprep.subr.mxu0 0.0
    %1904 = vmatpush2.msra.mxu0 0.0
    %1905 = vmatprep.subr.mxu0 0.0
    %1906 = vmatpush2.msra.mxu0 0.0
    %1907 = vmatprep.subr.mxu0 0.0
    %1908 = vmatpush2.msra.mxu0 0.0
    %1909 = vmatprep.subr.mxu0 0.0
    %1910 = vmatpush2.msra.mxu0 0.0
    %1911 = vmatprep.subr.mxu0 0.0
    %1912 = vmatpush2.msra.mxu0 0.0
    %1913 = vmatprep.mubr.f32.mxu0 0.0
    %v1914 = vand.u32 %v105, 4294901760
    %1915 = vmatmul.mubr.f32.gmra.mxu0 %v1914
    %v1916 = vpop.f32.mrf.mxu0
    %v1917 = vadd.f32 %v1803, %v1916
    %v1918 = vpop.f32.mrf.mxu0
    %v1919 = vadd.f32 %v1805, %v1918
    %1920 = vdwg.mxu0
    %1921 = vmatprep.subr.mxu0 0.0
    %1922 = vmatpush1.msra.mxu0 0.0
    %1923 = vmatprep.subr.mxu0 0.0
    %1924 = vmatpush1.msra.mxu0 0.0
    %1925 = vmatprep.subr.mxu0 0.0
    %1926 = vmatpush1.msra.mxu0 0.0
    %1927 = vmatprep.subr.mxu0 0.0
    %1928 = vmatpush1.msra.mxu0 0.0
    %1929 = vmatprep.subr.mxu0 0.0
    %1930 = vmatpush1.msra.mxu0 0.0
    %1931 = vmatprep.subr.mxu0 0.0
    %1932 = vmatpush1.msra.mxu0 0.0
    %1933 = vmatprep.subr.mxu0 0.0
    %1934 = vmatpush1.msra.mxu0 0.0
    %1935 = vmatprep.subr.mxu0 0.0
    %1936 = vmatpush1.msra.mxu0 0.0
    %1937 = vmatprep.subr.mxu0 0.0
    %1938 = vmatpush1.msra.mxu0 0.0
    %v1939 = vand.u32 %v124, 4294901760
    %1940 = vmatprep.subr.mxu0 %v1939
    %v1941 = vand.u32 %v121, 4294901760
    %1942 = vmatpush1.msra.mxu0 %v1941
    %v1943 = vand.u32 %v84, 4294901760
    %1944 = vmatprep.subr.mxu0 %v1943
    %v1945 = vand.u32 %v83, 4294901760
    %1946 = vmatpush1.msra.mxu0 %v1945
    %v1947 = vand.u32 %v72, 4294901760
    %1948 = vmatprep.subr.mxu0 %v1947
    %v1949 = vand.u32 %v71, 4294901760
    %1950 = vmatpush1.msra.mxu0 %v1949
    %v1951 = vand.u32 %v60, 4294901760
    %1952 = vmatprep.subr.mxu0 %v1951
    %v1953 = vand.u32 %v59, 4294901760
    %1954 = vmatpush1.msra.mxu0 %v1953
    %v1955 = vand.u32 %v48, 4294901760
    %1956 = vmatprep.subr.mxu0 %v1955
    %v1957 = vand.u32 %v47, 4294901760
    %1958 = vmatpush1.msra.mxu0 %v1957
    %v1959 = vand.u32 %v36, 4294901760
    %1960 = vmatprep.subr.mxu0 %v1959
    %v1961 = vand.u32 %v35, 4294901760
    %1962 = vmatpush1.msra.mxu0 %v1961
    %v1963 = vand.u32 %v24, 4294901760
    %1964 = vmatprep.subr.mxu0 %v1963
    %v1965 = vand.u32 %v23, 4294901760
    %1966 = vmatpush1.msra.mxu0 %v1965
    %1967 = vmatprep.subr.mxu0 0.0
    %1968 = vmatpush2.msra.mxu0 0.0
    %1969 = vmatprep.subr.mxu0 0.0
    %1970 = vmatpush2.msra.mxu0 0.0
    %1971 = vmatprep.subr.mxu0 0.0
    %1972 = vmatpush2.msra.mxu0 0.0
    %1973 = vmatprep.subr.mxu0 0.0
    %1974 = vmatpush2.msra.mxu0 0.0
    %1975 = vmatprep.subr.mxu0 0.0
    %1976 = vmatpush2.msra.mxu0 0.0
    %1977 = vmatprep.subr.mxu0 0.0
    %1978 = vmatpush2.msra.mxu0 0.0
    %1979 = vmatprep.subr.mxu0 0.0
    %1980 = vmatpush2.msra.mxu0 0.0
    %1981 = vmatprep.subr.mxu0 0.0
    %1982 = vmatpush2.msra.mxu0 0.0
    %1983 = vmatprep.subr.mxu0 0.0
    %1984 = vmatpush2.msra.mxu0 0.0
    %1985 = vmatprep.subr.mxu0 0.0
    %1986 = vmatpush2.msra.mxu0 0.0
    %1987 = vmatprep.subr.mxu0 0.0
    %1988 = vmatpush2.msra.mxu0 0.0
    %1989 = vmatprep.subr.mxu0 0.0
    %1990 = vmatpush2.msra.mxu0 0.0
    %1991 = vmatprep.subr.mxu0 0.0
    %1992 = vmatpush2.msra.mxu0 0.0
    %1993 = vmatprep.subr.mxu0 0.0
    %1994 = vmatpush2.msra.mxu0 0.0
    %1995 = vmatprep.subr.mxu0 0.0
    %1996 = vmatpush2.msra.mxu0 0.0
    %1997 = vmatprep.subr.mxu0 0.0
    %1998 = vmatpush2.msra.mxu0 0.0
    %1999 = vmatprep.mubr.f32.mxu0 0.0
    %v2000 = vand.u32 %v105, 4294901760
    %2001 = vmatmul.mubr.f32.gmra.mxu0 %v2000
    %v2002 = vpop.f32.mrf.mxu0
    %v2003 = vadd.f32 %v1917, %v2002
    %v2004 = vpop.f32.mrf.mxu0
    %v2005 = vadd.f32 %v1919, %v2004
    %2006 = vdwg.mxu0
    %2007 = vmatprep.subr.mxu0 0.0
    %2008 = vmatpush1.msra.mxu0 0.0
    %2009 = vmatprep.subr.mxu0 0.0
    %2010 = vmatpush1.msra.mxu0 0.0
    %2011 = vmatprep.subr.mxu0 0.0
    %2012 = vmatpush1.msra.mxu0 0.0
    %2013 = vmatprep.subr.mxu0 0.0
    %2014 = vmatpush1.msra.mxu0 0.0
    %2015 = vmatprep.subr.mxu0 0.0
    %2016 = vmatpush1.msra.mxu0 0.0
    %2017 = vmatprep.subr.mxu0 0.0
    %2018 = vmatpush1.msra.mxu0 0.0
    %2019 = vmatprep.subr.mxu0 0.0
    %2020 = vmatpush1.msra.mxu0 0.0
    %2021 = vmatprep.subr.mxu0 0.0
    %2022 = vmatpush1.msra.mxu0 0.0
    %2023 = vmatprep.subr.mxu0 0.0
    %2024 = vmatpush1.msra.mxu0 0.0
    %v2025 = vand.u32 %v130, 4294901760
    %2026 = vmatprep.subr.mxu0 %v2025
    %v2027 = vand.u32 %v127, 4294901760
    %2028 = vmatpush1.msra.mxu0 %v2027
    %v2029 = vand.u32 %v86, 4294901760
    %2030 = vmatprep.subr.mxu0 %v2029
    %v2031 = vand.u32 %v85, 4294901760
    %2032 = vmatpush1.msra.mxu0 %v2031
    %v2033 = vand.u32 %v74, 4294901760
    %2034 = vmatprep.subr.mxu0 %v2033
    %v2035 = vand.u32 %v73, 4294901760
    %2036 = vmatpush1.msra.mxu0 %v2035
    %v2037 = vand.u32 %v62, 4294901760
    %2038 = vmatprep.subr.mxu0 %v2037
    %v2039 = vand.u32 %v61, 4294901760
    %2040 = vmatpush1.msra.mxu0 %v2039
    %v2041 = vand.u32 %v50, 4294901760
    %2042 = vmatprep.subr.mxu0 %v2041
    %v2043 = vand.u32 %v49, 4294901760
    %2044 = vmatpush1.msra.mxu0 %v2043
    %v2045 = vand.u32 %v38, 4294901760
    %2046 = vmatprep.subr.mxu0 %v2045
    %v2047 = vand.u32 %v37, 4294901760
    %2048 = vmatpush1.msra.mxu0 %v2047
    %v2049 = vand.u32 %v26, 4294901760
    %2050 = vmatprep.subr.mxu0 %v2049
    %v2051 = vand.u32 %v25, 4294901760
    %2052 = vmatpush1.msra.mxu0 %v2051
    %2053 = vmatprep.subr.mxu0 0.0
    %2054 = vmatpush2.msra.mxu0 0.0
    %2055 = vmatprep.subr.mxu0 0.0
    %2056 = vmatpush2.msra.mxu0 0.0
    %2057 = vmatprep.subr.mxu0 0.0
    %2058 = vmatpush2.msra.mxu0 0.0
    %2059 = vmatprep.subr.mxu0 0.0
    %2060 = vmatpush2.msra.mxu0 0.0
    %2061 = vmatprep.subr.mxu0 0.0
    %2062 = vmatpush2.msra.mxu0 0.0
    %2063 = vmatprep.subr.mxu0 0.0
    %2064 = vmatpush2.msra.mxu0 0.0
    %2065 = vmatprep.subr.mxu0 0.0
    %2066 = vmatpush2.msra.mxu0 0.0
    %2067 = vmatprep.subr.mxu0 0.0
    %2068 = vmatpush2.msra.mxu0 0.0
    %2069 = vmatprep.subr.mxu0 0.0
    %2070 = vmatpush2.msra.mxu0 0.0
    %2071 = vmatprep.subr.mxu0 0.0
    %2072 = vmatpush2.msra.mxu0 0.0
    %2073 = vmatprep.subr.mxu0 0.0
    %2074 = vmatpush2.msra.mxu0 0.0
    %2075 = vmatprep.subr.mxu0 0.0
    %2076 = vmatpush2.msra.mxu0 0.0
    %2077 = vmatprep.subr.mxu0 0.0
    %2078 = vmatpush2.msra.mxu0 0.0
    %2079 = vmatprep.subr.mxu0 0.0
    %2080 = vmatpush2.msra.mxu0 0.0
    %2081 = vmatprep.subr.mxu0 0.0
    %2082 = vmatpush2.msra.mxu0 0.0
    %2083 = vmatprep.subr.mxu0 0.0
    %2084 = vmatpush2.msra.mxu0 0.0
    %2085 = vmatprep.mubr.f32.mxu0 0.0
    %v2086 = vand.u32 %v105, 4294901760
    %v2087 = vsub.f32 %v105, %v2086
    %v2088 = vand.u32 %v2087, 4294901760
    %v2089 = vsub.f32 %v2087, %v2088
    %v2090 = vand.u32 %v2089, 4294901760
    %2091 = vmatmul.mubr.f32.gmra.mxu0 %v2090
    %v2092 = vpop.f32.mrf.mxu0
    %v2093 = vadd.f32 0.0, %v2092
    %v2094 = vpop.f32.mrf.mxu0
    %v2095 = vadd.f32 0.0, %v2094
    %2096 = vdwg.mxu0
    %2097 = vmatprep.subr.mxu0 0.0
    %2098 = vmatpush1.msra.mxu0 0.0
    %2099 = vmatprep.subr.mxu0 0.0
    %2100 = vmatpush1.msra.mxu0 0.0
    %2101 = vmatprep.subr.mxu0 0.0
    %2102 = vmatpush1.msra.mxu0 0.0
    %2103 = vmatprep.subr.mxu0 0.0
    %2104 = vmatpush1.msra.mxu0 0.0
    %2105 = vmatprep.subr.mxu0 0.0
    %2106 = vmatpush1.msra.mxu0 0.0
    %2107 = vmatprep.subr.mxu0 0.0
    %2108 = vmatpush1.msra.mxu0 0.0
    %2109 = vmatprep.subr.mxu0 0.0
    %2110 = vmatpush1.msra.mxu0 0.0
    %2111 = vmatprep.subr.mxu0 0.0
    %2112 = vmatpush1.msra.mxu0 0.0
    %2113 = vmatprep.subr.mxu0 0.0
    %2114 = vmatpush1.msra.mxu0 0.0
    %v2115 = vand.u32 %v130, 4294901760
    %v2116 = vsub.f32 %v130, %v2115
    %v2117 = vand.u32 %v2116, 4294901760
    %v2118 = vsub.f32 %v2116, %v2117
    %v2119 = vand.u32 %v2118, 4294901760
    %2120 = vmatprep.subr.mxu0 %v2119
    %v2121 = vand.u32 %v127, 4294901760
    %v2122 = vsub.f32 %v127, %v2121
    %v2123 = vand.u32 %v2122, 4294901760
    %v2124 = vsub.f32 %v2122, %v2123
    %v2125 = vand.u32 %v2124, 4294901760
    %2126 = vmatpush1.msra.mxu0 %v2125
    %v2127 = vand.u32 %v86, 4294901760
    %v2128 = vsub.f32 %v86, %v2127
    %v2129 = vand.u32 %v2128, 4294901760
    %v2130 = vsub.f32 %v2128, %v2129
    %v2131 = vand.u32 %v2130, 4294901760
    %2132 = vmatprep.subr.mxu0 %v2131
    %v2133 = vand.u32 %v85, 4294901760
    %v2134 = vsub.f32 %v85, %v2133
    %v2135 = vand.u32 %v2134, 4294901760
    %v2136 = vsub.f32 %v2134, %v2135
    %v2137 = vand.u32 %v2136, 4294901760
    %2138 = vmatpush1.msra.mxu0 %v2137
    %v2139 = vand.u32 %v74, 4294901760
    %v2140 = vsub.f32 %v74, %v2139
    %v2141 = vand.u32 %v2140, 4294901760
    %v2142 = vsub.f32 %v2140, %v2141
    %v2143 = vand.u32 %v2142, 4294901760
    %2144 = vmatprep.subr.mxu0 %v2143
    %v2145 = vand.u32 %v73, 4294901760
    %v2146 = vsub.f32 %v73, %v2145
    %v2147 = vand.u32 %v2146, 4294901760
    %v2148 = vsub.f32 %v2146, %v2147
    %v2149 = vand.u32 %v2148, 4294901760
    %2150 = vmatpush1.msra.mxu0 %v2149
    %v2151 = vand.u32 %v62, 4294901760
    %v2152 = vsub.f32 %v62, %v2151
    %v2153 = vand.u32 %v2152, 4294901760
    %v2154 = vsub.f32 %v2152, %v2153
    %v2155 = vand.u32 %v2154, 4294901760
    %2156 = vmatprep.subr.mxu0 %v2155
    %v2157 = vand.u32 %v61, 4294901760
    %v2158 = vsub.f32 %v61, %v2157
    %v2159 = vand.u32 %v2158, 4294901760
    %v2160 = vsub.f32 %v2158, %v2159
    %v2161 = vand.u32 %v2160, 4294901760
    %2162 = vmatpush1.msra.mxu0 %v2161
    %v2163 = vand.u32 %v50, 4294901760
    %v2164 = vsub.f32 %v50, %v2163
    %v2165 = vand.u32 %v2164, 4294901760
    %v2166 = vsub.f32 %v2164, %v2165
    %v2167 = vand.u32 %v2166, 4294901760
    %2168 = vmatprep.subr.mxu0 %v2167
    %v2169 = vand.u32 %v49, 4294901760
    %v2170 = vsub.f32 %v49, %v2169
    %v2171 = vand.u32 %v2170, 4294901760
    %v2172 = vsub.f32 %v2170, %v2171
    %v2173 = vand.u32 %v2172, 4294901760
    %2174 = vmatpush1.msra.mxu0 %v2173
    %v2175 = vand.u32 %v38, 4294901760
    %v2176 = vsub.f32 %v38, %v2175
    %v2177 = vand.u32 %v2176, 4294901760
    %v2178 = vsub.f32 %v2176, %v2177
    %v2179 = vand.u32 %v2178, 4294901760
    %2180 = vmatprep.subr.mxu0 %v2179
    %v2181 = vand.u32 %v37, 4294901760
    %v2182 = vsub.f32 %v37, %v2181
    %v2183 = vand.u32 %v2182, 4294901760
    %v2184 = vsub.f32 %v2182, %v2183
    %v2185 = vand.u32 %v2184, 4294901760
    %2186 = vmatpush1.msra.mxu0 %v2185
    %v2187 = vand.u32 %v26, 4294901760
    %v2188 = vsub.f32 %v26, %v2187
    %v2189 = vand.u32 %v2188, 4294901760
    %v2190 = vsub.f32 %v2188, %v2189
    %v2191 = vand.u32 %v2190, 4294901760
    %2192 = vmatprep.subr.mxu0 %v2191
    %v2193 = vand.u32 %v25, 4294901760
    %v2194 = vsub.f32 %v25, %v2193
    %v2195 = vand.u32 %v2194, 4294901760
    %v2196 = vsub.f32 %v2194, %v2195
    %v2197 = vand.u32 %v2196, 4294901760
    %2198 = vmatpush1.msra.mxu0 %v2197
    %2199 = vmatprep.subr.mxu0 0.0
    %2200 = vmatpush2.msra.mxu0 0.0
    %2201 = vmatprep.subr.mxu0 0.0
    %2202 = vmatpush2.msra.mxu0 0.0
    %2203 = vmatprep.subr.mxu0 0.0
    %2204 = vmatpush2.msra.mxu0 0.0
    %2205 = vmatprep.subr.mxu0 0.0
    %2206 = vmatpush2.msra.mxu0 0.0
    %2207 = vmatprep.subr.mxu0 0.0
    %2208 = vmatpush2.msra.mxu0 0.0
    %2209 = vmatprep.subr.mxu0 0.0
    %2210 = vmatpush2.msra.mxu0 0.0
    %2211 = vmatprep.subr.mxu0 0.0
    %2212 = vmatpush2.msra.mxu0 0.0
    %2213 = vmatprep.subr.mxu0 0.0
    %2214 = vmatpush2.msra.mxu0 0.0
    %2215 = vmatprep.subr.mxu0 0.0
    %2216 = vmatpush2.msra.mxu0 0.0
    %2217 = vmatprep.subr.mxu0 0.0
    %2218 = vmatpush2.msra.mxu0 0.0
    %2219 = vmatprep.subr.mxu0 0.0
    %2220 = vmatpush2.msra.mxu0 0.0
    %2221 = vmatprep.subr.mxu0 0.0
    %2222 = vmatpush2.msra.mxu0 0.0
    %2223 = vmatprep.subr.mxu0 0.0
    %2224 = vmatpush2.msra.mxu0 0.0
    %2225 = vmatprep.subr.mxu0 0.0
    %2226 = vmatpush2.msra.mxu0 0.0
    %2227 = vmatprep.subr.mxu0 0.0
    %2228 = vmatpush2.msra.mxu0 0.0
    %2229 = vmatprep.subr.mxu0 0.0
    %2230 = vmatpush2.msra.mxu0 0.0
    %2231 = vmatprep.mubr.f32.mxu0 0.0
    %v2232 = vand.u32 %v105, 4294901760
    %2233 = vmatmul.mubr.f32.gmra.mxu0 %v2232
    %v2234 = vpop.f32.mrf.mxu0
    %v2235 = vadd.f32 %v2093, %v2234
    %v2236 = vpop.f32.mrf.mxu0
    %v2237 = vadd.f32 %v2095, %v2236
    %2238 = vdwg.mxu0
    %2239 = vmatprep.subr.mxu0 0.0
    %2240 = vmatpush1.msra.mxu0 0.0
    %2241 = vmatprep.subr.mxu0 0.0
    %2242 = vmatpush1.msra.mxu0 0.0
    %2243 = vmatprep.subr.mxu0 0.0
    %2244 = vmatpush1.msra.mxu0 0.0
    %2245 = vmatprep.subr.mxu0 0.0
    %2246 = vmatpush1.msra.mxu0 0.0
    %2247 = vmatprep.subr.mxu0 0.0
    %2248 = vmatpush1.msra.mxu0 0.0
    %2249 = vmatprep.subr.mxu0 0.0
    %2250 = vmatpush1.msra.mxu0 0.0
    %2251 = vmatprep.subr.mxu0 0.0
    %2252 = vmatpush1.msra.mxu0 0.0
    %2253 = vmatprep.subr.mxu0 0.0
    %2254 = vmatpush1.msra.mxu0 0.0
    %2255 = vmatprep.subr.mxu0 0.0
    %2256 = vmatpush1.msra.mxu0 0.0
    %v2257 = vand.u32 %v130, 4294901760
    %v2258 = vsub.f32 %v130, %v2257
    %2259 = vmatprep.subr.mxu0 %v2258
    %v2260 = vand.u32 %v127, 4294901760
    %v2261 = vsub.f32 %v127, %v2260
    %2262 = vmatpush1.msra.mxu0 %v2261
    %v2263 = vand.u32 %v86, 4294901760
    %v2264 = vsub.f32 %v86, %v2263
    %2265 = vmatprep.subr.mxu0 %v2264
    %v2266 = vand.u32 %v85, 4294901760
    %v2267 = vsub.f32 %v85, %v2266
    %2268 = vmatpush1.msra.mxu0 %v2267
    %v2269 = vand.u32 %v74, 4294901760
    %v2270 = vsub.f32 %v74, %v2269
    %2271 = vmatprep.subr.mxu0 %v2270
    %v2272 = vand.u32 %v73, 4294901760
    %v2273 = vsub.f32 %v73, %v2272
    %2274 = vmatpush1.msra.mxu0 %v2273
    %v2275 = vand.u32 %v62, 4294901760
    %v2276 = vsub.f32 %v62, %v2275
    %2277 = vmatprep.subr.mxu0 %v2276
    %v2278 = vand.u32 %v61, 4294901760
    %v2279 = vsub.f32 %v61, %v2278
    %2280 = vmatpush1.msra.mxu0 %v2279
    %v2281 = vand.u32 %v50, 4294901760
    %v2282 = vsub.f32 %v50, %v2281
    %2283 = vmatprep.subr.mxu0 %v2282
    %v2284 = vand.u32 %v49, 4294901760
    %v2285 = vsub.f32 %v49, %v2284
    %2286 = vmatpush1.msra.mxu0 %v2285
    %v2287 = vand.u32 %v38, 4294901760
    %v2288 = vsub.f32 %v38, %v2287
    %2289 = vmatprep.subr.mxu0 %v2288
    %v2290 = vand.u32 %v37, 4294901760
    %v2291 = vsub.f32 %v37, %v2290
    %2292 = vmatpush1.msra.mxu0 %v2291
    %v2293 = vand.u32 %v26, 4294901760
    %v2294 = vsub.f32 %v26, %v2293
    %2295 = vmatprep.subr.mxu0 %v2294
    %v2296 = vand.u32 %v25, 4294901760
    %v2297 = vsub.f32 %v25, %v2296
    %2298 = vmatpush1.msra.mxu0 %v2297
    %2299 = vmatprep.subr.mxu0 0.0
    %2300 = vmatpush2.msra.mxu0 0.0
    %2301 = vmatprep.subr.mxu0 0.0
    %2302 = vmatpush2.msra.mxu0 0.0
    %2303 = vmatprep.subr.mxu0 0.0
    %2304 = vmatpush2.msra.mxu0 0.0
    %2305 = vmatprep.subr.mxu0 0.0
    %2306 = vmatpush2.msra.mxu0 0.0
    %2307 = vmatprep.subr.mxu0 0.0
    %2308 = vmatpush2.msra.mxu0 0.0
    %2309 = vmatprep.subr.mxu0 0.0
    %2310 = vmatpush2.msra.mxu0 0.0
    %2311 = vmatprep.subr.mxu0 0.0
    %2312 = vmatpush2.msra.mxu0 0.0
    %2313 = vmatprep.subr.mxu0 0.0
    %2314 = vmatpush2.msra.mxu0 0.0
    %2315 = vmatprep.subr.mxu0 0.0
    %2316 = vmatpush2.msra.mxu0 0.0
    %2317 = vmatprep.subr.mxu0 0.0
    %2318 = vmatpush2.msra.mxu0 0.0
    %2319 = vmatprep.subr.mxu0 0.0
    %2320 = vmatpush2.msra.mxu0 0.0
    %2321 = vmatprep.subr.mxu0 0.0
    %2322 = vmatpush2.msra.mxu0 0.0
    %2323 = vmatprep.subr.mxu0 0.0
    %2324 = vmatpush2.msra.mxu0 0.0
    %2325 = vmatprep.subr.mxu0 0.0
    %2326 = vmatpush2.msra.mxu0 0.0
    %2327 = vmatprep.subr.mxu0 0.0
    %2328 = vmatpush2.msra.mxu0 0.0
    %2329 = vmatprep.subr.mxu0 0.0
    %2330 = vmatpush2.msra.mxu0 0.0
    %2331 = vmatprep.mubr.f32.mxu0 0.0
    %v2332 = vand.u32 %v105, 4294901760
    %v2333 = vsub.f32 %v105, %v2332
    %2334 = vmatmul.mubr.f32.gmra.mxu0 %v2333
    %v2335 = vpop.f32.mrf.mxu0
    %v2336 = vadd.f32 %v2235, %v2335
    %v2337 = vpop.f32.mrf.mxu0
    %v2338 = vadd.f32 %v2237, %v2337
    %2339 = vdwg.mxu0
    %2340 = vmatprep.subr.mxu0 0.0
    %2341 = vmatpush1.msra.mxu0 0.0
    %2342 = vmatprep.subr.mxu0 0.0
    %2343 = vmatpush1.msra.mxu0 0.0
    %2344 = vmatprep.subr.mxu0 0.0
    %2345 = vmatpush1.msra.mxu0 0.0
    %2346 = vmatprep.subr.mxu0 0.0
    %2347 = vmatpush1.msra.mxu0 0.0
    %2348 = vmatprep.subr.mxu0 0.0
    %2349 = vmatpush1.msra.mxu0 0.0
    %2350 = vmatprep.subr.mxu0 0.0
    %2351 = vmatpush1.msra.mxu0 0.0
    %2352 = vmatprep.subr.mxu0 0.0
    %2353 = vmatpush1.msra.mxu0 0.0
    %2354 = vmatprep.subr.mxu0 0.0
    %2355 = vmatpush1.msra.mxu0 0.0
    %2356 = vmatprep.subr.mxu0 0.0
    %2357 = vmatpush1.msra.mxu0 0.0
    %v2358 = vand.u32 %v130, 4294901760
    %2359 = vmatprep.subr.mxu0 %v2358
    %v2360 = vand.u32 %v127, 4294901760
    %2361 = vmatpush1.msra.mxu0 %v2360
    %v2362 = vand.u32 %v86, 4294901760
    %2363 = vmatprep.subr.mxu0 %v2362
    %v2364 = vand.u32 %v85, 4294901760
    %2365 = vmatpush1.msra.mxu0 %v2364
    %v2366 = vand.u32 %v74, 4294901760
    %2367 = vmatprep.subr.mxu0 %v2366
    %v2368 = vand.u32 %v73, 4294901760
    %2369 = vmatpush1.msra.mxu0 %v2368
    %v2370 = vand.u32 %v62, 4294901760
    %2371 = vmatprep.subr.mxu0 %v2370
    %v2372 = vand.u32 %v61, 4294901760
    %2373 = vmatpush1.msra.mxu0 %v2372
    %v2374 = vand.u32 %v50, 4294901760
    %2375 = vmatprep.subr.mxu0 %v2374
    %v2376 = vand.u32 %v49, 4294901760
    %2377 = vmatpush1.msra.mxu0 %v2376
    %v2378 = vand.u32 %v38, 4294901760
    %2379 = vmatprep.subr.mxu0 %v2378
    %v2380 = vand.u32 %v37, 4294901760
    %2381 = vmatpush1.msra.mxu0 %v2380
    %v2382 = vand.u32 %v26, 4294901760
    %2383 = vmatprep.subr.mxu0 %v2382
    %v2384 = vand.u32 %v25, 4294901760
    %2385 = vmatpush1.msra.mxu0 %v2384
    %2386 = vmatprep.subr.mxu0 0.0
    %2387 = vmatpush2.msra.mxu0 0.0
    %2388 = vmatprep.subr.mxu0 0.0
    %2389 = vmatpush2.msra.mxu0 0.0
    %2390 = vmatprep.subr.mxu0 0.0
    %2391 = vmatpush2.msra.mxu0 0.0
    %2392 = vmatprep.subr.mxu0 0.0
    %2393 = vmatpush2.msra.mxu0 0.0
    %2394 = vmatprep.subr.mxu0 0.0
    %2395 = vmatpush2.msra.mxu0 0.0
    %2396 = vmatprep.subr.mxu0 0.0
    %2397 = vmatpush2.msra.mxu0 0.0
    %2398 = vmatprep.subr.mxu0 0.0
    %2399 = vmatpush2.msra.mxu0 0.0
    %2400 = vmatprep.subr.mxu0 0.0
    %2401 = vmatpush2.msra.mxu0 0.0
    %2402 = vmatprep.subr.mxu0 0.0
    %2403 = vmatpush2.msra.mxu0 0.0
    %2404 = vmatprep.subr.mxu0 0.0
    %2405 = vmatpush2.msra.mxu0 0.0
    %2406 = vmatprep.subr.mxu0 0.0
    %2407 = vmatpush2.msra.mxu0 0.0
    %2408 = vmatprep.subr.mxu0 0.0
    %2409 = vmatpush2.msra.mxu0 0.0
    %2410 = vmatprep.subr.mxu0 0.0
    %2411 = vmatpush2.msra.mxu0 0.0
    %2412 = vmatprep.subr.mxu0 0.0
    %2413 = vmatpush2.msra.mxu0 0.0
    %2414 = vmatprep.subr.mxu0 0.0
    %2415 = vmatpush2.msra.mxu0 0.0
    %2416 = vmatprep.subr.mxu0 0.0
    %2417 = vmatpush2.msra.mxu0 0.0
    %2418 = vmatprep.mubr.f32.mxu0 0.0
    %v2419 = vand.u32 %v105, 4294901760
    %v2420 = vsub.f32 %v105, %v2419
    %v2421 = vand.u32 %v2420, 4294901760
    %2422 = vmatmul.mubr.f32.gmra.mxu0 %v2421
    %v2423 = vpop.f32.mrf.mxu0
    %v2424 = vadd.f32 %v2336, %v2423
    %v2425 = vpop.f32.mrf.mxu0
    %v2426 = vadd.f32 %v2338, %v2425
    %2427 = vdwg.mxu0
    %2428 = vmatprep.subr.mxu0 0.0
    %2429 = vmatpush1.msra.mxu0 0.0
    %2430 = vmatprep.subr.mxu0 0.0
    %2431 = vmatpush1.msra.mxu0 0.0
    %2432 = vmatprep.subr.mxu0 0.0
    %2433 = vmatpush1.msra.mxu0 0.0
    %2434 = vmatprep.subr.mxu0 0.0
    %2435 = vmatpush1.msra.mxu0 0.0
    %2436 = vmatprep.subr.mxu0 0.0
    %2437 = vmatpush1.msra.mxu0 0.0
    %2438 = vmatprep.subr.mxu0 0.0
    %2439 = vmatpush1.msra.mxu0 0.0
    %2440 = vmatprep.subr.mxu0 0.0
    %2441 = vmatpush1.msra.mxu0 0.0
    %2442 = vmatprep.subr.mxu0 0.0
    %2443 = vmatpush1.msra.mxu0 0.0
    %2444 = vmatprep.subr.mxu0 0.0
    %2445 = vmatpush1.msra.mxu0 0.0
    %v2446 = vand.u32 %v130, 4294901760
    %v2447 = vsub.f32 %v130, %v2446
    %v2448 = vand.u32 %v2447, 4294901760
    %2449 = vmatprep.subr.mxu0 %v2448
    %v2450 = vand.u32 %v127, 4294901760
    %v2451 = vsub.f32 %v127, %v2450
    %v2452 = vand.u32 %v2451, 4294901760
    %2453 = vmatpush1.msra.mxu0 %v2452
    %v2454 = vand.u32 %v86, 4294901760
    %v2455 = vsub.f32 %v86, %v2454
    %v2456 = vand.u32 %v2455, 4294901760
    %2457 = vmatprep.subr.mxu0 %v2456
    %v2458 = vand.u32 %v85, 4294901760
    %v2459 = vsub.f32 %v85, %v2458
    %v2460 = vand.u32 %v2459, 4294901760
    %2461 = vmatpush1.msra.mxu0 %v2460
    %v2462 = vand.u32 %v74, 4294901760
    %v2463 = vsub.f32 %v74, %v2462
    %v2464 = vand.u32 %v2463, 4294901760
    %2465 = vmatprep.subr.mxu0 %v2464
    %v2466 = vand.u32 %v73, 4294901760
    %v2467 = vsub.f32 %v73, %v2466
    %v2468 = vand.u32 %v2467, 4294901760
    %2469 = vmatpush1.msra.mxu0 %v2468
    %v2470 = vand.u32 %v62, 4294901760
    %v2471 = vsub.f32 %v62, %v2470
    %v2472 = vand.u32 %v2471, 4294901760
    %2473 = vmatprep.subr.mxu0 %v2472
    %v2474 = vand.u32 %v61, 4294901760
    %v2475 = vsub.f32 %v61, %v2474
    %v2476 = vand.u32 %v2475, 4294901760
    %2477 = vmatpush1.msra.mxu0 %v2476
    %v2478 = vand.u32 %v50, 4294901760
    %v2479 = vsub.f32 %v50, %v2478
    %v2480 = vand.u32 %v2479, 4294901760
    %2481 = vmatprep.subr.mxu0 %v2480
    %v2482 = vand.u32 %v49, 4294901760
    %v2483 = vsub.f32 %v49, %v2482
    %v2484 = vand.u32 %v2483, 4294901760
    %2485 = vmatpush1.msra.mxu0 %v2484
    %v2486 = vand.u32 %v38, 4294901760
    %v2487 = vsub.f32 %v38, %v2486
    %v2488 = vand.u32 %v2487, 4294901760
    %2489 = vmatprep.subr.mxu0 %v2488
    %v2490 = vand.u32 %v37, 4294901760
    %v2491 = vsub.f32 %v37, %v2490
    %v2492 = vand.u32 %v2491, 4294901760
    %2493 = vmatpush1.msra.mxu0 %v2492
    %v2494 = vand.u32 %v26, 4294901760
    %v2495 = vsub.f32 %v26, %v2494
    %v2496 = vand.u32 %v2495, 4294901760
    %2497 = vmatprep.subr.mxu0 %v2496
    %v2498 = vand.u32 %v25, 4294901760
    %v2499 = vsub.f32 %v25, %v2498
    %v2500 = vand.u32 %v2499, 4294901760
    %2501 = vmatpush1.msra.mxu0 %v2500
    %2502 = vmatprep.subr.mxu0 0.0
    %2503 = vmatpush2.msra.mxu0 0.0
    %2504 = vmatprep.subr.mxu0 0.0
    %2505 = vmatpush2.msra.mxu0 0.0
    %2506 = vmatprep.subr.mxu0 0.0
    %2507 = vmatpush2.msra.mxu0 0.0
    %2508 = vmatprep.subr.mxu0 0.0
    %2509 = vmatpush2.msra.mxu0 0.0
    %2510 = vmatprep.subr.mxu0 0.0
    %2511 = vmatpush2.msra.mxu0 0.0
    %2512 = vmatprep.subr.mxu0 0.0
    %2513 = vmatpush2.msra.mxu0 0.0
    %2514 = vmatprep.subr.mxu0 0.0
    %2515 = vmatpush2.msra.mxu0 0.0
    %2516 = vmatprep.subr.mxu0 0.0
    %2517 = vmatpush2.msra.mxu0 0.0
    %2518 = vmatprep.subr.mxu0 0.0
    %2519 = vmatpush2.msra.mxu0 0.0
    %2520 = vmatprep.subr.mxu0 0.0
    %2521 = vmatpush2.msra.mxu0 0.0
    %2522 = vmatprep.subr.mxu0 0.0
    %2523 = vmatpush2.msra.mxu0 0.0
    %2524 = vmatprep.subr.mxu0 0.0
    %2525 = vmatpush2.msra.mxu0 0.0
    %2526 = vmatprep.subr.mxu0 0.0
    %2527 = vmatpush2.msra.mxu0 0.0
    %2528 = vmatprep.subr.mxu0 0.0
    %2529 = vmatpush2.msra.mxu0 0.0
    %2530 = vmatprep.subr.mxu0 0.0
    %2531 = vmatpush2.msra.mxu0 0.0
    %2532 = vmatprep.subr.mxu0 0.0
    %2533 = vmatpush2.msra.mxu0 0.0
    %2534 = vmatprep.mubr.f32.mxu0 0.0
    %v2535 = vand.u32 %v105, 4294901760
    %2536 = vmatmul.mubr.f32.gmra.mxu0 %v2535
    %v2537 = vpop.f32.mrf.mxu0
    %v2538 = vadd.f32 %v2424, %v2537
    %v2539 = vpop.f32.mrf.mxu0
    %v2540 = vadd.f32 %v2426, %v2539
    %2541 = vdwg.mxu0
    %2542 = vmatprep.subr.mxu0 0.0
    %2543 = vmatpush1.msra.mxu0 0.0
    %2544 = vmatprep.subr.mxu0 0.0
    %2545 = vmatpush1.msra.mxu0 0.0
    %2546 = vmatprep.subr.mxu0 0.0
    %2547 = vmatpush1.msra.mxu0 0.0
    %2548 = vmatprep.subr.mxu0 0.0
    %2549 = vmatpush1.msra.mxu0 0.0
    %2550 = vmatprep.subr.mxu0 0.0
    %2551 = vmatpush1.msra.mxu0 0.0
    %2552 = vmatprep.subr.mxu0 0.0
    %2553 = vmatpush1.msra.mxu0 0.0
    %2554 = vmatprep.subr.mxu0 0.0
    %2555 = vmatpush1.msra.mxu0 0.0
    %2556 = vmatprep.subr.mxu0 0.0
    %2557 = vmatpush1.msra.mxu0 0.0
    %2558 = vmatprep.subr.mxu0 0.0
    %2559 = vmatpush1.msra.mxu0 0.0
    %v2560 = vand.u32 %v130, 4294901760
    %2561 = vmatprep.subr.mxu0 %v2560
    %v2562 = vand.u32 %v127, 4294901760
    %2563 = vmatpush1.msra.mxu0 %v2562
    %v2564 = vand.u32 %v86, 4294901760
    %2565 = vmatprep.subr.mxu0 %v2564
    %v2566 = vand.u32 %v85, 4294901760
    %2567 = vmatpush1.msra.mxu0 %v2566
    %v2568 = vand.u32 %v74, 4294901760
    %2569 = vmatprep.subr.mxu0 %v2568
    %v2570 = vand.u32 %v73, 4294901760
    %2571 = vmatpush1.msra.mxu0 %v2570
    %v2572 = vand.u32 %v62, 4294901760
    %2573 = vmatprep.subr.mxu0 %v2572
    %v2574 = vand.u32 %v61, 4294901760
    %2575 = vmatpush1.msra.mxu0 %v2574
    %v2576 = vand.u32 %v50, 4294901760
    %2577 = vmatprep.subr.mxu0 %v2576
    %v2578 = vand.u32 %v49, 4294901760
    %2579 = vmatpush1.msra.mxu0 %v2578
    %v2580 = vand.u32 %v38, 4294901760
    %2581 = vmatprep.subr.mxu0 %v2580
    %v2582 = vand.u32 %v37, 4294901760
    %2583 = vmatpush1.msra.mxu0 %v2582
    %v2584 = vand.u32 %v26, 4294901760
    %2585 = vmatprep.subr.mxu0 %v2584
    %v2586 = vand.u32 %v25, 4294901760
    %2587 = vmatpush1.msra.mxu0 %v2586
    %2588 = vmatprep.subr.mxu0 0.0
    %2589 = vmatpush2.msra.mxu0 0.0
    %2590 = vmatprep.subr.mxu0 0.0
    %2591 = vmatpush2.msra.mxu0 0.0
    %2592 = vmatprep.subr.mxu0 0.0
    %2593 = vmatpush2.msra.mxu0 0.0
    %2594 = vmatprep.subr.mxu0 0.0
    %2595 = vmatpush2.msra.mxu0 0.0
    %2596 = vmatprep.subr.mxu0 0.0
    %2597 = vmatpush2.msra.mxu0 0.0
    %2598 = vmatprep.subr.mxu0 0.0
    %2599 = vmatpush2.msra.mxu0 0.0
    %2600 = vmatprep.subr.mxu0 0.0
    %2601 = vmatpush2.msra.mxu0 0.0
    %2602 = vmatprep.subr.mxu0 0.0
    %2603 = vmatpush2.msra.mxu0 0.0
    %2604 = vmatprep.subr.mxu0 0.0
    %2605 = vmatpush2.msra.mxu0 0.0
    %2606 = vmatprep.subr.mxu0 0.0
    %2607 = vmatpush2.msra.mxu0 0.0
    %2608 = vmatprep.subr.mxu0 0.0
    %2609 = vmatpush2.msra.mxu0 0.0
    %2610 = vmatprep.subr.mxu0 0.0
    %2611 = vmatpush2.msra.mxu0 0.0
    %2612 = vmatprep.subr.mxu0 0.0
    %2613 = vmatpush2.msra.mxu0 0.0
    %2614 = vmatprep.subr.mxu0 0.0
    %2615 = vmatpush2.msra.mxu0 0.0
    %2616 = vmatprep.subr.mxu0 0.0
    %2617 = vmatpush2.msra.mxu0 0.0
    %2618 = vmatprep.subr.mxu0 0.0
    %2619 = vmatpush2.msra.mxu0 0.0
    %2620 = vmatprep.mubr.f32.mxu0 0.0
    %v2621 = vand.u32 %v105, 4294901760
    %2622 = vmatmul.mubr.f32.gmra.mxu0 %v2621
    %v2623 = vpop.f32.mrf.mxu0
    %v2624 = vadd.f32 %v2538, %v2623
    %v2625 = vpop.f32.mrf.mxu0
    %v2626 = vadd.f32 %v2540, %v2625
    %2627 = vdwg.mxu0
    %2628 = vmatprep.subr.mxu0 0.0
    %2629 = vmatpush1.msra.mxu0 0.0
    %2630 = vmatprep.subr.mxu0 0.0
    %2631 = vmatpush1.msra.mxu0 0.0
    %2632 = vmatprep.subr.mxu0 0.0
    %2633 = vmatpush1.msra.mxu0 0.0
    %2634 = vmatprep.subr.mxu0 0.0
    %2635 = vmatpush1.msra.mxu0 0.0
    %2636 = vmatprep.subr.mxu0 0.0
    %2637 = vmatpush1.msra.mxu0 0.0
    %2638 = vmatprep.subr.mxu0 0.0
    %2639 = vmatpush1.msra.mxu0 0.0
    %2640 = vmatprep.subr.mxu0 0.0
    %2641 = vmatpush1.msra.mxu0 0.0
    %2642 = vmatprep.subr.mxu0 0.0
    %2643 = vmatpush1.msra.mxu0 0.0
    %2644 = vmatprep.subr.mxu0 0.0
    %2645 = vmatpush1.msra.mxu0 0.0
    %v2646 = vand.u32 %v136, 4294901760
    %2647 = vmatprep.subr.mxu0 %v2646
    %v2648 = vand.u32 %v133, 4294901760
    %2649 = vmatpush1.msra.mxu0 %v2648
    %v2650 = vand.u32 %v88, 4294901760
    %2651 = vmatprep.subr.mxu0 %v2650
    %v2652 = vand.u32 %v87, 4294901760
    %2653 = vmatpush1.msra.mxu0 %v2652
    %v2654 = vand.u32 %v76, 4294901760
    %2655 = vmatprep.subr.mxu0 %v2654
    %v2656 = vand.u32 %v75, 4294901760
    %2657 = vmatpush1.msra.mxu0 %v2656
    %v2658 = vand.u32 %v64, 4294901760
    %2659 = vmatprep.subr.mxu0 %v2658
    %v2660 = vand.u32 %v63, 4294901760
    %2661 = vmatpush1.msra.mxu0 %v2660
    %v2662 = vand.u32 %v52, 4294901760
    %2663 = vmatprep.subr.mxu0 %v2662
    %v2664 = vand.u32 %v51, 4294901760
    %2665 = vmatpush1.msra.mxu0 %v2664
    %v2666 = vand.u32 %v40, 4294901760
    %2667 = vmatprep.subr.mxu0 %v2666
    %v2668 = vand.u32 %v39, 4294901760
    %2669 = vmatpush1.msra.mxu0 %v2668
    %v2670 = vand.u32 %v28, 4294901760
    %2671 = vmatprep.subr.mxu0 %v2670
    %v2672 = vand.u32 %v27, 4294901760
    %2673 = vmatpush1.msra.mxu0 %v2672
    %2674 = vmatprep.subr.mxu0 0.0
    %2675 = vmatpush2.msra.mxu0 0.0
    %2676 = vmatprep.subr.mxu0 0.0
    %2677 = vmatpush2.msra.mxu0 0.0
    %2678 = vmatprep.subr.mxu0 0.0
    %2679 = vmatpush2.msra.mxu0 0.0
    %2680 = vmatprep.subr.mxu0 0.0
    %2681 = vmatpush2.msra.mxu0 0.0
    %2682 = vmatprep.subr.mxu0 0.0
    %2683 = vmatpush2.msra.mxu0 0.0
    %2684 = vmatprep.subr.mxu0 0.0
    %2685 = vmatpush2.msra.mxu0 0.0
    %2686 = vmatprep.subr.mxu0 0.0
    %2687 = vmatpush2.msra.mxu0 0.0
    %2688 = vmatprep.subr.mxu0 0.0
    %2689 = vmatpush2.msra.mxu0 0.0
    %2690 = vmatprep.subr.mxu0 0.0
    %2691 = vmatpush2.msra.mxu0 0.0
    %2692 = vmatprep.subr.mxu0 0.0
    %2693 = vmatpush2.msra.mxu0 0.0
    %2694 = vmatprep.subr.mxu0 0.0
    %2695 = vmatpush2.msra.mxu0 0.0
    %2696 = vmatprep.subr.mxu0 0.0
    %2697 = vmatpush2.msra.mxu0 0.0
    %2698 = vmatprep.subr.mxu0 0.0
    %2699 = vmatpush2.msra.mxu0 0.0
    %2700 = vmatprep.subr.mxu0 0.0
    %2701 = vmatpush2.msra.mxu0 0.0
    %2702 = vmatprep.subr.mxu0 0.0
    %2703 = vmatpush2.msra.mxu0 0.0
    %2704 = vmatprep.subr.mxu0 0.0
    %2705 = vmatpush2.msra.mxu0 0.0
    %2706 = vmatprep.mubr.f32.mxu0 0.0
    %v2707 = vand.u32 %v105, 4294901760
    %v2708 = vsub.f32 %v105, %v2707
    %v2709 = vand.u32 %v2708, 4294901760
    %v2710 = vsub.f32 %v2708, %v2709
    %v2711 = vand.u32 %v2710, 4294901760
    %2712 = vmatmul.mubr.f32.gmra.mxu0 %v2711
    %v2713 = vpop.f32.mrf.mxu0
    %v2714 = vadd.f32 0.0, %v2713
    %v2715 = vpop.f32.mrf.mxu0
    %v2716 = vadd.f32 0.0, %v2715
    %2717 = vdwg.mxu0
    %2718 = vmatprep.subr.mxu0 0.0
    %2719 = vmatpush1.msra.mxu0 0.0
    %2720 = vmatprep.subr.mxu0 0.0
    %2721 = vmatpush1.msra.mxu0 0.0
    %2722 = vmatprep.subr.mxu0 0.0
    %2723 = vmatpush1.msra.mxu0 0.0
    %2724 = vmatprep.subr.mxu0 0.0
    %2725 = vmatpush1.msra.mxu0 0.0
    %2726 = vmatprep.subr.mxu0 0.0
    %2727 = vmatpush1.msra.mxu0 0.0
    %2728 = vmatprep.subr.mxu0 0.0
    %2729 = vmatpush1.msra.mxu0 0.0
    %2730 = vmatprep.subr.mxu0 0.0
    %2731 = vmatpush1.msra.mxu0 0.0
    %2732 = vmatprep.subr.mxu0 0.0
    %2733 = vmatpush1.msra.mxu0 0.0
    %2734 = vmatprep.subr.mxu0 0.0
    %2735 = vmatpush1.msra.mxu0 0.0
    %v2736 = vand.u32 %v136, 4294901760
    %v2737 = vsub.f32 %v136, %v2736
    %v2738 = vand.u32 %v2737, 4294901760
    %v2739 = vsub.f32 %v2737, %v2738
    %v2740 = vand.u32 %v2739, 4294901760
    %2741 = vmatprep.subr.mxu0 %v2740
    %v2742 = vand.u32 %v133, 4294901760
    %v2743 = vsub.f32 %v133, %v2742
    %v2744 = vand.u32 %v2743, 4294901760
    %v2745 = vsub.f32 %v2743, %v2744
    %v2746 = vand.u32 %v2745, 4294901760
    %2747 = vmatpush1.msra.mxu0 %v2746
    %v2748 = vand.u32 %v88, 4294901760
    %v2749 = vsub.f32 %v88, %v2748
    %v2750 = vand.u32 %v2749, 4294901760
    %v2751 = vsub.f32 %v2749, %v2750
    %v2752 = vand.u32 %v2751, 4294901760
    %2753 = vmatprep.subr.mxu0 %v2752
    %v2754 = vand.u32 %v87, 4294901760
    %v2755 = vsub.f32 %v87, %v2754
    %v2756 = vand.u32 %v2755, 4294901760
    %v2757 = vsub.f32 %v2755, %v2756
    %v2758 = vand.u32 %v2757, 4294901760
    %2759 = vmatpush1.msra.mxu0 %v2758
    %v2760 = vand.u32 %v76, 4294901760
    %v2761 = vsub.f32 %v76, %v2760
    %v2762 = vand.u32 %v2761, 4294901760
    %v2763 = vsub.f32 %v2761, %v2762
    %v2764 = vand.u32 %v2763, 4294901760
    %2765 = vmatprep.subr.mxu0 %v2764
    %v2766 = vand.u32 %v75, 4294901760
    %v2767 = vsub.f32 %v75, %v2766
    %v2768 = vand.u32 %v2767, 4294901760
    %v2769 = vsub.f32 %v2767, %v2768
    %v2770 = vand.u32 %v2769, 4294901760
    %2771 = vmatpush1.msra.mxu0 %v2770
    %v2772 = vand.u32 %v64, 4294901760
    %v2773 = vsub.f32 %v64, %v2772
    %v2774 = vand.u32 %v2773, 4294901760
    %v2775 = vsub.f32 %v2773, %v2774
    %v2776 = vand.u32 %v2775, 4294901760
    %2777 = vmatprep.subr.mxu0 %v2776
    %v2778 = vand.u32 %v63, 4294901760
    %v2779 = vsub.f32 %v63, %v2778
    %v2780 = vand.u32 %v2779, 4294901760
    %v2781 = vsub.f32 %v2779, %v2780
    %v2782 = vand.u32 %v2781, 4294901760
    %2783 = vmatpush1.msra.mxu0 %v2782
    %v2784 = vand.u32 %v52, 4294901760
    %v2785 = vsub.f32 %v52, %v2784
    %v2786 = vand.u32 %v2785, 4294901760
    %v2787 = vsub.f32 %v2785, %v2786
    %v2788 = vand.u32 %v2787, 4294901760
    %2789 = vmatprep.subr.mxu0 %v2788
    %v2790 = vand.u32 %v51, 4294901760
    %v2791 = vsub.f32 %v51, %v2790
    %v2792 = vand.u32 %v2791, 4294901760
    %v2793 = vsub.f32 %v2791, %v2792
    %v2794 = vand.u32 %v2793, 4294901760
    %2795 = vmatpush1.msra.mxu0 %v2794
    %v2796 = vand.u32 %v40, 4294901760
    %v2797 = vsub.f32 %v40, %v2796
    %v2798 = vand.u32 %v2797, 4294901760
    %v2799 = vsub.f32 %v2797, %v2798
    %v2800 = vand.u32 %v2799, 4294901760
    %2801 = vmatprep.subr.mxu0 %v2800
    %v2802 = vand.u32 %v39, 4294901760
    %v2803 = vsub.f32 %v39, %v2802
    %v2804 = vand.u32 %v2803, 4294901760
    %v2805 = vsub.f32 %v2803, %v2804
    %v2806 = vand.u32 %v2805, 4294901760
    %2807 = vmatpush1.msra.mxu0 %v2806
    %v2808 = vand.u32 %v28, 4294901760
    %v2809 = vsub.f32 %v28, %v2808
    %v2810 = vand.u32 %v2809, 4294901760
    %v2811 = vsub.f32 %v2809, %v2810
    %v2812 = vand.u32 %v2811, 4294901760
    %2813 = vmatprep.subr.mxu0 %v2812
    %v2814 = vand.u32 %v27, 4294901760
    %v2815 = vsub.f32 %v27, %v2814
    %v2816 = vand.u32 %v2815, 4294901760
    %v2817 = vsub.f32 %v2815, %v2816
    %v2818 = vand.u32 %v2817, 4294901760
    %2819 = vmatpush1.msra.mxu0 %v2818
    %2820 = vmatprep.subr.mxu0 0.0
    %2821 = vmatpush2.msra.mxu0 0.0
    %2822 = vmatprep.subr.mxu0 0.0
    %2823 = vmatpush2.msra.mxu0 0.0
    %2824 = vmatprep.subr.mxu0 0.0
    %2825 = vmatpush2.msra.mxu0 0.0
    %2826 = vmatprep.subr.mxu0 0.0
    %2827 = vmatpush2.msra.mxu0 0.0
    %2828 = vmatprep.subr.mxu0 0.0
    %2829 = vmatpush2.msra.mxu0 0.0
    %2830 = vmatprep.subr.mxu0 0.0
    %2831 = vmatpush2.msra.mxu0 0.0
    %2832 = vmatprep.subr.mxu0 0.0
    %2833 = vmatpush2.msra.mxu0 0.0
    %2834 = vmatprep.subr.mxu0 0.0
    %2835 = vmatpush2.msra.mxu0 0.0
    %2836 = vmatprep.subr.mxu0 0.0
    %2837 = vmatpush2.msra.mxu0 0.0
    %2838 = vmatprep.subr.mxu0 0.0
    %2839 = vmatpush2.msra.mxu0 0.0
    %2840 = vmatprep.subr.mxu0 0.0
    %2841 = vmatpush2.msra.mxu0 0.0
    %2842 = vmatprep.subr.mxu0 0.0
    %2843 = vmatpush2.msra.mxu0 0.0
    %2844 = vmatprep.subr.mxu0 0.0
    %2845 = vmatpush2.msra.mxu0 0.0
    %2846 = vmatprep.subr.mxu0 0.0
    %2847 = vmatpush2.msra.mxu0 0.0
    %2848 = vmatprep.subr.mxu0 0.0
    %2849 = vmatpush2.msra.mxu0 0.0
    %2850 = vmatprep.subr.mxu0 0.0
    %2851 = vmatpush2.msra.mxu0 0.0
    %2852 = vmatprep.mubr.f32.mxu0 0.0
    %v2853 = vand.u32 %v105, 4294901760
    %2854 = vmatmul.mubr.f32.gmra.mxu0 %v2853
    %v2855 = vpop.f32.mrf.mxu0
    %v2856 = vadd.f32 %v2714, %v2855
    %v2857 = vpop.f32.mrf.mxu0
    %v2858 = vadd.f32 %v2716, %v2857
    %2859 = vdwg.mxu0
    %2860 = vmatprep.subr.mxu0 0.0
    %2861 = vmatpush1.msra.mxu0 0.0
    %2862 = vmatprep.subr.mxu0 0.0
    %2863 = vmatpush1.msra.mxu0 0.0
    %2864 = vmatprep.subr.mxu0 0.0
    %2865 = vmatpush1.msra.mxu0 0.0
    %2866 = vmatprep.subr.mxu0 0.0
    %2867 = vmatpush1.msra.mxu0 0.0
    %2868 = vmatprep.subr.mxu0 0.0
    %2869 = vmatpush1.msra.mxu0 0.0
    %2870 = vmatprep.subr.mxu0 0.0
    %2871 = vmatpush1.msra.mxu0 0.0
    %2872 = vmatprep.subr.mxu0 0.0
    %2873 = vmatpush1.msra.mxu0 0.0
    %2874 = vmatprep.subr.mxu0 0.0
    %2875 = vmatpush1.msra.mxu0 0.0
    %2876 = vmatprep.subr.mxu0 0.0
    %2877 = vmatpush1.msra.mxu0 0.0
    %v2878 = vand.u32 %v136, 4294901760
    %v2879 = vsub.f32 %v136, %v2878
    %2880 = vmatprep.subr.mxu0 %v2879
    %v2881 = vand.u32 %v133, 4294901760
    %v2882 = vsub.f32 %v133, %v2881
    %2883 = vmatpush1.msra.mxu0 %v2882
    %v2884 = vand.u32 %v88, 4294901760
    %v2885 = vsub.f32 %v88, %v2884
    %2886 = vmatprep.subr.mxu0 %v2885
    %v2887 = vand.u32 %v87, 4294901760
    %v2888 = vsub.f32 %v87, %v2887
    %2889 = vmatpush1.msra.mxu0 %v2888
    %v2890 = vand.u32 %v76, 4294901760
    %v2891 = vsub.f32 %v76, %v2890
    %2892 = vmatprep.subr.mxu0 %v2891
    %v2893 = vand.u32 %v75, 4294901760
    %v2894 = vsub.f32 %v75, %v2893
    %2895 = vmatpush1.msra.mxu0 %v2894
    %v2896 = vand.u32 %v64, 4294901760
    %v2897 = vsub.f32 %v64, %v2896
    %2898 = vmatprep.subr.mxu0 %v2897
    %v2899 = vand.u32 %v63, 4294901760
    %v2900 = vsub.f32 %v63, %v2899
    %2901 = vmatpush1.msra.mxu0 %v2900
    %v2902 = vand.u32 %v52, 4294901760
    %v2903 = vsub.f32 %v52, %v2902
    %2904 = vmatprep.subr.mxu0 %v2903
    %v2905 = vand.u32 %v51, 4294901760
    %v2906 = vsub.f32 %v51, %v2905
    %2907 = vmatpush1.msra.mxu0 %v2906
    %v2908 = vand.u32 %v40, 4294901760
    %v2909 = vsub.f32 %v40, %v2908
    %2910 = vmatprep.subr.mxu0 %v2909
    %v2911 = vand.u32 %v39, 4294901760
    %v2912 = vsub.f32 %v39, %v2911
    %2913 = vmatpush1.msra.mxu0 %v2912
    %v2914 = vand.u32 %v28, 4294901760
    %v2915 = vsub.f32 %v28, %v2914
    %2916 = vmatprep.subr.mxu0 %v2915
    %v2917 = vand.u32 %v27, 4294901760
    %v2918 = vsub.f32 %v27, %v2917
    %2919 = vmatpush1.msra.mxu0 %v2918
    %2920 = vmatprep.subr.mxu0 0.0
    %2921 = vmatpush2.msra.mxu0 0.0
    %2922 = vmatprep.subr.mxu0 0.0
    %2923 = vmatpush2.msra.mxu0 0.0
    %2924 = vmatprep.subr.mxu0 0.0
    %2925 = vmatpush2.msra.mxu0 0.0
    %2926 = vmatprep.subr.mxu0 0.0
    %2927 = vmatpush2.msra.mxu0 0.0
    %2928 = vmatprep.subr.mxu0 0.0
    %2929 = vmatpush2.msra.mxu0 0.0
    %2930 = vmatprep.subr.mxu0 0.0
    %2931 = vmatpush2.msra.mxu0 0.0
    %2932 = vmatprep.subr.mxu0 0.0
    %2933 = vmatpush2.msra.mxu0 0.0
    %2934 = vmatprep.subr.mxu0 0.0
    %2935 = vmatpush2.msra.mxu0 0.0
    %2936 = vmatprep.subr.mxu0 0.0
    %2937 = vmatpush2.msra.mxu0 0.0
    %2938 = vmatprep.subr.mxu0 0.0
    %2939 = vmatpush2.msra.mxu0 0.0
    %2940 = vmatprep.subr.mxu0 0.0
    %2941 = vmatpush2.msra.mxu0 0.0
    %2942 = vmatprep.subr.mxu0 0.0
    %2943 = vmatpush2.msra.mxu0 0.0
    %2944 = vmatprep.subr.mxu0 0.0
    %2945 = vmatpush2.msra.mxu0 0.0
    %2946 = vmatprep.subr.mxu0 0.0
    %2947 = vmatpush2.msra.mxu0 0.0
    %2948 = vmatprep.subr.mxu0 0.0
    %2949 = vmatpush2.msra.mxu0 0.0
    %2950 = vmatprep.subr.mxu0 0.0
    %2951 = vmatpush2.msra.mxu0 0.0
    %2952 = vmatprep.mubr.f32.mxu0 0.0
    %v2953 = vand.u32 %v105, 4294901760
    %v2954 = vsub.f32 %v105, %v2953
    %2955 = vmatmul.mubr.f32.gmra.mxu0 %v2954
    %v2956 = vpop.f32.mrf.mxu0
    %v2957 = vadd.f32 %v2856, %v2956
    %v2958 = vpop.f32.mrf.mxu0
    %v2959 = vadd.f32 %v2858, %v2958
    %2960 = vdwg.mxu0
    %2961 = vmatprep.subr.mxu0 0.0
    %2962 = vmatpush1.msra.mxu0 0.0
    %2963 = vmatprep.subr.mxu0 0.0
    %2964 = vmatpush1.msra.mxu0 0.0
    %2965 = vmatprep.subr.mxu0 0.0
    %2966 = vmatpush1.msra.mxu0 0.0
    %2967 = vmatprep.subr.mxu0 0.0
    %2968 = vmatpush1.msra.mxu0 0.0
    %2969 = vmatprep.subr.mxu0 0.0
    %2970 = vmatpush1.msra.mxu0 0.0
    %2971 = vmatprep.subr.mxu0 0.0
    %2972 = vmatpush1.msra.mxu0 0.0
    %2973 = vmatprep.subr.mxu0 0.0
    %2974 = vmatpush1.msra.mxu0 0.0
    %2975 = vmatprep.subr.mxu0 0.0
    %2976 = vmatpush1.msra.mxu0 0.0
    %2977 = vmatprep.subr.mxu0 0.0
    %2978 = vmatpush1.msra.mxu0 0.0
    %v2979 = vand.u32 %v136, 4294901760
    %2980 = vmatprep.subr.mxu0 %v2979
    %v2981 = vand.u32 %v133, 4294901760
    %2982 = vmatpush1.msra.mxu0 %v2981
    %v2983 = vand.u32 %v88, 4294901760
    %2984 = vmatprep.subr.mxu0 %v2983
    %v2985 = vand.u32 %v87, 4294901760
    %2986 = vmatpush1.msra.mxu0 %v2985
    %v2987 = vand.u32 %v76, 4294901760
    %2988 = vmatprep.subr.mxu0 %v2987
    %v2989 = vand.u32 %v75, 4294901760
    %2990 = vmatpush1.msra.mxu0 %v2989
    %v2991 = vand.u32 %v64, 4294901760
    %2992 = vmatprep.subr.mxu0 %v2991
    %v2993 = vand.u32 %v63, 4294901760
    %2994 = vmatpush1.msra.mxu0 %v2993
    %v2995 = vand.u32 %v52, 4294901760
    %2996 = vmatprep.subr.mxu0 %v2995
    %v2997 = vand.u32 %v51, 4294901760
    %2998 = vmatpush1.msra.mxu0 %v2997
    %v2999 = vand.u32 %v40, 4294901760
    %3000 = vmatprep.subr.mxu0 %v2999
    %v3001 = vand.u32 %v39, 4294901760
    %3002 = vmatpush1.msra.mxu0 %v3001
    %v3003 = vand.u32 %v28, 4294901760
    %3004 = vmatprep.subr.mxu0 %v3003
    %v3005 = vand.u32 %v27, 4294901760
    %3006 = vmatpush1.msra.mxu0 %v3005
    %3007 = vmatprep.subr.mxu0 0.0
    %3008 = vmatpush2.msra.mxu0 0.0
    %3009 = vmatprep.subr.mxu0 0.0
    %3010 = vmatpush2.msra.mxu0 0.0
    %3011 = vmatprep.subr.mxu0 0.0
    %3012 = vmatpush2.msra.mxu0 0.0
    %3013 = vmatprep.subr.mxu0 0.0
    %3014 = vmatpush2.msra.mxu0 0.0
    %3015 = vmatprep.subr.mxu0 0.0
    %3016 = vmatpush2.msra.mxu0 0.0
    %3017 = vmatprep.subr.mxu0 0.0
    %3018 = vmatpush2.msra.mxu0 0.0
    %3019 = vmatprep.subr.mxu0 0.0
    %3020 = vmatpush2.msra.mxu0 0.0
    %3021 = vmatprep.subr.mxu0 0.0
    %3022 = vmatpush2.msra.mxu0 0.0
    %3023 = vmatprep.subr.mxu0 0.0
    %3024 = vmatpush2.msra.mxu0 0.0
    %3025 = vmatprep.subr.mxu0 0.0
    %3026 = vmatpush2.msra.mxu0 0.0
    %3027 = vmatprep.subr.mxu0 0.0
    %3028 = vmatpush2.msra.mxu0 0.0
    %3029 = vmatprep.subr.mxu0 0.0
    %3030 = vmatpush2.msra.mxu0 0.0
    %3031 = vmatprep.subr.mxu0 0.0
    %3032 = vmatpush2.msra.mxu0 0.0
    %3033 = vmatprep.subr.mxu0 0.0
    %3034 = vmatpush2.msra.mxu0 0.0
    %3035 = vmatprep.subr.mxu0 0.0
    %3036 = vmatpush2.msra.mxu0 0.0
    %3037 = vmatprep.subr.mxu0 0.0
    %3038 = vmatpush2.msra.mxu0 0.0
    %3039 = vmatprep.mubr.f32.mxu0 0.0
    %v3040 = vand.u32 %v105, 4294901760
    %v3041 = vsub.f32 %v105, %v3040
    %v3042 = vand.u32 %v3041, 4294901760
    %3043 = vmatmul.mubr.f32.gmra.mxu0 %v3042
    %v3044 = vpop.f32.mrf.mxu0
    %v3045 = vadd.f32 %v2957, %v3044
    %v3046 = vpop.f32.mrf.mxu0
    %v3047 = vadd.f32 %v2959, %v3046
    %3048 = vdwg.mxu0
    %3049 = vmatprep.subr.mxu0 0.0
    %3050 = vmatpush1.msra.mxu0 0.0
    %3051 = vmatprep.subr.mxu0 0.0
    %3052 = vmatpush1.msra.mxu0 0.0
    %3053 = vmatprep.subr.mxu0 0.0
    %3054 = vmatpush1.msra.mxu0 0.0
    %3055 = vmatprep.subr.mxu0 0.0
    %3056 = vmatpush1.msra.mxu0 0.0
    %3057 = vmatprep.subr.mxu0 0.0
    %3058 = vmatpush1.msra.mxu0 0.0
    %3059 = vmatprep.subr.mxu0 0.0
    %3060 = vmatpush1.msra.mxu0 0.0
    %3061 = vmatprep.subr.mxu0 0.0
    %3062 = vmatpush1.msra.mxu0 0.0
    %3063 = vmatprep.subr.mxu0 0.0
    %3064 = vmatpush1.msra.mxu0 0.0
    %3065 = vmatprep.subr.mxu0 0.0
    %3066 = vmatpush1.msra.mxu0 0.0
    %v3067 = vand.u32 %v136, 4294901760
    %v3068 = vsub.f32 %v136, %v3067
    %v3069 = vand.u32 %v3068, 4294901760
    %3070 = vmatprep.subr.mxu0 %v3069
    %v3071 = vand.u32 %v133, 4294901760
    %v3072 = vsub.f32 %v133, %v3071
    %v3073 = vand.u32 %v3072, 4294901760
    %3074 = vmatpush1.msra.mxu0 %v3073
    %v3075 = vand.u32 %v88, 4294901760
    %v3076 = vsub.f32 %v88, %v3075
    %v3077 = vand.u32 %v3076, 4294901760
    %3078 = vmatprep.subr.mxu0 %v3077
    %v3079 = vand.u32 %v87, 4294901760
    %v3080 = vsub.f32 %v87, %v3079
    %v3081 = vand.u32 %v3080, 4294901760
    %3082 = vmatpush1.msra.mxu0 %v3081
    %v3083 = vand.u32 %v76, 4294901760
    %v3084 = vsub.f32 %v76, %v3083
    %v3085 = vand.u32 %v3084, 4294901760
    %3086 = vmatprep.subr.mxu0 %v3085
    %v3087 = vand.u32 %v75, 4294901760
    %v3088 = vsub.f32 %v75, %v3087
    %v3089 = vand.u32 %v3088, 4294901760
    %3090 = vmatpush1.msra.mxu0 %v3089
    %v3091 = vand.u32 %v64, 4294901760
    %v3092 = vsub.f32 %v64, %v3091
    %v3093 = vand.u32 %v3092, 4294901760
    %3094 = vmatprep.subr.mxu0 %v3093
    %v3095 = vand.u32 %v63, 4294901760
    %v3096 = vsub.f32 %v63, %v3095
    %v3097 = vand.u32 %v3096, 4294901760
    %3098 = vmatpush1.msra.mxu0 %v3097
    %v3099 = vand.u32 %v52, 4294901760
    %v3100 = vsub.f32 %v52, %v3099
    %v3101 = vand.u32 %v3100, 4294901760
    %3102 = vmatprep.subr.mxu0 %v3101
    %v3103 = vand.u32 %v51, 4294901760
    %v3104 = vsub.f32 %v51, %v3103
    %v3105 = vand.u32 %v3104, 4294901760
    %3106 = vmatpush1.msra.mxu0 %v3105
    %v3107 = vand.u32 %v40, 4294901760
    %v3108 = vsub.f32 %v40, %v3107
    %v3109 = vand.u32 %v3108, 4294901760
    %3110 = vmatprep.subr.mxu0 %v3109
    %v3111 = vand.u32 %v39, 4294901760
    %v3112 = vsub.f32 %v39, %v3111
    %v3113 = vand.u32 %v3112, 4294901760
    %3114 = vmatpush1.msra.mxu0 %v3113
    %v3115 = vand.u32 %v28, 4294901760
    %v3116 = vsub.f32 %v28, %v3115
    %v3117 = vand.u32 %v3116, 4294901760
    %3118 = vmatprep.subr.mxu0 %v3117
    %v3119 = vand.u32 %v27, 4294901760
    %v3120 = vsub.f32 %v27, %v3119
    %v3121 = vand.u32 %v3120, 4294901760
    %3122 = vmatpush1.msra.mxu0 %v3121
    %3123 = vmatprep.subr.mxu0 0.0
    %3124 = vmatpush2.msra.mxu0 0.0
    %3125 = vmatprep.subr.mxu0 0.0
    %3126 = vmatpush2.msra.mxu0 0.0
    %3127 = vmatprep.subr.mxu0 0.0
    %3128 = vmatpush2.msra.mxu0 0.0
    %3129 = vmatprep.subr.mxu0 0.0
    %3130 = vmatpush2.msra.mxu0 0.0
    %3131 = vmatprep.subr.mxu0 0.0
    %3132 = vmatpush2.msra.mxu0 0.0
    %3133 = vmatprep.subr.mxu0 0.0
    %3134 = vmatpush2.msra.mxu0 0.0
    %3135 = vmatprep.subr.mxu0 0.0
    %3136 = vmatpush2.msra.mxu0 0.0
    %3137 = vmatprep.subr.mxu0 0.0
    %3138 = vmatpush2.msra.mxu0 0.0
    %3139 = vmatprep.subr.mxu0 0.0
    %3140 = vmatpush2.msra.mxu0 0.0
    %3141 = vmatprep.subr.mxu0 0.0
    %3142 = vmatpush2.msra.mxu0 0.0
    %3143 = vmatprep.subr.mxu0 0.0
    %3144 = vmatpush2.msra.mxu0 0.0
    %3145 = vmatprep.subr.mxu0 0.0
    %3146 = vmatpush2.msra.mxu0 0.0
    %3147 = vmatprep.subr.mxu0 0.0
    %3148 = vmatpush2.msra.mxu0 0.0
    %3149 = vmatprep.subr.mxu0 0.0
    %3150 = vmatpush2.msra.mxu0 0.0
    %3151 = vmatprep.subr.mxu0 0.0
    %3152 = vmatpush2.msra.mxu0 0.0
    %3153 = vmatprep.subr.mxu0 0.0
    %3154 = vmatpush2.msra.mxu0 0.0
    %3155 = vmatprep.mubr.f32.mxu0 0.0
    %v3156 = vand.u32 %v105, 4294901760
    %3157 = vmatmul.mubr.f32.gmra.mxu0 %v3156
    %v3158 = vpop.f32.mrf.mxu0
    %v3159 = vadd.f32 %v3045, %v3158
    %v3160 = vpop.f32.mrf.mxu0
    %v3161 = vadd.f32 %v3047, %v3160
    %3162 = vdwg.mxu0
    %3163 = vmatprep.subr.mxu0 0.0
    %3164 = vmatpush1.msra.mxu0 0.0
    %3165 = vmatprep.subr.mxu0 0.0
    %3166 = vmatpush1.msra.mxu0 0.0
    %3167 = vmatprep.subr.mxu0 0.0
    %3168 = vmatpush1.msra.mxu0 0.0
    %3169 = vmatprep.subr.mxu0 0.0
    %3170 = vmatpush1.msra.mxu0 0.0
    %3171 = vmatprep.subr.mxu0 0.0
    %3172 = vmatpush1.msra.mxu0 0.0
    %3173 = vmatprep.subr.mxu0 0.0
    %3174 = vmatpush1.msra.mxu0 0.0
    %3175 = vmatprep.subr.mxu0 0.0
    %3176 = vmatpush1.msra.mxu0 0.0
    %3177 = vmatprep.subr.mxu0 0.0
    %3178 = vmatpush1.msra.mxu0 0.0
    %3179 = vmatprep.subr.mxu0 0.0
    %3180 = vmatpush1.msra.mxu0 0.0
    %v3181 = vand.u32 %v136, 4294901760
    %3182 = vmatprep.subr.mxu0 %v3181
    %v3183 = vand.u32 %v133, 4294901760
    %3184 = vmatpush1.msra.mxu0 %v3183
    %v3185 = vand.u32 %v88, 4294901760
    %3186 = vmatprep.subr.mxu0 %v3185
    %v3187 = vand.u32 %v87, 4294901760
    %3188 = vmatpush1.msra.mxu0 %v3187
    %v3189 = vand.u32 %v76, 4294901760
    %3190 = vmatprep.subr.mxu0 %v3189
    %v3191 = vand.u32 %v75, 4294901760
    %3192 = vmatpush1.msra.mxu0 %v3191
    %v3193 = vand.u32 %v64, 4294901760
    %3194 = vmatprep.subr.mxu0 %v3193
    %v3195 = vand.u32 %v63, 4294901760
    %3196 = vmatpush1.msra.mxu0 %v3195
    %v3197 = vand.u32 %v52, 4294901760
    %3198 = vmatprep.subr.mxu0 %v3197
    %v3199 = vand.u32 %v51, 4294901760
    %3200 = vmatpush1.msra.mxu0 %v3199
    %v3201 = vand.u32 %v40, 4294901760
    %3202 = vmatprep.subr.mxu0 %v3201
    %v3203 = vand.u32 %v39, 4294901760
    %3204 = vmatpush1.msra.mxu0 %v3203
    %v3205 = vand.u32 %v28, 4294901760
    %3206 = vmatprep.subr.mxu0 %v3205
    %v3207 = vand.u32 %v27, 4294901760
    %3208 = vmatpush1.msra.mxu0 %v3207
    %3209 = vmatprep.subr.mxu0 0.0
    %3210 = vmatpush2.msra.mxu0 0.0
    %3211 = vmatprep.subr.mxu0 0.0
    %3212 = vmatpush2.msra.mxu0 0.0
    %3213 = vmatprep.subr.mxu0 0.0
    %3214 = vmatpush2.msra.mxu0 0.0
    %3215 = vmatprep.subr.mxu0 0.0
    %3216 = vmatpush2.msra.mxu0 0.0
    %3217 = vmatprep.subr.mxu0 0.0
    %3218 = vmatpush2.msra.mxu0 0.0
    %3219 = vmatprep.subr.mxu0 0.0
    %3220 = vmatpush2.msra.mxu0 0.0
    %3221 = vmatprep.subr.mxu0 0.0
    %3222 = vmatpush2.msra.mxu0 0.0
    %3223 = vmatprep.subr.mxu0 0.0
    %3224 = vmatpush2.msra.mxu0 0.0
    %3225 = vmatprep.subr.mxu0 0.0
    %3226 = vmatpush2.msra.mxu0 0.0
    %3227 = vmatprep.subr.mxu0 0.0
    %3228 = vmatpush2.msra.mxu0 0.0
    %3229 = vmatprep.subr.mxu0 0.0
    %3230 = vmatpush2.msra.mxu0 0.0
    %3231 = vmatprep.subr.mxu0 0.0
    %3232 = vmatpush2.msra.mxu0 0.0
    %3233 = vmatprep.subr.mxu0 0.0
    %3234 = vmatpush2.msra.mxu0 0.0
    %3235 = vmatprep.subr.mxu0 0.0
    %3236 = vmatpush2.msra.mxu0 0.0
    %3237 = vmatprep.subr.mxu0 0.0
    %3238 = vmatpush2.msra.mxu0 0.0
    %3239 = vmatprep.subr.mxu0 0.0
    %3240 = vmatpush2.msra.mxu0 0.0
    %3241 = vmatprep.mubr.f32.mxu0 0.0
    %v3242 = vand.u32 %v105, 4294901760
    %3243 = vmatmul.mubr.f32.gmra.mxu0 %v3242
    %v3244 = vpop.f32.mrf.mxu0
    %v3245 = vadd.f32 %v3159, %v3244
    %v3246 = vpop.f32.mrf.mxu0
    %v3247 = vadd.f32 %v3161, %v3246
    %3248 = vdwg.mxu0
    %3249 = vmatprep.subr.mxu0 0.0
    %3250 = vmatpush1.msra.mxu0 0.0
    %3251 = vmatprep.subr.mxu0 0.0
    %3252 = vmatpush1.msra.mxu0 0.0
    %3253 = vmatprep.subr.mxu0 0.0
    %3254 = vmatpush1.msra.mxu0 0.0
    %3255 = vmatprep.subr.mxu0 0.0
    %3256 = vmatpush1.msra.mxu0 0.0
    %3257 = vmatprep.subr.mxu0 0.0
    %3258 = vmatpush1.msra.mxu0 0.0
    %3259 = vmatprep.subr.mxu0 0.0
    %3260 = vmatpush1.msra.mxu0 0.0
    %3261 = vmatprep.subr.mxu0 0.0
    %3262 = vmatpush1.msra.mxu0 0.0
    %3263 = vmatprep.subr.mxu0 0.0
    %3264 = vmatpush1.msra.mxu0 0.0
    %3265 = vmatprep.subr.mxu0 0.0
    %3266 = vmatpush1.msra.mxu0 0.0
    %v3267 = vand.u32 %v142, 4294901760
    %3268 = vmatprep.subr.mxu0 %v3267
    %v3269 = vand.u32 %v139, 4294901760
    %3270 = vmatpush1.msra.mxu0 %v3269
    %v3271 = vand.u32 %v90, 4294901760
    %3272 = vmatprep.subr.mxu0 %v3271
    %v3273 = vand.u32 %v89, 4294901760
    %3274 = vmatpush1.msra.mxu0 %v3273
    %v3275 = vand.u32 %v78, 4294901760
    %3276 = vmatprep.subr.mxu0 %v3275
    %v3277 = vand.u32 %v77, 4294901760
    %3278 = vmatpush1.msra.mxu0 %v3277
    %v3279 = vand.u32 %v66, 4294901760
    %3280 = vmatprep.subr.mxu0 %v3279
    %v3281 = vand.u32 %v65, 4294901760
    %3282 = vmatpush1.msra.mxu0 %v3281
    %v3283 = vand.u32 %v54, 4294901760
    %3284 = vmatprep.subr.mxu0 %v3283
    %v3285 = vand.u32 %v53, 4294901760
    %3286 = vmatpush1.msra.mxu0 %v3285
    %v3287 = vand.u32 %v42, 4294901760
    %3288 = vmatprep.subr.mxu0 %v3287
    %v3289 = vand.u32 %v41, 4294901760
    %3290 = vmatpush1.msra.mxu0 %v3289
    %v3291 = vand.u32 %v30, 4294901760
    %3292 = vmatprep.subr.mxu0 %v3291
    %v3293 = vand.u32 %v29, 4294901760
    %3294 = vmatpush1.msra.mxu0 %v3293
    %3295 = vmatprep.subr.mxu0 0.0
    %3296 = vmatpush2.msra.mxu0 0.0
    %3297 = vmatprep.subr.mxu0 0.0
    %3298 = vmatpush2.msra.mxu0 0.0
    %3299 = vmatprep.subr.mxu0 0.0
    %3300 = vmatpush2.msra.mxu0 0.0
    %3301 = vmatprep.subr.mxu0 0.0
    %3302 = vmatpush2.msra.mxu0 0.0
    %3303 = vmatprep.subr.mxu0 0.0
    %3304 = vmatpush2.msra.mxu0 0.0
    %3305 = vmatprep.subr.mxu0 0.0
    %3306 = vmatpush2.msra.mxu0 0.0
    %3307 = vmatprep.subr.mxu0 0.0
    %3308 = vmatpush2.msra.mxu0 0.0
    %3309 = vmatprep.subr.mxu0 0.0
    %3310 = vmatpush2.msra.mxu0 0.0
    %3311 = vmatprep.subr.mxu0 0.0
    %3312 = vmatpush2.msra.mxu0 0.0
    %3313 = vmatprep.subr.mxu0 0.0
    %3314 = vmatpush2.msra.mxu0 0.0
    %3315 = vmatprep.subr.mxu0 0.0
    %3316 = vmatpush2.msra.mxu0 0.0
    %3317 = vmatprep.subr.mxu0 0.0
    %3318 = vmatpush2.msra.mxu0 0.0
    %3319 = vmatprep.subr.mxu0 0.0
    %3320 = vmatpush2.msra.mxu0 0.0
    %3321 = vmatprep.subr.mxu0 0.0
    %3322 = vmatpush2.msra.mxu0 0.0
    %3323 = vmatprep.subr.mxu0 0.0
    %3324 = vmatpush2.msra.mxu0 0.0
    %3325 = vmatprep.subr.mxu0 0.0
    %3326 = vmatpush2.msra.mxu0 0.0
    %3327 = vmatprep.mubr.f32.mxu0 0.0
    %v3328 = vand.u32 %v105, 4294901760
    %v3329 = vsub.f32 %v105, %v3328
    %v3330 = vand.u32 %v3329, 4294901760
    %v3331 = vsub.f32 %v3329, %v3330
    %v3332 = vand.u32 %v3331, 4294901760
    %3333 = vmatmul.mubr.f32.gmra.mxu0 %v3332
    %v3334 = vpop.f32.mrf.mxu0
    %v3335 = vadd.f32 0.0, %v3334
    %v3336 = vpop.f32.mrf.mxu0
    %v3337 = vadd.f32 0.0, %v3336
    %3338 = vdwg.mxu0
    %3339 = vmatprep.subr.mxu0 0.0
    %3340 = vmatpush1.msra.mxu0 0.0
    %3341 = vmatprep.subr.mxu0 0.0
    %3342 = vmatpush1.msra.mxu0 0.0
    %3343 = vmatprep.subr.mxu0 0.0
    %3344 = vmatpush1.msra.mxu0 0.0
    %3345 = vmatprep.subr.mxu0 0.0
    %3346 = vmatpush1.msra.mxu0 0.0
    %3347 = vmatprep.subr.mxu0 0.0
    %3348 = vmatpush1.msra.mxu0 0.0
    %3349 = vmatprep.subr.mxu0 0.0
    %3350 = vmatpush1.msra.mxu0 0.0
    %3351 = vmatprep.subr.mxu0 0.0
    %3352 = vmatpush1.msra.mxu0 0.0
    %3353 = vmatprep.subr.mxu0 0.0
    %3354 = vmatpush1.msra.mxu0 0.0
    %3355 = vmatprep.subr.mxu0 0.0
    %3356 = vmatpush1.msra.mxu0 0.0
    %v3357 = vand.u32 %v142, 4294901760
    %v3358 = vsub.f32 %v142, %v3357
    %v3359 = vand.u32 %v3358, 4294901760
    %v3360 = vsub.f32 %v3358, %v3359
    %v3361 = vand.u32 %v3360, 4294901760
    %3362 = vmatprep.subr.mxu0 %v3361
    %v3363 = vand.u32 %v139, 4294901760
    %v3364 = vsub.f32 %v139, %v3363
    %v3365 = vand.u32 %v3364, 4294901760
    %v3366 = vsub.f32 %v3364, %v3365
    %v3367 = vand.u32 %v3366, 4294901760
    %3368 = vmatpush1.msra.mxu0 %v3367
    %v3369 = vand.u32 %v90, 4294901760
    %v3370 = vsub.f32 %v90, %v3369
    %v3371 = vand.u32 %v3370, 4294901760
    %v3372 = vsub.f32 %v3370, %v3371
    %v3373 = vand.u32 %v3372, 4294901760
    %3374 = vmatprep.subr.mxu0 %v3373
    %v3375 = vand.u32 %v89, 4294901760
    %v3376 = vsub.f32 %v89, %v3375
    %v3377 = vand.u32 %v3376, 4294901760
    %v3378 = vsub.f32 %v3376, %v3377
    %v3379 = vand.u32 %v3378, 4294901760
    %3380 = vmatpush1.msra.mxu0 %v3379
    %v3381 = vand.u32 %v78, 4294901760
    %v3382 = vsub.f32 %v78, %v3381
    %v3383 = vand.u32 %v3382, 4294901760
    %v3384 = vsub.f32 %v3382, %v3383
    %v3385 = vand.u32 %v3384, 4294901760
    %3386 = vmatprep.subr.mxu0 %v3385
    %v3387 = vand.u32 %v77, 4294901760
    %v3388 = vsub.f32 %v77, %v3387
    %v3389 = vand.u32 %v3388, 4294901760
    %v3390 = vsub.f32 %v3388, %v3389
    %v3391 = vand.u32 %v3390, 4294901760
    %3392 = vmatpush1.msra.mxu0 %v3391
    %v3393 = vand.u32 %v66, 4294901760
    %v3394 = vsub.f32 %v66, %v3393
    %v3395 = vand.u32 %v3394, 4294901760
    %v3396 = vsub.f32 %v3394, %v3395
    %v3397 = vand.u32 %v3396, 4294901760
    %3398 = vmatprep.subr.mxu0 %v3397
    %v3399 = vand.u32 %v65, 4294901760
    %v3400 = vsub.f32 %v65, %v3399
    %v3401 = vand.u32 %v3400, 4294901760
    %v3402 = vsub.f32 %v3400, %v3401
    %v3403 = vand.u32 %v3402, 4294901760
    %3404 = vmatpush1.msra.mxu0 %v3403
    %v3405 = vand.u32 %v54, 4294901760
    %v3406 = vsub.f32 %v54, %v3405
    %v3407 = vand.u32 %v3406, 4294901760
    %v3408 = vsub.f32 %v3406, %v3407
    %v3409 = vand.u32 %v3408, 4294901760
    %3410 = vmatprep.subr.mxu0 %v3409
    %v3411 = vand.u32 %v53, 4294901760
    %v3412 = vsub.f32 %v53, %v3411
    %v3413 = vand.u32 %v3412, 4294901760
    %v3414 = vsub.f32 %v3412, %v3413
    %v3415 = vand.u32 %v3414, 4294901760
    %3416 = vmatpush1.msra.mxu0 %v3415
    %v3417 = vand.u32 %v42, 4294901760
    %v3418 = vsub.f32 %v42, %v3417
    %v3419 = vand.u32 %v3418, 4294901760
    %v3420 = vsub.f32 %v3418, %v3419
    %v3421 = vand.u32 %v3420, 4294901760
    %3422 = vmatprep.subr.mxu0 %v3421
    %v3423 = vand.u32 %v41, 4294901760
    %v3424 = vsub.f32 %v41, %v3423
    %v3425 = vand.u32 %v3424, 4294901760
    %v3426 = vsub.f32 %v3424, %v3425
    %v3427 = vand.u32 %v3426, 4294901760
    %3428 = vmatpush1.msra.mxu0 %v3427
    %v3429 = vand.u32 %v30, 4294901760
    %v3430 = vsub.f32 %v30, %v3429
    %v3431 = vand.u32 %v3430, 4294901760
    %v3432 = vsub.f32 %v3430, %v3431
    %v3433 = vand.u32 %v3432, 4294901760
    %3434 = vmatprep.subr.mxu0 %v3433
    %v3435 = vand.u32 %v29, 4294901760
    %v3436 = vsub.f32 %v29, %v3435
    %v3437 = vand.u32 %v3436, 4294901760
    %v3438 = vsub.f32 %v3436, %v3437
    %v3439 = vand.u32 %v3438, 4294901760
    %3440 = vmatpush1.msra.mxu0 %v3439
    %3441 = vmatprep.subr.mxu0 0.0
    %3442 = vmatpush2.msra.mxu0 0.0
    %3443 = vmatprep.subr.mxu0 0.0
    %3444 = vmatpush2.msra.mxu0 0.0
    %3445 = vmatprep.subr.mxu0 0.0
    %3446 = vmatpush2.msra.mxu0 0.0
    %3447 = vmatprep.subr.mxu0 0.0
    %3448 = vmatpush2.msra.mxu0 0.0
    %3449 = vmatprep.subr.mxu0 0.0
    %3450 = vmatpush2.msra.mxu0 0.0
    %3451 = vmatprep.subr.mxu0 0.0
    %3452 = vmatpush2.msra.mxu0 0.0
    %3453 = vmatprep.subr.mxu0 0.0
    %3454 = vmatpush2.msra.mxu0 0.0
    %3455 = vmatprep.subr.mxu0 0.0
    %3456 = vmatpush2.msra.mxu0 0.0
    %3457 = vmatprep.subr.mxu0 0.0
    %3458 = vmatpush2.msra.mxu0 0.0
    %3459 = vmatprep.subr.mxu0 0.0
    %3460 = vmatpush2.msra.mxu0 0.0
    %3461 = vmatprep.subr.mxu0 0.0
    %3462 = vmatpush2.msra.mxu0 0.0
    %3463 = vmatprep.subr.mxu0 0.0
    %3464 = vmatpush2.msra.mxu0 0.0
    %3465 = vmatprep.subr.mxu0 0.0
    %3466 = vmatpush2.msra.mxu0 0.0
    %3467 = vmatprep.subr.mxu0 0.0
    %3468 = vmatpush2.msra.mxu0 0.0
    %3469 = vmatprep.subr.mxu0 0.0
    %3470 = vmatpush2.msra.mxu0 0.0
    %3471 = vmatprep.subr.mxu0 0.0
    %3472 = vmatpush2.msra.mxu0 0.0
    %3473 = vmatprep.mubr.f32.mxu0 0.0
    %v3474 = vand.u32 %v105, 4294901760
    %3475 = vmatmul.mubr.f32.gmra.mxu0 %v3474
    %v3476 = vpop.f32.mrf.mxu0
    %v3477 = vadd.f32 %v3335, %v3476
    %v3478 = vpop.f32.mrf.mxu0
    %v3479 = vadd.f32 %v3337, %v3478
    %3480 = vdwg.mxu0
    %3481 = vmatprep.subr.mxu0 0.0
    %3482 = vmatpush1.msra.mxu0 0.0
    %3483 = vmatprep.subr.mxu0 0.0
    %3484 = vmatpush1.msra.mxu0 0.0
    %3485 = vmatprep.subr.mxu0 0.0
    %3486 = vmatpush1.msra.mxu0 0.0
    %3487 = vmatprep.subr.mxu0 0.0
    %3488 = vmatpush1.msra.mxu0 0.0
    %3489 = vmatprep.subr.mxu0 0.0
    %3490 = vmatpush1.msra.mxu0 0.0
    %3491 = vmatprep.subr.mxu0 0.0
    %3492 = vmatpush1.msra.mxu0 0.0
    %3493 = vmatprep.subr.mxu0 0.0
    %3494 = vmatpush1.msra.mxu0 0.0
    %3495 = vmatprep.subr.mxu0 0.0
    %3496 = vmatpush1.msra.mxu0 0.0
    %3497 = vmatprep.subr.mxu0 0.0
    %3498 = vmatpush1.msra.mxu0 0.0
    %v3499 = vand.u32 %v142, 4294901760
    %v3500 = vsub.f32 %v142, %v3499
    %3501 = vmatprep.subr.mxu0 %v3500
    %v3502 = vand.u32 %v139, 4294901760
    %v3503 = vsub.f32 %v139, %v3502
    %3504 = vmatpush1.msra.mxu0 %v3503
    %v3505 = vand.u32 %v90, 4294901760
    %v3506 = vsub.f32 %v90, %v3505
    %3507 = vmatprep.subr.mxu0 %v3506
    %v3508 = vand.u32 %v89, 4294901760
    %v3509 = vsub.f32 %v89, %v3508
    %3510 = vmatpush1.msra.mxu0 %v3509
    %v3511 = vand.u32 %v78, 4294901760
    %v3512 = vsub.f32 %v78, %v3511
    %3513 = vmatprep.subr.mxu0 %v3512
    %v3514 = vand.u32 %v77, 4294901760
    %v3515 = vsub.f32 %v77, %v3514
    %3516 = vmatpush1.msra.mxu0 %v3515
    %v3517 = vand.u32 %v66, 4294901760
    %v3518 = vsub.f32 %v66, %v3517
    %3519 = vmatprep.subr.mxu0 %v3518
    %v3520 = vand.u32 %v65, 4294901760
    %v3521 = vsub.f32 %v65, %v3520
    %3522 = vmatpush1.msra.mxu0 %v3521
    %v3523 = vand.u32 %v54, 4294901760
    %v3524 = vsub.f32 %v54, %v3523
    %3525 = vmatprep.subr.mxu0 %v3524
    %v3526 = vand.u32 %v53, 4294901760
    %v3527 = vsub.f32 %v53, %v3526
    %3528 = vmatpush1.msra.mxu0 %v3527
    %v3529 = vand.u32 %v42, 4294901760
    %v3530 = vsub.f32 %v42, %v3529
    %3531 = vmatprep.subr.mxu0 %v3530
    %v3532 = vand.u32 %v41, 4294901760
    %v3533 = vsub.f32 %v41, %v3532
    %3534 = vmatpush1.msra.mxu0 %v3533
    %v3535 = vand.u32 %v30, 4294901760
    %v3536 = vsub.f32 %v30, %v3535
    %3537 = vmatprep.subr.mxu0 %v3536
    %v3538 = vand.u32 %v29, 4294901760
    %v3539 = vsub.f32 %v29, %v3538
    %3540 = vmatpush1.msra.mxu0 %v3539
    %3541 = vmatprep.subr.mxu0 0.0
    %3542 = vmatpush2.msra.mxu0 0.0
    %3543 = vmatprep.subr.mxu0 0.0
    %3544 = vmatpush2.msra.mxu0 0.0
    %3545 = vmatprep.subr.mxu0 0.0
    %3546 = vmatpush2.msra.mxu0 0.0
    %3547 = vmatprep.subr.mxu0 0.0
    %3548 = vmatpush2.msra.mxu0 0.0
    %3549 = vmatprep.subr.mxu0 0.0
    %3550 = vmatpush2.msra.mxu0 0.0
    %3551 = vmatprep.subr.mxu0 0.0
    %3552 = vmatpush2.msra.mxu0 0.0
    %3553 = vmatprep.subr.mxu0 0.0
    %3554 = vmatpush2.msra.mxu0 0.0
    %3555 = vmatprep.subr.mxu0 0.0
    %3556 = vmatpush2.msra.mxu0 0.0
    %3557 = vmatprep.subr.mxu0 0.0
    %3558 = vmatpush2.msra.mxu0 0.0
    %3559 = vmatprep.subr.mxu0 0.0
    %3560 = vmatpush2.msra.mxu0 0.0
    %3561 = vmatprep.subr.mxu0 0.0
    %3562 = vmatpush2.msra.mxu0 0.0
    %3563 = vmatprep.subr.mxu0 0.0
    %3564 = vmatpush2.msra.mxu0 0.0
    %3565 = vmatprep.subr.mxu0 0.0
    %3566 = vmatpush2.msra.mxu0 0.0
    %3567 = vmatprep.subr.mxu0 0.0
    %3568 = vmatpush2.msra.mxu0 0.0
    %3569 = vmatprep.subr.mxu0 0.0
    %3570 = vmatpush2.msra.mxu0 0.0
    %3571 = vmatprep.subr.mxu0 0.0
    %3572 = vmatpush2.msra.mxu0 0.0
    %3573 = vmatprep.mubr.f32.mxu0 0.0
    %v3574 = vand.u32 %v105, 4294901760
    %v3575 = vsub.f32 %v105, %v3574
    %3576 = vmatmul.mubr.f32.gmra.mxu0 %v3575
    %v3577 = vpop.f32.mrf.mxu0
    %v3578 = vadd.f32 %v3477, %v3577
    %v3579 = vpop.f32.mrf.mxu0
    %v3580 = vadd.f32 %v3479, %v3579
    %3581 = vdwg.mxu0
    %3582 = vmatprep.subr.mxu0 0.0
    %3583 = vmatpush1.msra.mxu0 0.0
    %3584 = vmatprep.subr.mxu0 0.0
    %3585 = vmatpush1.msra.mxu0 0.0
    %3586 = vmatprep.subr.mxu0 0.0
    %3587 = vmatpush1.msra.mxu0 0.0
    %3588 = vmatprep.subr.mxu0 0.0
    %3589 = vmatpush1.msra.mxu0 0.0
    %3590 = vmatprep.subr.mxu0 0.0
    %3591 = vmatpush1.msra.mxu0 0.0
    %3592 = vmatprep.subr.mxu0 0.0
    %3593 = vmatpush1.msra.mxu0 0.0
    %3594 = vmatprep.subr.mxu0 0.0
    %3595 = vmatpush1.msra.mxu0 0.0
    %3596 = vmatprep.subr.mxu0 0.0
    %3597 = vmatpush1.msra.mxu0 0.0
    %3598 = vmatprep.subr.mxu0 0.0
    %3599 = vmatpush1.msra.mxu0 0.0
    %v3600 = vand.u32 %v142, 4294901760
    %3601 = vmatprep.subr.mxu0 %v3600
    %v3602 = vand.u32 %v139, 4294901760
    %3603 = vmatpush1.msra.mxu0 %v3602
    %v3604 = vand.u32 %v90, 4294901760
    %3605 = vmatprep.subr.mxu0 %v3604
    %v3606 = vand.u32 %v89, 4294901760
    %3607 = vmatpush1.msra.mxu0 %v3606
    %v3608 = vand.u32 %v78, 4294901760
    %3609 = vmatprep.subr.mxu0 %v3608
    %v3610 = vand.u32 %v77, 4294901760
    %3611 = vmatpush1.msra.mxu0 %v3610
    %v3612 = vand.u32 %v66, 4294901760
    %3613 = vmatprep.subr.mxu0 %v3612
    %v3614 = vand.u32 %v65, 4294901760
    %3615 = vmatpush1.msra.mxu0 %v3614
    %v3616 = vand.u32 %v54, 4294901760
    %3617 = vmatprep.subr.mxu0 %v3616
    %v3618 = vand.u32 %v53, 4294901760
    %3619 = vmatpush1.msra.mxu0 %v3618
    %v3620 = vand.u32 %v42, 4294901760
    %3621 = vmatprep.subr.mxu0 %v3620
    %v3622 = vand.u32 %v41, 4294901760
    %3623 = vmatpush1.msra.mxu0 %v3622
    %v3624 = vand.u32 %v30, 4294901760
    %3625 = vmatprep.subr.mxu0 %v3624
    %v3626 = vand.u32 %v29, 4294901760
    %3627 = vmatpush1.msra.mxu0 %v3626
    %3628 = vmatprep.subr.mxu0 0.0
    %3629 = vmatpush2.msra.mxu0 0.0
    %3630 = vmatprep.subr.mxu0 0.0
    %3631 = vmatpush2.msra.mxu0 0.0
    %3632 = vmatprep.subr.mxu0 0.0
    %3633 = vmatpush2.msra.mxu0 0.0
    %3634 = vmatprep.subr.mxu0 0.0
    %3635 = vmatpush2.msra.mxu0 0.0
    %3636 = vmatprep.subr.mxu0 0.0
    %3637 = vmatpush2.msra.mxu0 0.0
    %3638 = vmatprep.subr.mxu0 0.0
    %3639 = vmatpush2.msra.mxu0 0.0
    %3640 = vmatprep.subr.mxu0 0.0
    %3641 = vmatpush2.msra.mxu0 0.0
    %3642 = vmatprep.subr.mxu0 0.0
    %3643 = vmatpush2.msra.mxu0 0.0
    %3644 = vmatprep.subr.mxu0 0.0
    %3645 = vmatpush2.msra.mxu0 0.0
    %3646 = vmatprep.subr.mxu0 0.0
    %3647 = vmatpush2.msra.mxu0 0.0
    %3648 = vmatprep.subr.mxu0 0.0
    %3649 = vmatpush2.msra.mxu0 0.0
    %3650 = vmatprep.subr.mxu0 0.0
    %3651 = vmatpush2.msra.mxu0 0.0
    %3652 = vmatprep.subr.mxu0 0.0
    %3653 = vmatpush2.msra.mxu0 0.0
    %3654 = vmatprep.subr.mxu0 0.0
    %3655 = vmatpush2.msra.mxu0 0.0
    %3656 = vmatprep.subr.mxu0 0.0
    %3657 = vmatpush2.msra.mxu0 0.0
    %3658 = vmatprep.subr.mxu0 0.0
    %3659 = vmatpush2.msra.mxu0 0.0
    %3660 = vmatprep.mubr.f32.mxu0 0.0
    %v3661 = vand.u32 %v105, 4294901760
    %v3662 = vsub.f32 %v105, %v3661
    %v3663 = vand.u32 %v3662, 4294901760
    %3664 = vmatmul.mubr.f32.gmra.mxu0 %v3663
    %v3665 = vpop.f32.mrf.mxu0
    %v3666 = vadd.f32 %v3578, %v3665
    %v3667 = vpop.f32.mrf.mxu0
    %v3668 = vadd.f32 %v3580, %v3667
    %3669 = vdwg.mxu0
    %3670 = vmatprep.subr.mxu0 0.0
    %3671 = vmatpush1.msra.mxu0 0.0
    %3672 = vmatprep.subr.mxu0 0.0
    %3673 = vmatpush1.msra.mxu0 0.0
    %3674 = vmatprep.subr.mxu0 0.0
    %3675 = vmatpush1.msra.mxu0 0.0
    %3676 = vmatprep.subr.mxu0 0.0
    %3677 = vmatpush1.msra.mxu0 0.0
    %3678 = vmatprep.subr.mxu0 0.0
    %3679 = vmatpush1.msra.mxu0 0.0
    %3680 = vmatprep.subr.mxu0 0.0
    %3681 = vmatpush1.msra.mxu0 0.0
    %3682 = vmatprep.subr.mxu0 0.0
    %3683 = vmatpush1.msra.mxu0 0.0
    %3684 = vmatprep.subr.mxu0 0.0
    %3685 = vmatpush1.msra.mxu0 0.0
    %3686 = vmatprep.subr.mxu0 0.0
    %3687 = vmatpush1.msra.mxu0 0.0
    %v3688 = vand.u32 %v142, 4294901760
    %v3689 = vsub.f32 %v142, %v3688
    %v3690 = vand.u32 %v3689, 4294901760
    %3691 = vmatprep.subr.mxu0 %v3690
    %v3692 = vand.u32 %v139, 4294901760
    %v3693 = vsub.f32 %v139, %v3692
    %v3694 = vand.u32 %v3693, 4294901760
    %3695 = vmatpush1.msra.mxu0 %v3694
    %v3696 = vand.u32 %v90, 4294901760
    %v3697 = vsub.f32 %v90, %v3696
    %v3698 = vand.u32 %v3697, 4294901760
    %3699 = vmatprep.subr.mxu0 %v3698
    %v3700 = vand.u32 %v89, 4294901760
    %v3701 = vsub.f32 %v89, %v3700
    %v3702 = vand.u32 %v3701, 4294901760
    %3703 = vmatpush1.msra.mxu0 %v3702
    %v3704 = vand.u32 %v78, 4294901760
    %v3705 = vsub.f32 %v78, %v3704
    %v3706 = vand.u32 %v3705, 4294901760
    %3707 = vmatprep.subr.mxu0 %v3706
    %v3708 = vand.u32 %v77, 4294901760
    %v3709 = vsub.f32 %v77, %v3708
    %v3710 = vand.u32 %v3709, 4294901760
    %3711 = vmatpush1.msra.mxu0 %v3710
    %v3712 = vand.u32 %v66, 4294901760
    %v3713 = vsub.f32 %v66, %v3712
    %v3714 = vand.u32 %v3713, 4294901760
    %3715 = vmatprep.subr.mxu0 %v3714
    %v3716 = vand.u32 %v65, 4294901760
    %v3717 = vsub.f32 %v65, %v3716
    %v3718 = vand.u32 %v3717, 4294901760
    %3719 = vmatpush1.msra.mxu0 %v3718
    %v3720 = vand.u32 %v54, 4294901760
    %v3721 = vsub.f32 %v54, %v3720
    %v3722 = vand.u32 %v3721, 4294901760
    %3723 = vmatprep.subr.mxu0 %v3722
    %v3724 = vand.u32 %v53, 4294901760
    %v3725 = vsub.f32 %v53, %v3724
    %v3726 = vand.u32 %v3725, 4294901760
    %3727 = vmatpush1.msra.mxu0 %v3726
    %v3728 = vand.u32 %v42, 4294901760
    %v3729 = vsub.f32 %v42, %v3728
    %v3730 = vand.u32 %v3729, 4294901760
    %3731 = vmatprep.subr.mxu0 %v3730
    %v3732 = vand.u32 %v41, 4294901760
    %v3733 = vsub.f32 %v41, %v3732
    %v3734 = vand.u32 %v3733, 4294901760
    %3735 = vmatpush1.msra.mxu0 %v3734
    %v3736 = vand.u32 %v30, 4294901760
    %v3737 = vsub.f32 %v30, %v3736
    %v3738 = vand.u32 %v3737, 4294901760
    %3739 = vmatprep.subr.mxu0 %v3738
    %v3740 = vand.u32 %v29, 4294901760
    %v3741 = vsub.f32 %v29, %v3740
    %v3742 = vand.u32 %v3741, 4294901760
    %3743 = vmatpush1.msra.mxu0 %v3742
    %3744 = vmatprep.subr.mxu0 0.0
    %3745 = vmatpush2.msra.mxu0 0.0
    %3746 = vmatprep.subr.mxu0 0.0
    %3747 = vmatpush2.msra.mxu0 0.0
    %3748 = vmatprep.subr.mxu0 0.0
    %3749 = vmatpush2.msra.mxu0 0.0
    %3750 = vmatprep.subr.mxu0 0.0
    %3751 = vmatpush2.msra.mxu0 0.0
    %3752 = vmatprep.subr.mxu0 0.0
    %3753 = vmatpush2.msra.mxu0 0.0
    %3754 = vmatprep.subr.mxu0 0.0
    %3755 = vmatpush2.msra.mxu0 0.0
    %3756 = vmatprep.subr.mxu0 0.0
    %3757 = vmatpush2.msra.mxu0 0.0
    %3758 = vmatprep.subr.mxu0 0.0
    %3759 = vmatpush2.msra.mxu0 0.0
    %3760 = vmatprep.subr.mxu0 0.0
    %3761 = vmatpush2.msra.mxu0 0.0
    %3762 = vmatprep.subr.mxu0 0.0
    %3763 = vmatpush2.msra.mxu0 0.0
    %3764 = vmatprep.subr.mxu0 0.0
    %3765 = vmatpush2.msra.mxu0 0.0
    %3766 = vmatprep.subr.mxu0 0.0
    %3767 = vmatpush2.msra.mxu0 0.0
    %3768 = vmatprep.subr.mxu0 0.0
    %3769 = vmatpush2.msra.mxu0 0.0
    %3770 = vmatprep.subr.mxu0 0.0
    %3771 = vmatpush2.msra.mxu0 0.0
    %3772 = vmatprep.subr.mxu0 0.0
    %3773 = vmatpush2.msra.mxu0 0.0
    %3774 = vmatprep.subr.mxu0 0.0
    %3775 = vmatpush2.msra.mxu0 0.0
    %3776 = vmatprep.mubr.f32.mxu0 0.0
    %v3777 = vand.u32 %v105, 4294901760
    %3778 = vmatmul.mubr.f32.gmra.mxu0 %v3777
    %v3779 = vpop.f32.mrf.mxu0
    %v3780 = vadd.f32 %v3666, %v3779
    %v3781 = vpop.f32.mrf.mxu0
    %v3782 = vadd.f32 %v3668, %v3781
    %3783 = vdwg.mxu0
    %3784 = vmatprep.subr.mxu0 0.0
    %3785 = vmatpush1.msra.mxu0 0.0
    %3786 = vmatprep.subr.mxu0 0.0
    %3787 = vmatpush1.msra.mxu0 0.0
    %3788 = vmatprep.subr.mxu0 0.0
    %3789 = vmatpush1.msra.mxu0 0.0
    %3790 = vmatprep.subr.mxu0 0.0
    %3791 = vmatpush1.msra.mxu0 0.0
    %3792 = vmatprep.subr.mxu0 0.0
    %3793 = vmatpush1.msra.mxu0 0.0
    %3794 = vmatprep.subr.mxu0 0.0
    %3795 = vmatpush1.msra.mxu0 0.0
    %3796 = vmatprep.subr.mxu0 0.0
    %3797 = vmatpush1.msra.mxu0 0.0
    %3798 = vmatprep.subr.mxu0 0.0
    %3799 = vmatpush1.msra.mxu0 0.0
    %3800 = vmatprep.subr.mxu0 0.0
    %3801 = vmatpush1.msra.mxu0 0.0
    %v3802 = vand.u32 %v142, 4294901760
    %3803 = vmatprep.subr.mxu0 %v3802
    %v3804 = vand.u32 %v139, 4294901760
    %3805 = vmatpush1.msra.mxu0 %v3804
    %v3806 = vand.u32 %v90, 4294901760
    %3807 = vmatprep.subr.mxu0 %v3806
    %v3808 = vand.u32 %v89, 4294901760
    %3809 = vmatpush1.msra.mxu0 %v3808
    %v3810 = vand.u32 %v78, 4294901760
    %3811 = vmatprep.subr.mxu0 %v3810
    %v3812 = vand.u32 %v77, 4294901760
    %3813 = vmatpush1.msra.mxu0 %v3812
    %v3814 = vand.u32 %v66, 4294901760
    %3815 = vmatprep.subr.mxu0 %v3814
    %v3816 = vand.u32 %v65, 4294901760
    %3817 = vmatpush1.msra.mxu0 %v3816
    %v3818 = vand.u32 %v54, 4294901760
    %3819 = vmatprep.subr.mxu0 %v3818
    %v3820 = vand.u32 %v53, 4294901760
    %3821 = vmatpush1.msra.mxu0 %v3820
    %v3822 = vand.u32 %v42, 4294901760
    %3823 = vmatprep.subr.mxu0 %v3822
    %v3824 = vand.u32 %v41, 4294901760
    %3825 = vmatpush1.msra.mxu0 %v3824
    %v3826 = vand.u32 %v30, 4294901760
    %3827 = vmatprep.subr.mxu0 %v3826
    %v3828 = vand.u32 %v29, 4294901760
    %3829 = vmatpush1.msra.mxu0 %v3828
    %3830 = vmatprep.subr.mxu0 0.0
    %3831 = vmatpush2.msra.mxu0 0.0
    %3832 = vmatprep.subr.mxu0 0.0
    %3833 = vmatpush2.msra.mxu0 0.0
    %3834 = vmatprep.subr.mxu0 0.0
    %3835 = vmatpush2.msra.mxu0 0.0
    %3836 = vmatprep.subr.mxu0 0.0
    %3837 = vmatpush2.msra.mxu0 0.0
    %3838 = vmatprep.subr.mxu0 0.0
    %3839 = vmatpush2.msra.mxu0 0.0
    %3840 = vmatprep.subr.mxu0 0.0
    %3841 = vmatpush2.msra.mxu0 0.0
    %3842 = vmatprep.subr.mxu0 0.0
    %3843 = vmatpush2.msra.mxu0 0.0
    %3844 = vmatprep.subr.mxu0 0.0
    %3845 = vmatpush2.msra.mxu0 0.0
    %3846 = vmatprep.subr.mxu0 0.0
    %3847 = vmatpush2.msra.mxu0 0.0
    %3848 = vmatprep.subr.mxu0 0.0
    %3849 = vmatpush2.msra.mxu0 0.0
    %3850 = vmatprep.subr.mxu0 0.0
    %3851 = vmatpush2.msra.mxu0 0.0
    %3852 = vmatprep.subr.mxu0 0.0
    %3853 = vmatpush2.msra.mxu0 0.0
    %3854 = vmatprep.subr.mxu0 0.0
    %3855 = vmatpush2.msra.mxu0 0.0
    %3856 = vmatprep.subr.mxu0 0.0
    %3857 = vmatpush2.msra.mxu0 0.0
    %3858 = vmatprep.subr.mxu0 0.0
    %3859 = vmatpush2.msra.mxu0 0.0
    %3860 = vmatprep.subr.mxu0 0.0
    %3861 = vmatpush2.msra.mxu0 0.0
    %3862 = vmatprep.mubr.f32.mxu0 0.0
    %v3863 = vand.u32 %v105, 4294901760
    %3864 = vmatmul.mubr.f32.gmra.mxu0 %v3863
    %v3865 = vpop.f32.mrf.mxu0
    %v3866 = vadd.f32 %v3780, %v3865
    %v3867 = vpop.f32.mrf.mxu0
    %v3868 = vadd.f32 %v3782, %v3867
    %3869 = vdwg.mxu0
    %v3870 = vld [vmem:[%s3] sm:$0x3]
    %v3871 = vld [vmem:[%s2] ss:$8 sm:$0xf]
    %3873 = vset.pattern.permute.xlu0 0
    %3874 = vperm.xlu0 %3873, %v3870
    %v3875 = vpop.permute.xlu0 %3874
    %v3877 = vmul.f32 %v3875, %v761
    %v3878 = vmul.f32 %v3875, %v763
    %v3879 = vmul.f32 %v3875, %v1382
    %v3880 = vmul.f32 %v3875, %v1384
    %3881 = vset.pattern.permute.xlu0 1
    %3882 = vperm.xlu0 %3881, %v3870
    %v3883 = vpop.permute.xlu0 %3882
    %v3885 = vmul.f32 %v3883, %v2003
    %v3886 = vmul.f32 %v3883, %v2005
    %v3887 = vmul.f32 %v3883, %v2624
    %v3888 = vmul.f32 %v3883, %v2626
    %v3889 = vadd.f32 %v3877, %v3885
    %v3890 = vadd.f32 %v3878, %v3886
    %v3891 = vadd.f32 %v3879, %v3887
    %v3892 = vadd.f32 %v3880, %v3888
    %3893 = vset.pattern.permute.xlu0 2
    %3894 = vperm.xlu0 %3893, %v3870
    %v3895 = vpop.permute.xlu0 %3894
    %v3897 = vmul.f32 %v3895, %v3245
    %v3898 = vmul.f32 %v3895, %v3247
    %v3899 = vmul.f32 %v3895, %v3866
    %v3900 = vmul.f32 %v3895, %v3868
    %v3901 = vadd.f32 %v3889, %v3897
    %v3902 = vadd.f32 %v3890, %v3898
    %v3903 = vadd.f32 %v3891, %v3899
    %v3904 = vadd.f32 %v3892, %v3900
    %3905 = vset.pattern.permute.xlu0 3
    %3906 = vperm.xlu0 %3905, %v3870
    %v3907 = vpop.permute.xlu0 %3906
    %v3909 = vadd.f32 %v3901, %v3907
    %v3910 = vadd.f32 %v3902, %v3907
    %v3911 = vadd.f32 %v3903, %v3907
    %v3912 = vadd.f32 %v3904, %v3907
    %v3914 = vlaneseq
    %v3915 = vshrl.u32 %v3914, 7
    %v3916 = vsub.s32 0, %v3915
    %v3917 = vrot.slane %v3871, %v3916
    %v3918 = vlaneseq
    %v3919 = vshrl.u32 %v3918, 7
    %v3920 = vsub.s32 1, %v3919
    %v3921 = vrot.slane %v3871, %v3920
    %v3922 = vlaneseq
    %v3923 = vshrl.u32 %v3922, 7
    %v3924 = vsub.s32 2, %v3923
    %v3925 = vrot.slane %v3871, %v3924
    %v3926 = vlaneseq
    %v3927 = vshrl.u32 %v3926, 7
    %v3928 = vsub.s32 3, %v3927
    %v3929 = vrot.slane %v3871, %v3928
    %v3934 = vmul.f32 %v3917, %v3909
    %v3935 = vmul.f32 %v3921, %v3910
    %v3936 = vmul.f32 %v3925, %v3911
    %v3937 = vmul.f32 %v3929, %v3912
    %3938 = vset.pattern.permute.xlu0 4
    %3939 = vperm.xlu0 %3938, %v3870
    %v3940 = vpop.permute.xlu0 %3939
    %v3942 = vmul.f32 %v3940, %v761
    %v3943 = vmul.f32 %v3940, %v763
    %v3944 = vmul.f32 %v3940, %v1382
    %v3945 = vmul.f32 %v3940, %v1384
    %3946 = vset.pattern.permute.xlu0 5
    %3947 = vperm.xlu0 %3946, %v3870
    %v3948 = vpop.permute.xlu0 %3947
    %v3950 = vmul.f32 %v3948, %v2003
    %v3951 = vmul.f32 %v3948, %v2005
    %v3952 = vmul.f32 %v3948, %v2624
    %v3953 = vmul.f32 %v3948, %v2626
    %v3954 = vadd.f32 %v3942, %v3950
    %v3955 = vadd.f32 %v3943, %v3951
    %v3956 = vadd.f32 %v3944, %v3952
    %v3957 = vadd.f32 %v3945, %v3953
    %3958 = vset.pattern.permute.xlu0 6
    %3959 = vperm.xlu0 %3958, %v3870
    %v3960 = vpop.permute.xlu0 %3959
    %v3962 = vmul.f32 %v3960, %v3245
    %v3963 = vmul.f32 %v3960, %v3247
    %v3964 = vmul.f32 %v3960, %v3866
    %v3965 = vmul.f32 %v3960, %v3868
    %v3966 = vadd.f32 %v3954, %v3962
    %v3967 = vadd.f32 %v3955, %v3963
    %v3968 = vadd.f32 %v3956, %v3964
    %v3969 = vadd.f32 %v3957, %v3965
    %3970 = vset.pattern.permute.xlu0 7
    %3971 = vperm.xlu0 %3970, %v3870
    %v3972 = vpop.permute.xlu0 %3971
    %v3974 = vadd.f32 %v3966, %v3972
    %v3975 = vadd.f32 %v3967, %v3972
    %v3976 = vadd.f32 %v3968, %v3972
    %v3977 = vadd.f32 %v3969, %v3972
    %v3978 = vmul.f32 %v3917, %v3974
    %v3979 = vmul.f32 %v3921, %v3975
    %v3980 = vmul.f32 %v3925, %v3976
    %v3981 = vmul.f32 %v3929, %v3977
    %3982 = vset.pattern.permute.xlu0 8
    %3983 = vperm.xlu0 %3982, %v3870
    %v3984 = vpop.permute.xlu0 %3983
    %v3986 = vmul.f32 %v3984, %v761
    %v3987 = vmul.f32 %v3984, %v763
    %v3988 = vmul.f32 %v3984, %v1382
    %v3989 = vmul.f32 %v3984, %v1384
    %3990 = vset.pattern.permute.xlu0 9
    %3991 = vperm.xlu0 %3990, %v3870
    %v3992 = vpop.permute.xlu0 %3991
    %v3994 = vmul.f32 %v3992, %v2003
    %v3995 = vmul.f32 %v3992, %v2005
    %v3996 = vmul.f32 %v3992, %v2624
    %v3997 = vmul.f32 %v3992, %v2626
    %v3998 = vadd.f32 %v3986, %v3994
    %v3999 = vadd.f32 %v3987, %v3995
    %v4000 = vadd.f32 %v3988, %v3996
    %v4001 = vadd.f32 %v3989, %v3997
    %4002 = vset.pattern.permute.xlu0 10
    %4003 = vperm.xlu0 %4002, %v3870
    %v4004 = vpop.permute.xlu0 %4003
    %v4006 = vmul.f32 %v4004, %v3245
    %v4007 = vmul.f32 %v4004, %v3247
    %v4008 = vmul.f32 %v4004, %v3866
    %v4009 = vmul.f32 %v4004, %v3868
    %v4010 = vadd.f32 %v3998, %v4006
    %v4011 = vadd.f32 %v3999, %v4007
    %v4012 = vadd.f32 %v4000, %v4008
    %v4013 = vadd.f32 %v4001, %v4009
    %4014 = vset.pattern.permute.xlu0 11
    %4015 = vperm.xlu0 %4014, %v3870
    %v4016 = vpop.permute.xlu0 %4015
    %v4018 = vadd.f32 %v4010, %v4016
    %v4019 = vadd.f32 %v4011, %v4016
    %v4020 = vadd.f32 %v4012, %v4016
    %v4021 = vadd.f32 %v4013, %v4016
    %v4022 = vmul.f32 %v3917, %v4018
    %v4023 = vmul.f32 %v3921, %v4019
    %v4024 = vmul.f32 %v3925, %v4020
    %v4025 = vmul.f32 %v3929, %v4021
    %s4026 = scalar_lea.vmem %s2, 1
    %v4027 = vld [vmem:[%s4026] ss:$8 sm:$0xf]
    %4028 = vset.pattern.permute.xlu0 12
    %4029 = vperm.xlu0 %4028, %v3870
    %v4030 = vpop.permute.xlu0 %4029
    %v4032 = vmul.f32 %v4030, %v761
    %v4033 = vmul.f32 %v4030, %v763
    %v4034 = vmul.f32 %v4030, %v1382
    %v4035 = vmul.f32 %v4030, %v1384
    %4036 = vset.pattern.permute.xlu0 13
    %4037 = vperm.xlu0 %4036, %v3870
    %v4038 = vpop.permute.xlu0 %4037
    %v4040 = vmul.f32 %v4038, %v2003
    %v4041 = vmul.f32 %v4038, %v2005
    %v4042 = vmul.f32 %v4038, %v2624
    %v4043 = vmul.f32 %v4038, %v2626
    %v4044 = vadd.f32 %v4032, %v4040
    %v4045 = vadd.f32 %v4033, %v4041
    %v4046 = vadd.f32 %v4034, %v4042
    %v4047 = vadd.f32 %v4035, %v4043
    %4048 = vset.pattern.permute.xlu0 14
    %4049 = vperm.xlu0 %4048, %v3870
    %v4050 = vpop.permute.xlu0 %4049
    %v4052 = vmul.f32 %v4050, %v3245
    %v4053 = vmul.f32 %v4050, %v3247
    %v4054 = vmul.f32 %v4050, %v3866
    %v4055 = vmul.f32 %v4050, %v3868
    %v4056 = vadd.f32 %v4044, %v4052
    %v4057 = vadd.f32 %v4045, %v4053
    %v4058 = vadd.f32 %v4046, %v4054
    %v4059 = vadd.f32 %v4047, %v4055
    %4060 = vset.pattern.permute.xlu0 15
    %4061 = vperm.xlu0 %4060, %v3870
    %v4062 = vpop.permute.xlu0 %4061
    %v4064 = vadd.f32 %v4056, %v4062
    %v4065 = vadd.f32 %v4057, %v4062
    %v4066 = vadd.f32 %v4058, %v4062
    %v4067 = vadd.f32 %v4059, %v4062
    %v4069 = vlaneseq
    %v4070 = vshrl.u32 %v4069, 7
    %v4071 = vsub.s32 0, %v4070
    %v4072 = vrot.slane %v4027, %v4071
    %v4073 = vlaneseq
    %v4074 = vshrl.u32 %v4073, 7
    %v4075 = vsub.s32 1, %v4074
    %v4076 = vrot.slane %v4027, %v4075
    %v4077 = vlaneseq
    %v4078 = vshrl.u32 %v4077, 7
    %v4079 = vsub.s32 2, %v4078
    %v4080 = vrot.slane %v4027, %v4079
    %v4081 = vlaneseq
    %v4082 = vshrl.u32 %v4081, 7
    %v4083 = vsub.s32 3, %v4082
    %v4084 = vrot.slane %v4027, %v4083
    %v4089 = vmul.f32 %v4072, %v4064
    %v4090 = vmul.f32 %v4076, %v4065
    %v4091 = vmul.f32 %v4080, %v4066
    %v4092 = vmul.f32 %v4084, %v4067
    %v4093 = vadd.f32 %v3934, %v4089
    %v4094 = vadd.f32 %v3935, %v4090
    %v4095 = vadd.f32 %v3936, %v4091
    %v4096 = vadd.f32 %v3937, %v4092
    %4097 = vset.pattern.permute.xlu0 16
    %4098 = vperm.xlu0 %4097, %v3870
    %v4099 = vpop.permute.xlu0 %4098
    %v4101 = vmul.f32 %v4099, %v761
    %v4102 = vmul.f32 %v4099, %v763
    %v4103 = vmul.f32 %v4099, %v1382
    %v4104 = vmul.f32 %v4099, %v1384
    %4105 = vset.pattern.permute.xlu0 17
    %4106 = vperm.xlu0 %4105, %v3870
    %v4107 = vpop.permute.xlu0 %4106
    %v4109 = vmul.f32 %v4107, %v2003
    %v4110 = vmul.f32 %v4107, %v2005
    %v4111 = vmul.f32 %v4107, %v2624
    %v4112 = vmul.f32 %v4107, %v2626
    %v4113 = vadd.f32 %v4101, %v4109
    %v4114 = vadd.f32 %v4102, %v4110
    %v4115 = vadd.f32 %v4103, %v4111
    %v4116 = vadd.f32 %v4104, %v4112
    %4117 = vset.pattern.permute.xlu0 18
    %4118 = vperm.xlu0 %4117, %v3870
    %v4119 = vpop.permute.xlu0 %4118
    %v4121 = vmul.f32 %v4119, %v3245
    %v4122 = vmul.f32 %v4119, %v3247
    %v4123 = vmul.f32 %v4119, %v3866
    %v4124 = vmul.f32 %v4119, %v3868
    %v4125 = vadd.f32 %v4113, %v4121
    %v4126 = vadd.f32 %v4114, %v4122
    %v4127 = vadd.f32 %v4115, %v4123
    %v4128 = vadd.f32 %v4116, %v4124
    %4129 = vset.pattern.permute.xlu0 19
    %4130 = vperm.xlu0 %4129, %v3870
    %v4131 = vpop.permute.xlu0 %4130
    %v4133 = vadd.f32 %v4125, %v4131
    %v4134 = vadd.f32 %v4126, %v4131
    %v4135 = vadd.f32 %v4127, %v4131
    %v4136 = vadd.f32 %v4128, %v4131
    %v4137 = vmul.f32 %v4072, %v4133
    %v4138 = vmul.f32 %v4076, %v4134
    %v4139 = vmul.f32 %v4080, %v4135
    %v4140 = vmul.f32 %v4084, %v4136
    %v4141 = vadd.f32 %v3978, %v4137
    %v4142 = vadd.f32 %v3979, %v4138
    %v4143 = vadd.f32 %v3980, %v4139
    %v4144 = vadd.f32 %v3981, %v4140
    %4145 = vset.pattern.permute.xlu0 20
    %4146 = vperm.xlu0 %4145, %v3870
    %v4147 = vpop.permute.xlu0 %4146
    %v4149 = vmul.f32 %v4147, %v761
    %v4150 = vmul.f32 %v4147, %v763
    %v4151 = vmul.f32 %v4147, %v1382
    %v4152 = vmul.f32 %v4147, %v1384
    %4153 = vset.pattern.permute.xlu0 21
    %4154 = vperm.xlu0 %4153, %v3870
    %v4155 = vpop.permute.xlu0 %4154
    %v4157 = vmul.f32 %v4155, %v2003
    %v4158 = vmul.f32 %v4155, %v2005
    %v4159 = vmul.f32 %v4155, %v2624
    %v4160 = vmul.f32 %v4155, %v2626
    %v4161 = vadd.f32 %v4149, %v4157
    %v4162 = vadd.f32 %v4150, %v4158
    %v4163 = vadd.f32 %v4151, %v4159
    %v4164 = vadd.f32 %v4152, %v4160
    %4165 = vset.pattern.permute.xlu0 22
    %4166 = vperm.xlu0 %4165, %v3870
    %v4167 = vpop.permute.xlu0 %4166
    %v4169 = vmul.f32 %v4167, %v3245
    %v4170 = vmul.f32 %v4167, %v3247
    %v4171 = vmul.f32 %v4167, %v3866
    %v4172 = vmul.f32 %v4167, %v3868
    %v4173 = vadd.f32 %v4161, %v4169
    %v4174 = vadd.f32 %v4162, %v4170
    %v4175 = vadd.f32 %v4163, %v4171
    %v4176 = vadd.f32 %v4164, %v4172
    %4177 = vset.pattern.permute.xlu0 23
    %4178 = vperm.xlu0 %4177, %v3870
    %v4179 = vpop.permute.xlu0 %4178
    %v4181 = vadd.f32 %v4173, %v4179
    %v4182 = vadd.f32 %v4174, %v4179
    %v4183 = vadd.f32 %v4175, %v4179
    %v4184 = vadd.f32 %v4176, %v4179
    %v4185 = vmul.f32 %v4072, %v4181
    %v4186 = vmul.f32 %v4076, %v4182
    %v4187 = vmul.f32 %v4080, %v4183
    %v4188 = vmul.f32 %v4084, %v4184
    %v4189 = vadd.f32 %v4022, %v4185
    %v4190 = vadd.f32 %v4023, %v4186
    %v4191 = vadd.f32 %v4024, %v4187
    %v4192 = vadd.f32 %v4025, %v4188
    %s4193 = scalar_lea.vmem %s2, 2
    %v4194 = vld [vmem:[%s4193] ss:$8 sm:$0xf]
    %4195 = vset.pattern.permute.xlu0 24
    %4196 = vperm.xlu0 %4195, %v3870
    %v4197 = vpop.permute.xlu0 %4196
    %v4199 = vmul.f32 %v4197, %v761
    %v4200 = vmul.f32 %v4197, %v763
    %v4201 = vmul.f32 %v4197, %v1382
    %v4202 = vmul.f32 %v4197, %v1384
    %4203 = vset.pattern.permute.xlu0 25
    %4204 = vperm.xlu0 %4203, %v3870
    %v4205 = vpop.permute.xlu0 %4204
    %v4207 = vmul.f32 %v4205, %v2003
    %v4208 = vmul.f32 %v4205, %v2005
    %v4209 = vmul.f32 %v4205, %v2624
    %v4210 = vmul.f32 %v4205, %v2626
    %v4211 = vadd.f32 %v4199, %v4207
    %v4212 = vadd.f32 %v4200, %v4208
    %v4213 = vadd.f32 %v4201, %v4209
    %v4214 = vadd.f32 %v4202, %v4210
    %4215 = vset.pattern.permute.xlu0 26
    %4216 = vperm.xlu0 %4215, %v3870
    %v4217 = vpop.permute.xlu0 %4216
    %v4219 = vmul.f32 %v4217, %v3245
    %v4220 = vmul.f32 %v4217, %v3247
    %v4221 = vmul.f32 %v4217, %v3866
    %v4222 = vmul.f32 %v4217, %v3868
    %v4223 = vadd.f32 %v4211, %v4219
    %v4224 = vadd.f32 %v4212, %v4220
    %v4225 = vadd.f32 %v4213, %v4221
    %v4226 = vadd.f32 %v4214, %v4222
    %4227 = vset.pattern.permute.xlu0 27
    %4228 = vperm.xlu0 %4227, %v3870
    %v4229 = vpop.permute.xlu0 %4228
    %v4231 = vadd.f32 %v4223, %v4229
    %v4232 = vadd.f32 %v4224, %v4229
    %v4233 = vadd.f32 %v4225, %v4229
    %v4234 = vadd.f32 %v4226, %v4229
    %v4236 = vlaneseq
    %v4237 = vshrl.u32 %v4236, 7
    %v4238 = vsub.s32 0, %v4237
    %v4239 = vrot.slane %v4194, %v4238
    %v4240 = vlaneseq
    %v4241 = vshrl.u32 %v4240, 7
    %v4242 = vsub.s32 1, %v4241
    %v4243 = vrot.slane %v4194, %v4242
    %v4244 = vlaneseq
    %v4245 = vshrl.u32 %v4244, 7
    %v4246 = vsub.s32 2, %v4245
    %v4247 = vrot.slane %v4194, %v4246
    %v4248 = vlaneseq
    %v4249 = vshrl.u32 %v4248, 7
    %v4250 = vsub.s32 3, %v4249
    %v4251 = vrot.slane %v4194, %v4250
    %v4256 = vmul.f32 %v4239, %v4231
    %v4257 = vmul.f32 %v4243, %v4232
    %v4258 = vmul.f32 %v4247, %v4233
    %v4259 = vmul.f32 %v4251, %v4234
    %v4260 = vadd.f32 %v4093, %v4256
    %v4261 = vadd.f32 %v4094, %v4257
    %v4262 = vadd.f32 %v4095, %v4258
    %v4263 = vadd.f32 %v4096, %v4259
    %4264 = vset.pattern.permute.xlu0 28
    %4265 = vperm.xlu0 %4264, %v3870
    %v4266 = vpop.permute.xlu0 %4265
    %v4268 = vmul.f32 %v4266, %v761
    %v4269 = vmul.f32 %v4266, %v763
    %v4270 = vmul.f32 %v4266, %v1382
    %v4271 = vmul.f32 %v4266, %v1384
    %4272 = vset.pattern.permute.xlu0 29
    %4273 = vperm.xlu0 %4272, %v3870
    %v4274 = vpop.permute.xlu0 %4273
    %v4276 = vmul.f32 %v4274, %v2003
    %v4277 = vmul.f32 %v4274, %v2005
    %v4278 = vmul.f32 %v4274, %v2624
    %v4279 = vmul.f32 %v4274, %v2626
    %v4280 = vadd.f32 %v4268, %v4276
    %v4281 = vadd.f32 %v4269, %v4277
    %v4282 = vadd.f32 %v4270, %v4278
    %v4283 = vadd.f32 %v4271, %v4279
    %4284 = vset.pattern.permute.xlu0 30
    %4285 = vperm.xlu0 %4284, %v3870
    %v4286 = vpop.permute.xlu0 %4285
    %v4288 = vmul.f32 %v4286, %v3245
    %v4289 = vmul.f32 %v4286, %v3247
    %v4290 = vmul.f32 %v4286, %v3866
    %v4291 = vmul.f32 %v4286, %v3868
    %v4292 = vadd.f32 %v4280, %v4288
    %v4293 = vadd.f32 %v4281, %v4289
    %v4294 = vadd.f32 %v4282, %v4290
    %v4295 = vadd.f32 %v4283, %v4291
    %4296 = vset.pattern.permute.xlu0 31
    %4297 = vperm.xlu0 %4296, %v3870
    %v4298 = vpop.permute.xlu0 %4297
    %v4300 = vadd.f32 %v4292, %v4298
    %v4301 = vadd.f32 %v4293, %v4298
    %v4302 = vadd.f32 %v4294, %v4298
    %v4303 = vadd.f32 %v4295, %v4298
    %v4304 = vmul.f32 %v4239, %v4300
    %v4305 = vmul.f32 %v4243, %v4301
    %v4306 = vmul.f32 %v4247, %v4302
    %v4307 = vmul.f32 %v4251, %v4303
    %v4308 = vadd.f32 %v4141, %v4304
    %v4309 = vadd.f32 %v4142, %v4305
    %v4310 = vadd.f32 %v4143, %v4306
    %v4311 = vadd.f32 %v4144, %v4307
    %4312 = vset.pattern.permute.xlu0 32
    %4313 = vperm.xlu0 %4312, %v3870
    %v4314 = vpop.permute.xlu0 %4313
    %v4316 = vmul.f32 %v4314, %v761
    %v4317 = vmul.f32 %v4314, %v763
    %v4318 = vmul.f32 %v4314, %v1382
    %v4319 = vmul.f32 %v4314, %v1384
    %4320 = vset.pattern.permute.xlu0 33
    %4321 = vperm.xlu0 %4320, %v3870
    %v4322 = vpop.permute.xlu0 %4321
    %v4324 = vmul.f32 %v4322, %v2003
    %v4325 = vmul.f32 %v4322, %v2005
    %v4326 = vmul.f32 %v4322, %v2624
    %v4327 = vmul.f32 %v4322, %v2626
    %v4328 = vadd.f32 %v4316, %v4324
    %v4329 = vadd.f32 %v4317, %v4325
    %v4330 = vadd.f32 %v4318, %v4326
    %v4331 = vadd.f32 %v4319, %v4327
    %4332 = vset.pattern.permute.xlu0 34
    %4333 = vperm.xlu0 %4332, %v3870
    %v4334 = vpop.permute.xlu0 %4333
    %v4336 = vmul.f32 %v4334, %v3245
    %v4337 = vmul.f32 %v4334, %v3247
    %v4338 = vmul.f32 %v4334, %v3866
    %v4339 = vmul.f32 %v4334, %v3868
    %v4340 = vadd.f32 %v4328, %v4336
    %v4341 = vadd.f32 %v4329, %v4337
    %v4342 = vadd.f32 %v4330, %v4338
    %v4343 = vadd.f32 %v4331, %v4339
    %4344 = vset.pattern.permute.xlu0 35
    %4345 = vperm.xlu0 %4344, %v3870
    %v4346 = vpop.permute.xlu0 %4345
    %v4348 = vadd.f32 %v4340, %v4346
    %v4349 = vadd.f32 %v4341, %v4346
    %v4350 = vadd.f32 %v4342, %v4346
    %v4351 = vadd.f32 %v4343, %v4346
    %v4352 = vmul.f32 %v4239, %v4348
    %v4353 = vmul.f32 %v4243, %v4349
    %v4354 = vmul.f32 %v4247, %v4350
    %v4355 = vmul.f32 %v4251, %v4351
    %v4356 = vadd.f32 %v4189, %v4352
    %v4357 = vadd.f32 %v4190, %v4353
    %v4358 = vadd.f32 %v4191, %v4354
    %v4359 = vadd.f32 %v4192, %v4355
    %s4360 = scalar_lea.vmem %s2, 3
    %v4361 = vld [vmem:[%s4360] ss:$8 sm:$0xf]
    %4362 = vset.pattern.permute.xlu0 36
    %4363 = vperm.xlu0 %4362, %v3870
    %v4364 = vpop.permute.xlu0 %4363
    %v4366 = vmul.f32 %v4364, %v761
    %v4367 = vmul.f32 %v4364, %v763
    %v4368 = vmul.f32 %v4364, %v1382
    %v4369 = vmul.f32 %v4364, %v1384
    %4370 = vset.pattern.permute.xlu0 37
    %4371 = vperm.xlu0 %4370, %v3870
    %v4372 = vpop.permute.xlu0 %4371
    %v4374 = vmul.f32 %v4372, %v2003
    %v4375 = vmul.f32 %v4372, %v2005
    %v4376 = vmul.f32 %v4372, %v2624
    %v4377 = vmul.f32 %v4372, %v2626
    %v4378 = vadd.f32 %v4366, %v4374
    %v4379 = vadd.f32 %v4367, %v4375
    %v4380 = vadd.f32 %v4368, %v4376
    %v4381 = vadd.f32 %v4369, %v4377
    %4382 = vset.pattern.permute.xlu0 38
    %4383 = vperm.xlu0 %4382, %v3870
    %v4384 = vpop.permute.xlu0 %4383
    %v4386 = vmul.f32 %v4384, %v3245
    %v4387 = vmul.f32 %v4384, %v3247
    %v4388 = vmul.f32 %v4384, %v3866
    %v4389 = vmul.f32 %v4384, %v3868
    %v4390 = vadd.f32 %v4378, %v4386
    %v4391 = vadd.f32 %v4379, %v4387
    %v4392 = vadd.f32 %v4380, %v4388
    %v4393 = vadd.f32 %v4381, %v4389
    %4394 = vset.pattern.permute.xlu0 39
    %4395 = vperm.xlu0 %4394, %v3870
    %v4396 = vpop.permute.xlu0 %4395
    %v4398 = vadd.f32 %v4390, %v4396
    %v4399 = vadd.f32 %v4391, %v4396
    %v4400 = vadd.f32 %v4392, %v4396
    %v4401 = vadd.f32 %v4393, %v4396
    %v4403 = vlaneseq
    %v4404 = vshrl.u32 %v4403, 7
    %v4405 = vsub.s32 0, %v4404
    %v4406 = vrot.slane %v4361, %v4405
    %v4407 = vlaneseq
    %v4408 = vshrl.u32 %v4407, 7
    %v4409 = vsub.s32 1, %v4408
    %v4410 = vrot.slane %v4361, %v4409
    %v4411 = vlaneseq
    %v4412 = vshrl.u32 %v4411, 7
    %v4413 = vsub.s32 2, %v4412
    %v4414 = vrot.slane %v4361, %v4413
    %v4415 = vlaneseq
    %v4416 = vshrl.u32 %v4415, 7
    %v4417 = vsub.s32 3, %v4416
    %v4418 = vrot.slane %v4361, %v4417
    %v4423 = vmul.f32 %v4406, %v4398
    %v4424 = vmul.f32 %v4410, %v4399
    %v4425 = vmul.f32 %v4414, %v4400
    %v4426 = vmul.f32 %v4418, %v4401
    %v4427 = vadd.f32 %v4260, %v4423
    %v4428 = vadd.f32 %v4261, %v4424
    %v4429 = vadd.f32 %v4262, %v4425
    %v4430 = vadd.f32 %v4263, %v4426
    %4431 = vset.pattern.permute.xlu0 40
    %4432 = vperm.xlu0 %4431, %v3870
    %v4433 = vpop.permute.xlu0 %4432
    %v4435 = vmul.f32 %v4433, %v761
    %v4436 = vmul.f32 %v4433, %v763
    %v4437 = vmul.f32 %v4433, %v1382
    %v4438 = vmul.f32 %v4433, %v1384
    %4439 = vset.pattern.permute.xlu0 41
    %4440 = vperm.xlu0 %4439, %v3870
    %v4441 = vpop.permute.xlu0 %4440
    %v4443 = vmul.f32 %v4441, %v2003
    %v4444 = vmul.f32 %v4441, %v2005
    %v4445 = vmul.f32 %v4441, %v2624
    %v4446 = vmul.f32 %v4441, %v2626
    %v4447 = vadd.f32 %v4435, %v4443
    %v4448 = vadd.f32 %v4436, %v4444
    %v4449 = vadd.f32 %v4437, %v4445
    %v4450 = vadd.f32 %v4438, %v4446
    %4451 = vset.pattern.permute.xlu0 42
    %4452 = vperm.xlu0 %4451, %v3870
    %v4453 = vpop.permute.xlu0 %4452
    %v4455 = vmul.f32 %v4453, %v3245
    %v4456 = vmul.f32 %v4453, %v3247
    %v4457 = vmul.f32 %v4453, %v3866
    %v4458 = vmul.f32 %v4453, %v3868
    %v4459 = vadd.f32 %v4447, %v4455
    %v4460 = vadd.f32 %v4448, %v4456
    %v4461 = vadd.f32 %v4449, %v4457
    %v4462 = vadd.f32 %v4450, %v4458
    %4463 = vset.pattern.permute.xlu0 43
    %4464 = vperm.xlu0 %4463, %v3870
    %v4465 = vpop.permute.xlu0 %4464
    %v4467 = vadd.f32 %v4459, %v4465
    %v4468 = vadd.f32 %v4460, %v4465
    %v4469 = vadd.f32 %v4461, %v4465
    %v4470 = vadd.f32 %v4462, %v4465
    %v4471 = vmul.f32 %v4406, %v4467
    %v4472 = vmul.f32 %v4410, %v4468
    %v4473 = vmul.f32 %v4414, %v4469
    %v4474 = vmul.f32 %v4418, %v4470
    %v4475 = vadd.f32 %v4308, %v4471
    %v4476 = vadd.f32 %v4309, %v4472
    %v4477 = vadd.f32 %v4310, %v4473
    %v4478 = vadd.f32 %v4311, %v4474
    %4479 = vset.pattern.permute.xlu0 44
    %4480 = vperm.xlu0 %4479, %v3870
    %v4481 = vpop.permute.xlu0 %4480
    %v4483 = vmul.f32 %v4481, %v761
    %v4484 = vmul.f32 %v4481, %v763
    %v4485 = vmul.f32 %v4481, %v1382
    %v4486 = vmul.f32 %v4481, %v1384
    %4487 = vset.pattern.permute.xlu0 45
    %4488 = vperm.xlu0 %4487, %v3870
    %v4489 = vpop.permute.xlu0 %4488
    %v4491 = vmul.f32 %v4489, %v2003
    %v4492 = vmul.f32 %v4489, %v2005
    %v4493 = vmul.f32 %v4489, %v2624
    %v4494 = vmul.f32 %v4489, %v2626
    %v4495 = vadd.f32 %v4483, %v4491
    %v4496 = vadd.f32 %v4484, %v4492
    %v4497 = vadd.f32 %v4485, %v4493
    %v4498 = vadd.f32 %v4486, %v4494
    %4499 = vset.pattern.permute.xlu0 46
    %4500 = vperm.xlu0 %4499, %v3870
    %v4501 = vpop.permute.xlu0 %4500
    %v4503 = vmul.f32 %v4501, %v3245
    %v4504 = vmul.f32 %v4501, %v3247
    %v4505 = vmul.f32 %v4501, %v3866
    %v4506 = vmul.f32 %v4501, %v3868
    %v4507 = vadd.f32 %v4495, %v4503
    %v4508 = vadd.f32 %v4496, %v4504
    %v4509 = vadd.f32 %v4497, %v4505
    %v4510 = vadd.f32 %v4498, %v4506
    %4511 = vset.pattern.permute.xlu0 47
    %4512 = vperm.xlu0 %4511, %v3870
    %v4513 = vpop.permute.xlu0 %4512
    %v4515 = vadd.f32 %v4507, %v4513
    %v4516 = vadd.f32 %v4508, %v4513
    %v4517 = vadd.f32 %v4509, %v4513
    %v4518 = vadd.f32 %v4510, %v4513
    %v4519 = vmul.f32 %v4406, %v4515
    %v4520 = vmul.f32 %v4410, %v4516
    %v4521 = vmul.f32 %v4414, %v4517
    %v4522 = vmul.f32 %v4418, %v4518
    %v4523 = vadd.f32 %v4356, %v4519
    %v4524 = vadd.f32 %v4357, %v4520
    %v4525 = vadd.f32 %v4358, %v4521
    %v4526 = vadd.f32 %v4359, %v4522
    %s4527 = scalar_lea.vmem %s2, 4
    %v4528 = vld [vmem:[%s4527] ss:$8 sm:$0xf]
    %4529 = vset.pattern.permute.xlu0 48
    %4530 = vperm.xlu0 %4529, %v3870
    %v4531 = vpop.permute.xlu0 %4530
    %v4533 = vmul.f32 %v4531, %v761
    %v4534 = vmul.f32 %v4531, %v763
    %v4535 = vmul.f32 %v4531, %v1382
    %v4536 = vmul.f32 %v4531, %v1384
    %4537 = vset.pattern.permute.xlu0 49
    %4538 = vperm.xlu0 %4537, %v3870
    %v4539 = vpop.permute.xlu0 %4538
    %v4541 = vmul.f32 %v4539, %v2003
    %v4542 = vmul.f32 %v4539, %v2005
    %v4543 = vmul.f32 %v4539, %v2624
    %v4544 = vmul.f32 %v4539, %v2626
    %v4545 = vadd.f32 %v4533, %v4541
    %v4546 = vadd.f32 %v4534, %v4542
    %v4547 = vadd.f32 %v4535, %v4543
    %v4548 = vadd.f32 %v4536, %v4544
    %4549 = vset.pattern.permute.xlu0 50
    %4550 = vperm.xlu0 %4549, %v3870
    %v4551 = vpop.permute.xlu0 %4550
    %v4553 = vmul.f32 %v4551, %v3245
    %v4554 = vmul.f32 %v4551, %v3247
    %v4555 = vmul.f32 %v4551, %v3866
    %v4556 = vmul.f32 %v4551, %v3868
    %v4557 = vadd.f32 %v4545, %v4553
    %v4558 = vadd.f32 %v4546, %v4554
    %v4559 = vadd.f32 %v4547, %v4555
    %v4560 = vadd.f32 %v4548, %v4556
    %4561 = vset.pattern.permute.xlu0 51
    %4562 = vperm.xlu0 %4561, %v3870
    %v4563 = vpop.permute.xlu0 %4562
    %v4565 = vadd.f32 %v4557, %v4563
    %v4566 = vadd.f32 %v4558, %v4563
    %v4567 = vadd.f32 %v4559, %v4563
    %v4568 = vadd.f32 %v4560, %v4563
    %v4570 = vlaneseq
    %v4571 = vshrl.u32 %v4570, 7
    %v4572 = vsub.s32 0, %v4571
    %v4573 = vrot.slane %v4528, %v4572
    %v4574 = vlaneseq
    %v4575 = vshrl.u32 %v4574, 7
    %v4576 = vsub.s32 1, %v4575
    %v4577 = vrot.slane %v4528, %v4576
    %v4578 = vlaneseq
    %v4579 = vshrl.u32 %v4578, 7
    %v4580 = vsub.s32 2, %v4579
    %v4581 = vrot.slane %v4528, %v4580
    %v4582 = vlaneseq
    %v4583 = vshrl.u32 %v4582, 7
    %v4584 = vsub.s32 3, %v4583
    %v4585 = vrot.slane %v4528, %v4584
    %v4590 = vmul.f32 %v4573, %v4565
    %v4591 = vmul.f32 %v4577, %v4566
    %v4592 = vmul.f32 %v4581, %v4567
    %v4593 = vmul.f32 %v4585, %v4568
    %v4594 = vadd.f32 %v4427, %v4590
    %v4595 = vadd.f32 %v4428, %v4591
    %v4596 = vadd.f32 %v4429, %v4592
    %v4597 = vadd.f32 %v4430, %v4593
    %4598 = vset.pattern.permute.xlu0 52
    %4599 = vperm.xlu0 %4598, %v3870
    %v4600 = vpop.permute.xlu0 %4599
    %v4602 = vmul.f32 %v4600, %v761
    %v4603 = vmul.f32 %v4600, %v763
    %v4604 = vmul.f32 %v4600, %v1382
    %v4605 = vmul.f32 %v4600, %v1384
    %4606 = vset.pattern.permute.xlu0 53
    %4607 = vperm.xlu0 %4606, %v3870
    %v4608 = vpop.permute.xlu0 %4607
    %v4610 = vmul.f32 %v4608, %v2003
    %v4611 = vmul.f32 %v4608, %v2005
    %v4612 = vmul.f32 %v4608, %v2624
    %v4613 = vmul.f32 %v4608, %v2626
    %v4614 = vadd.f32 %v4602, %v4610
    %v4615 = vadd.f32 %v4603, %v4611
    %v4616 = vadd.f32 %v4604, %v4612
    %v4617 = vadd.f32 %v4605, %v4613
    %4618 = vset.pattern.permute.xlu0 54
    %4619 = vperm.xlu0 %4618, %v3870
    %v4620 = vpop.permute.xlu0 %4619
    %v4622 = vmul.f32 %v4620, %v3245
    %v4623 = vmul.f32 %v4620, %v3247
    %v4624 = vmul.f32 %v4620, %v3866
    %v4625 = vmul.f32 %v4620, %v3868
    %v4626 = vadd.f32 %v4614, %v4622
    %v4627 = vadd.f32 %v4615, %v4623
    %v4628 = vadd.f32 %v4616, %v4624
    %v4629 = vadd.f32 %v4617, %v4625
    %4630 = vset.pattern.permute.xlu0 55
    %4631 = vperm.xlu0 %4630, %v3870
    %v4632 = vpop.permute.xlu0 %4631
    %v4634 = vadd.f32 %v4626, %v4632
    %v4635 = vadd.f32 %v4627, %v4632
    %v4636 = vadd.f32 %v4628, %v4632
    %v4637 = vadd.f32 %v4629, %v4632
    %v4638 = vmul.f32 %v4573, %v4634
    %v4639 = vmul.f32 %v4577, %v4635
    %v4640 = vmul.f32 %v4581, %v4636
    %v4641 = vmul.f32 %v4585, %v4637
    %v4642 = vadd.f32 %v4475, %v4638
    %v4643 = vadd.f32 %v4476, %v4639
    %v4644 = vadd.f32 %v4477, %v4640
    %v4645 = vadd.f32 %v4478, %v4641
    %4646 = vset.pattern.permute.xlu0 56
    %4647 = vperm.xlu0 %4646, %v3870
    %v4648 = vpop.permute.xlu0 %4647
    %v4650 = vmul.f32 %v4648, %v761
    %v4651 = vmul.f32 %v4648, %v763
    %v4652 = vmul.f32 %v4648, %v1382
    %v4653 = vmul.f32 %v4648, %v1384
    %4654 = vset.pattern.permute.xlu0 57
    %4655 = vperm.xlu0 %4654, %v3870
    %v4656 = vpop.permute.xlu0 %4655
    %v4658 = vmul.f32 %v4656, %v2003
    %v4659 = vmul.f32 %v4656, %v2005
    %v4660 = vmul.f32 %v4656, %v2624
    %v4661 = vmul.f32 %v4656, %v2626
    %v4662 = vadd.f32 %v4650, %v4658
    %v4663 = vadd.f32 %v4651, %v4659
    %v4664 = vadd.f32 %v4652, %v4660
    %v4665 = vadd.f32 %v4653, %v4661
    %4666 = vset.pattern.permute.xlu0 58
    %4667 = vperm.xlu0 %4666, %v3870
    %v4668 = vpop.permute.xlu0 %4667
    %v4670 = vmul.f32 %v4668, %v3245
    %v4671 = vmul.f32 %v4668, %v3247
    %v4672 = vmul.f32 %v4668, %v3866
    %v4673 = vmul.f32 %v4668, %v3868
    %v4674 = vadd.f32 %v4662, %v4670
    %v4675 = vadd.f32 %v4663, %v4671
    %v4676 = vadd.f32 %v4664, %v4672
    %v4677 = vadd.f32 %v4665, %v4673
    %4678 = vset.pattern.permute.xlu0 59
    %4679 = vperm.xlu0 %4678, %v3870
    %v4680 = vpop.permute.xlu0 %4679
    %v4682 = vadd.f32 %v4674, %v4680
    %v4683 = vadd.f32 %v4675, %v4680
    %v4684 = vadd.f32 %v4676, %v4680
    %v4685 = vadd.f32 %v4677, %v4680
    %v4686 = vmul.f32 %v4573, %v4682
    %v4687 = vmul.f32 %v4577, %v4683
    %v4688 = vmul.f32 %v4581, %v4684
    %v4689 = vmul.f32 %v4585, %v4685
    %v4690 = vadd.f32 %v4523, %v4686
    %v4691 = vadd.f32 %v4524, %v4687
    %v4692 = vadd.f32 %v4525, %v4688
    %v4693 = vadd.f32 %v4526, %v4689
    %v4698 = vcombine.low %v4594, %v4595
    %v4699 = vcombine.low %v4596, %v4597
    %v4701 = vunpack.c.l.s4 1983009808
    %v4702 = vunpack.c.0.s8 %v4701
    %v4703 = vlaneseq
    %v4704 = vshrl.u32 %v4703, 7
    %v4705 = vsub.s32 %v4702, %v4704
    %v4706 = vrot.slane %v4698, %v4705
    %v4708 = vunpack.c.l.s4 1983009808
    %v4709 = vunpack.c.0.s8 %v4708
    %v4710 = vlaneseq
    %v4711 = vshrl.u32 %v4710, 7
    %v4712 = vsub.s32 %v4709, %v4711
    %v4713 = vrot.slane %v4699, %v4712
    %v4714 = vcombine.low %v4706, %v4713
    %4716 = vst [vmem:[#allocation2] sm:$0xff] %v4714
    %v4721 = vcombine.low %v4642, %v4643
    %v4722 = vcombine.low %v4644, %v4645
    %v4724 = vunpack.c.l.s4 1983009808
    %v4725 = vunpack.c.0.s8 %v4724
    %v4726 = vlaneseq
    %v4727 = vshrl.u32 %v4726, 7
    %v4728 = vsub.s32 %v4725, %v4727
    %v4729 = vrot.slane %v4721, %v4728
    %v4731 = vunpack.c.l.s4 1983009808
    %v4732 = vunpack.c.0.s8 %v4731
    %v4733 = vlaneseq
    %v4734 = vshrl.u32 %v4733, 7
    %v4735 = vsub.s32 %v4732, %v4734
    %v4736 = vrot.slane %v4722, %v4735
    %v4737 = vcombine.low %v4729, %v4736
    %s4739 = scalar_lea.vmem [#allocation2], 8
    %4740 = vst [vmem:[%s4739] sm:$0xff] %v4737
    %v4745 = vcombine.low %v4690, %v4691
    %v4746 = vcombine.low %v4692, %v4693
    %v4748 = vunpack.c.l.s4 1983009808
    %v4749 = vunpack.c.0.s8 %v4748
    %v4750 = vlaneseq
    %v4751 = vshrl.u32 %v4750, 7
    %v4752 = vsub.s32 %v4749, %v4751
    %v4753 = vrot.slane %v4745, %v4752
    %v4755 = vunpack.c.l.s4 1983009808
    %v4756 = vunpack.c.0.s8 %v4755
    %v4757 = vlaneseq
    %v4758 = vshrl.u32 %v4757, 7
    %v4759 = vsub.s32 %v4756, %v4758
    %v4760 = vrot.slane %v4746, %v4759
    %v4761 = vcombine.low %v4753, %v4760
    %s4763 = scalar_lea.vmem [#allocation2], 16
    %4764 = vst [vmem:[%s4763] sm:$0xff] %v4761
    // Predicated region
    $region18: #{forward.1} parent=1 // pred_check
      _
    $region19: #{forward.1} parent=1 // pred_check_branch
      %4766 = sbr.rel (0) target = $region21
    $region20: #{forward.1} parent=1 // pred_region
      %s4768 = ssub.s32 384, 384
      %4769 = vsyncadd [#allocation3], %s4768
      %s4770 = sshll.u32 [#allocation2], 4
      %s4771 = int_to_ptr.vmem [resolvable:$true] %s4770
      %4776 = dma.vmem_to_hbm [thread:$0]  %s4771, 384, %s4, [#allocation3], 128, 128, 8
    $region21: #{forward.1} parent=1 // pred_fallthru
      _
    // Predicated region
    $region22: #{forward.1} parent=1 // pred_check
      _
    $region23: #{forward.1} parent=1 // pred_check_branch
      %4778 = sbr.rel (0) target = $region25
    $region24: #{forward.1} parent=1 // pred_region
      %4779 = dma.done [#allocation3], 384
    $region25: #{forward.1} parent=1 // pred_fallthru
      _
    %4780 = vsyncpa [#allocation3], 1

</llo_original>
